<compile_context>
chip_gen: v7x
topology: tpu7x:2x2x1
jax: 0.10.0
libtpu: 0.0.40
codegen_flags: <defaults>
</compile_context>

<pallas_src>
import jax
import jax.numpy as jnp
from jax.experimental import pallas as pl
from jax.experimental.pallas import tpu as pltpu

_BOTTLENECK = 256   # ProjBlock bottleneck size == cell_output_dim in ImageDDS
_DRUG_DIM = 768     # ViTMAE hidden size (CLS feature width)


# ----------------------------------------------------------------------------
# Kernel
# ----------------------------------------------------------------------------
def _imagedds_head_kernel(
        d1_ref, d2_ref, cell_ref,
        wc12_ref, bc12_ref, wc3_ref, bc3_ref,
        wd12_ref, bd12_ref, wd3_ref, bd3_ref,
        wfa_ref, bfa_ref, wfb_ref, bfb_ref, wffc_ref, bffc_ref,
        wga_ref, bga_ref, wgb_ref, bgb_ref, wgfc_ref, bgfc_ref,
        wp_ref, bp_ref,
        out_ref):
    f32 = jnp.float32
    nb = _BOTTLENECK

    def proj_block(x, w12_ref, b12_ref, w3_ref, b3_ref):
        # Fused first stage: one MXU call; cols [0:nb] = tanh branch,
        # cols [nb:2nb] = sigmoid branch.
        vu = jnp.dot(x, w12_ref[...], preferred_element_type=f32) + b12_ref[...]
        v = jnp.tanh(vu[:, :nb])
        u = jax.nn.sigmoid(vu[:, nb:])
        # Dropout is identity at inference.
        return jnp.dot(v * u, w3_ref[...], preferred_element_type=f32) + b3_ref[...]

    def fusion_block(x1, x2, wa_ref, ba_ref, wb_ref, bb_ref, wfc_ref, bfc_ref):
        att_x1 = jax.nn.sigmoid(
            jnp.dot(x1, wa_ref[...], preferred_element_type=f32) + ba_ref[...])
        att_x2 = jax.nn.sigmoid(
            jnp.dot(x2, wb_ref[...], preferred_element_type=f32) + bb_ref[...])
        x1n = x1 * (1.0 + att_x2)          # == x1 + att_x2 * x1
        x2n = x2 * (1.0 + att_x1)          # == x2 + att_x1 * x2
        # cat([x1n, x2n], axis=1) @ Wfc == x1n @ Wfc[:nb] + x2n @ Wfc[nb:]
        pre = (jnp.dot(x1n, wfc_ref[:nb, :], preferred_element_type=f32)
               + jnp.dot(x2n, wfc_ref[nb:, :], preferred_element_type=f32)
               + bfc_ref[...])
        return jnp.maximum(pre, 0.0)

    d1 = d1_ref[...].astype(f32)
    d2 = d2_ref[...].astype(f32)
    cell = cell_ref[...].astype(f32)

    cell_h = proj_block(cell, wc12_ref, bc12_ref, wc3_ref, bc3_ref)
    d1_h = proj_block(d1, wd12_ref, bd12_ref, wd3_ref, bd3_ref)
    d2_h = proj_block(d2, wd12_ref, bd12_ref, wd3_ref, bd3_ref)

    # Matches the PyTorch forward: fusion_d1c is used for BOTH drug-cell pairs,
    # and fusion_d1d2 takes (drug2_feature, drug1_feature).
    d1c = fusion_block(d1_h, cell_h, wfa_ref, bfa_ref, wfb_ref, bfb_ref,
                       wffc_ref, bffc_ref)
    d2c = fusion_block(d2_h, cell_h, wfa_ref, bfa_ref, wfb_ref, bfb_ref,
                       wffc_ref, bffc_ref)
    d1d2 = fusion_block(d2_h, d1_h, wga_ref, bga_ref, wgb_ref, bgb_ref,
                        wgfc_ref, bgfc_ref)

    # predict: sigmoid(cat([d1c, d2c, d1d2], axis=1) @ Wp + bp), Wp split in 3.
    logit = (jnp.dot(d1c, wp_ref[:nb, :], preferred_element_type=f32)
             + jnp.dot(d2c, wp_ref[nb:2 * nb, :], preferred_element_type=f32)
             + jnp.dot(d1d2, wp_ref[2 * nb:, :], preferred_element_type=f32)
             + bp_ref[...])
    out_ref[...] = jax.nn.sigmoid(logit).astype(out_ref.dtype)


# ----------------------------------------------------------------------------
# Wrapper
# ----------------------------------------------------------------------------
def _round_up(n, m):
    return ((n + m - 1) // m) * m


def _pad_rows(a, rows):
    pad = rows - a.shape[0]
    if pad == 0:
        return a
    return jnp.pad(a, ((0, pad),) + ((0, 0),) * (a.ndim - 1))


def _pad_cols(a, cols):
    pad = cols - a.shape[1]
    if pad == 0:
        return a
    return jnp.pad(a, ((0, 0), (0, pad)))


def imagedds_head_forward(drug1_feature, drug2_feature, cell_features, params,
                          *, block_b=128,
                          vmem_limit_bytes=48 * 1024 * 1024):
    """ImageDDS forward after the (frozen) drug encoder.

    drug1_feature, drug2_feature: [B, 768] ViTMAE CLS features.
    cell_features: [B, cell_dim].
    params: dict of PyTorch-layout Linear weights/biases (see _init_params).
    Returns sigmoid synergy predictions [B, 1].
    """
    B, drug_dim = drug1_feature.shape
    cell_dim = cell_features.shape[1]
    out_dtype = drug1_feature.dtype

    # ---- transpose params to [in, out], biases to [1, out]; fuse pairs ----
    def lin_t(name):
        return params[name + "_w"].T, params[name + "_b"][None, :]

    wct, bct = lin_t("cell_p11")           # tanh branch
    wcs, bcs = lin_t("cell_p12")           # sigmoid branch
    wc12 = jnp.concatenate([wct, wcs], axis=1)
    bc12 = jnp.concatenate([bct, bcs], axis=1)
    wc3, bc3 = lin_t("cell_p2")

    wdt, bdt = lin_t("drug_p11")
    wds, bds = lin_t("drug_p12")
    wd12 = jnp.concatenate([wdt, wds], axis=1)
    bd12 = jnp.concatenate([bdt, bds], axis=1)
    wd3, bd3 = lin_t("drug_p2")

    wfa, bfa = lin_t("f_d1c_att1")
    wfb, bfb = lin_t("f_d1c_att2")
    wffc, bffc = lin_t("f_d1c_fc")

    wga, bga = lin_t("f_d1d2_att1")
    wgb, bgb = lin_t("f_d1d2_att2")
    wgfc, bgfc = lin_t("f_d1d2_fc")

    wp, bp = lin_t("predict")

    # ---- pad cell feature dim to a lane-friendly multiple of 128 ----
    cell_dim_p = _round_up(cell_dim, 128)
    cell_features = _pad_cols(cell_features, cell_dim_p)
    wc12 = _pad_rows(wc12, cell_dim_p)     # zero rows -> no effect on matmul

    # ---- pad / tile the batch axis ----
    b8 = _round_up(B, 8)
    tb = block_b if b8 >= block_b else b8
    bp_rows = _round_up(b8, tb)
    d1 = _pad_rows(drug1_feature, bp_rows)
    d2 = _pad_rows(drug2_feature, bp_rows)
    cell = _pad_rows(cell_features, bp_rows)
    grid = (bp_rows // tb,)

    def act_spec(d):
        return pl.BlockSpec((tb, d), lambda i: (i, 0))

    def res_spec(a):                        # VMEM-resident (DMA'd once)
        return pl.BlockSpec(a.shape, lambda i: (0,) * a.ndim)

    weights = [wc12, bc12, wc3, bc3,
               wd12, bd12, wd3, bd3,
               wfa, bfa, wfb, bfb, wffc, bffc,
               wga, bga, wgb, bgb, wgfc, bgfc,
               wp, bp]

    out = pl.pallas_call(
        _imagedds_head_kernel,
        out_shape=jax.ShapeDtypeStruct((bp_rows, 1), out_dtype),
        grid_spec=pltpu.PrefetchScalarGridSpec(
            num_scalar_prefetch=0,
            grid=grid,
            in_specs=[act_spec(drug_dim), act_spec(drug_dim),
                      act_spec(cell_dim_p)]
                     + [res_spec(w) for w in weights],
            out_specs=pl.BlockSpec((tb, 1), lambda i: (i, 0)),
        ),
        compiler_params=pltpu.CompilerParams(
            dimension_semantics=("parallel",),
            vmem_limit_bytes=vmem_limit_bytes,
        ),
    )(d1, d2, cell, *weights)

    return out[:B]


# ----------------------------------------------------------------------------
# Parameters (PyTorch nn.Linear layout: W [out, in], b [out]) and reference
# ----------------------------------------------------------------------------
def _init_params(key, cell_dim, drug_dim=_DRUG_DIM, nb=_BOTTLENECK):
    names_shapes = [
        ("cell_p11", nb, cell_dim), ("cell_p12", nb, cell_dim),
        ("cell_p2", nb, nb),
        ("drug_p11", nb, drug_dim), ("drug_p12", nb, drug_dim),
        ("drug_p2", nb, nb),
        ("f_d1c_att1", nb, nb), ("f_d1c_att2", nb, nb), ("f_d1c_fc", nb, 2 * nb),
        ("f_d1d2_att1", nb, nb), ("f_d1d2_att2", nb, nb), ("f_d1d2_fc", nb, 2 * nb),
        ("predict", 1, 3 * nb),
    ]
    params = {}
    keys = jax.random.split(key, 2 * len(names_shapes))
    for idx, (name, out_d, in_d) in enumerate(names_shapes):
        scale = 1.0 / jnp.sqrt(jnp.float32(in_d))
        params[name + "_w"] = jax.random.uniform(
            keys[2 * idx], (out_d, in_d), minval=-scale, maxval=scale,
            dtype=jnp.float32)
        params[name + "_b"] = jax.random.uniform(
            keys[2 * idx + 1], (out_d,), minval=-scale, maxval=scale,
            dtype=jnp.float32)
    return params


def _reference(drug1_feature, drug2_feature, cell_features, params):
    def linear(x, name):
        return x @ params[name + "_w"].T + params[name + "_b"]

    def proj(x, prefix):
        v = jnp.tanh(linear(x, prefix + "_p11"))
        u = jax.nn.sigmoid(linear(x, prefix + "_p12"))
        return linear(v * u, prefix + "_p2")      # dropout = identity (eval)

    def fusion(x1, x2, prefix):
        att_x1 = jax.nn.sigmoid(linear(x1, prefix + "_att1"))
        att_x2 = jax.nn.sigmoid(linear(x2, prefix + "_att2"))
        x1 = x1 + att_x2 * x1
        x2 = x2 + att_x1 * x2
        return jnp.maximum(
            linear(jnp.concatenate([x1, x2], axis=1), prefix + "_fc"), 0.0)

    cell = proj(cell_features, "cell")
    d1 = proj(drug1_feature, "drug")
    d2 = proj(drug2_feature, "drug")
    d1c = fusion(d1, cell, "f_d1c")
    d2c = fusion(d2, cell, "f_d1c")           # forward reuses fusion_d1c
    d1d2 = fusion(d2, d1, "f_d1d2")
    final = jnp.concatenate([d1c, d2c, d1d2], axis=1)
    return jax.nn.sigmoid(linear(final, "predict"))


# ----------------------------------------------------------------------------
if __name__ == "__main__":
    batch = 2
    cell_dim = 128
    drug_dim = _DRUG_DIM

    key = jax.random.PRNGKey(0)
    k_d1, k_d2, k_cell, k_params = jax.random.split(key, 4)

    # Post-encoder ViTMAE CLS features (the frozen encoder itself is not
    # implemented as a Pallas kernel).
    drug1_feature = jax.random.normal(k_d1, (batch, drug_dim), dtype=jnp.float32)
    drug2_feature = jax.random.normal(k_d2, (batch, drug_dim), dtype=jnp.float32)
    cell_features = jax.random.normal(k_cell, (batch, cell_dim), dtype=jnp.float32)

    params = _init_params(k_params, cell_dim, drug_dim)

    out = imagedds_head_forward(drug1_feature, drug2_feature, cell_features,
                                params)
    out = jax.block_until_ready(out)

    ref = _reference(drug1_feature, drug2_feature, cell_features, params)
    assert out.shape == (batch, 1)
    max_err = jnp.max(jnp.abs(out - ref))
    assert jnp.allclose(out, ref, atol=2e-3, rtol=2e-3), f"max abs err {max_err}"

    print("KERNEL_OK")
</pallas_src>

<mosaic_0001>
module attributes {stable_mosaic.version = 11 : i64} {
  func.func @_imagedds_head_kernel(%arg0: i32, %arg1: memref<8x768xf32, #tpu.memory_space<vmem>>, %arg2: memref<8x768xf32, #tpu.memory_space<vmem>>, %arg3: memref<8x128xf32, #tpu.memory_space<vmem>>, %arg4: memref<128x512xf32, #tpu.memory_space<vmem>>, %arg5: memref<1x512xf32, #tpu.memory_space<vmem>>, %arg6: memref<256x256xf32, #tpu.memory_space<vmem>>, %arg7: memref<1x256xf32, #tpu.memory_space<vmem>>, %arg8: memref<768x512xf32, #tpu.memory_space<vmem>>, %arg9: memref<1x512xf32, #tpu.memory_space<vmem>>, %arg10: memref<256x256xf32, #tpu.memory_space<vmem>>, %arg11: memref<1x256xf32, #tpu.memory_space<vmem>>, %arg12: memref<256x256xf32, #tpu.memory_space<vmem>>, %arg13: memref<1x256xf32, #tpu.memory_space<vmem>>, %arg14: memref<256x256xf32, #tpu.memory_space<vmem>>, %arg15: memref<1x256xf32, #tpu.memory_space<vmem>>, %arg16: memref<512x256xf32, #tpu.memory_space<vmem>>, %arg17: memref<1x256xf32, #tpu.memory_space<vmem>>, %arg18: memref<256x256xf32, #tpu.memory_space<vmem>>, %arg19: memref<1x256xf32, #tpu.memory_space<vmem>>, %arg20: memref<256x256xf32, #tpu.memory_space<vmem>>, %arg21: memref<1x256xf32, #tpu.memory_space<vmem>>, %arg22: memref<512x256xf32, #tpu.memory_space<vmem>>, %arg23: memref<1x256xf32, #tpu.memory_space<vmem>>, %arg24: memref<768x1xf32, #tpu.memory_space<vmem>>, %arg25: memref<1x1xf32, #tpu.memory_space<vmem>>, %arg26: memref<8x1xf32, #tpu.memory_space<vmem>>) attributes {dimension_semantics = [#tpu.dimension_semantics<parallel>], iteration_bounds = array<i64: 1>, scalar_prefetch = 0 : i64, scratch_operands = 0 : i64, tpu.core_type = #tpu.core_type<tc>, window_params = [{transform_indices = @transform_0, window_bounds = array<i64: 8, 768>}, {transform_indices = @transform_1, window_bounds = array<i64: 8, 768>}, {transform_indices = @transform_2, window_bounds = array<i64: 8, 128>}, {pipeline_mode = #tpu.pipeline_mode<synchronous>, transform_indices = @transform_3, window_bounds = array<i64: 128, 512>}, {pipeline_mode = #tpu.pipeline_mode<synchronous>, transform_indices = @transform_4, window_bounds = array<i64: 1, 512>}, {pipeline_mode = #tpu.pipeline_mode<synchronous>, transform_indices = @transform_5, window_bounds = array<i64: 256, 256>}, {pipeline_mode = #tpu.pipeline_mode<synchronous>, transform_indices = @transform_6, window_bounds = array<i64: 1, 256>}, {pipeline_mode = #tpu.pipeline_mode<synchronous>, transform_indices = @transform_7, window_bounds = array<i64: 768, 512>}, {pipeline_mode = #tpu.pipeline_mode<synchronous>, transform_indices = @transform_8, window_bounds = array<i64: 1, 512>}, {pipeline_mode = #tpu.pipeline_mode<synchronous>, transform_indices = @transform_9, window_bounds = array<i64: 256, 256>}, {pipeline_mode = #tpu.pipeline_mode<synchronous>, transform_indices = @transform_10, window_bounds = array<i64: 1, 256>}, {pipeline_mode = #tpu.pipeline_mode<synchronous>, transform_indices = @transform_11, window_bounds = array<i64: 256, 256>}, {pipeline_mode = #tpu.pipeline_mode<synchronous>, transform_indices = @transform_12, window_bounds = array<i64: 1, 256>}, {pipeline_mode = #tpu.pipeline_mode<synchronous>, transform_indices = @transform_13, window_bounds = array<i64: 256, 256>}, {pipeline_mode = #tpu.pipeline_mode<synchronous>, transform_indices = @transform_14, window_bounds = array<i64: 1, 256>}, {pipeline_mode = #tpu.pipeline_mode<synchronous>, transform_indices = @transform_15, window_bounds = array<i64: 512, 256>}, {pipeline_mode = #tpu.pipeline_mode<synchronous>, transform_indices = @transform_16, window_bounds = array<i64: 1, 256>}, {pipeline_mode = #tpu.pipeline_mode<synchronous>, transform_indices = @transform_17, window_bounds = array<i64: 256, 256>}, {pipeline_mode = #tpu.pipeline_mode<synchronous>, transform_indices = @transform_18, window_bounds = array<i64: 1, 256>}, {pipeline_mode = #tpu.pipeline_mode<synchronous>, transform_indices = @transform_19, window_bounds = array<i64: 256, 256>}, {pipeline_mode = #tpu.pipeline_mode<synchronous>, transform_indices = @transform_20, window_bounds = array<i64: 1, 256>}, {pipeline_mode = #tpu.pipeline_mode<synchronous>, transform_indices = @transform_21, window_bounds = array<i64: 512, 256>}, {pipeline_mode = #tpu.pipeline_mode<synchronous>, transform_indices = @transform_22, window_bounds = array<i64: 1, 256>}, {pipeline_mode = #tpu.pipeline_mode<synchronous>, transform_indices = @transform_23, window_bounds = array<i64: 768, 1>}, {pipeline_mode = #tpu.pipeline_mode<synchronous>, transform_indices = @transform_24, window_bounds = array<i64: 1, 1>}, {transform_indices = @transform_25, window_bounds = array<i64: 8, 1>}]} {
    %c0 = arith.constant 0 : index
    %c0_0 = arith.constant 0 : index
    %0 = vector.load %arg1[%c0, %c0_0] : memref<8x768xf32, #tpu.memory_space<vmem>>, vector<8x768xf32>
    %c0_1 = arith.constant 0 : index
    %c0_2 = arith.constant 0 : index
    %1 = vector.load %arg2[%c0_1, %c0_2] : memref<8x768xf32, #tpu.memory_space<vmem>>, vector<8x768xf32>
    %c0_3 = arith.constant 0 : index
    %c0_4 = arith.constant 0 : index
    %2 = vector.load %arg3[%c0_3, %c0_4] : memref<8x128xf32, #tpu.memory_space<vmem>>, vector<8x128xf32>
    %c0_5 = arith.constant 0 : index
    %c0_6 = arith.constant 0 : index
    %3 = vector.load %arg4[%c0_5, %c0_6] : memref<128x512xf32, #tpu.memory_space<vmem>>, vector<128x512xf32>
    %cst = arith.constant dense<0.000000e+00> : vector<8x512xf32>
    %4 = tpu.matmul %2, %3, %cst {dimension_numbers = #tpu.dot_dimension_numbers<[1], [0], [0], [1], [0, 0, 1, 1], [], []>} : vector<8x128xf32>, vector<128x512xf32>, vector<8x512xf32> -> vector<8x512xf32>
    %c0_7 = arith.constant 0 : index
    %c0_8 = arith.constant 0 : index
    %5 = vector.load %arg5[%c0_7, %c0_8] : memref<1x512xf32, #tpu.memory_space<vmem>>, vector<1x512xf32>
    %6 = vector.broadcast %5 : vector<1x512xf32> to vector<8x512xf32>
    %7 = arith.addf %4, %6 : vector<8x512xf32>
    %8 = vector.extract_strided_slice %7 {offsets = [0, 0], sizes = [8, 256], strides = [1, 1]} : vector<8x512xf32> to vector<8x256xf32>
    %9 = math.tanh %8 : vector<8x256xf32>
    %10 = vector.extract_strided_slice %7 {offsets = [0, 256], sizes = [8, 256], strides = [1, 1]} : vector<8x512xf32> to vector<8x256xf32>
    %11 = arith.negf %10 : vector<8x256xf32>
    %12 = math.exp %11 : vector<8x256xf32>
    %cst_9 = arith.constant 1.000000e+00 : f32
    %13 = vector.broadcast %cst_9 : f32 to vector<8x256xf32>
    %14 = arith.addf %13, %12 : vector<8x256xf32>
    %15 = arith.divf %13, %14 : vector<8x256xf32>
    %16 = arith.mulf %9, %15 : vector<8x256xf32>
    %c0_10 = arith.constant 0 : index
    %c0_11 = arith.constant 0 : index
    %17 = vector.load %arg6[%c0_10, %c0_11] : memref<256x256xf32, #tpu.memory_space<vmem>>, vector<256x256xf32>
    %cst_12 = arith.constant dense<0.000000e+00> : vector<8x256xf32>
    %18 = tpu.matmul %16, %17, %cst_12 {dimension_numbers = #tpu.dot_dimension_numbers<[1], [0], [0], [1], [0, 0, 1, 1], [], []>} : vector<8x256xf32>, vector<256x256xf32>, vector<8x256xf32> -> vector<8x256xf32>
    %c0_13 = arith.constant 0 : index
    %c0_14 = arith.constant 0 : index
    %19 = vector.load %arg7[%c0_13, %c0_14] : memref<1x256xf32, #tpu.memory_space<vmem>>, vector<1x256xf32>
    %20 = vector.broadcast %19 : vector<1x256xf32> to vector<8x256xf32>
    %21 = arith.addf %18, %20 : vector<8x256xf32>
    %c0_15 = arith.constant 0 : index
    %c0_16 = arith.constant 0 : index
    %22 = vector.load %arg8[%c0_15, %c0_16] : memref<768x512xf32, #tpu.memory_space<vmem>>, vector<768x512xf32>
    %cst_17 = arith.constant dense<0.000000e+00> : vector<8x512xf32>
    %23 = tpu.matmul %0, %22, %cst_17 {dimension_numbers = #tpu.dot_dimension_numbers<[1], [0], [0], [1], [0, 0, 1, 1], [], []>} : vector<8x768xf32>, vector<768x512xf32>, vector<8x512xf32> -> vector<8x512xf32>
    %c0_18 = arith.constant 0 : index
    %c0_19 = arith.constant 0 : index
    %24 = vector.load %arg9[%c0_18, %c0_19] : memref<1x512xf32, #tpu.memory_space<vmem>>, vector<1x512xf32>
    %25 = vector.broadcast %24 : vector<1x512xf32> to vector<8x512xf32>
    %26 = arith.addf %23, %25 : vector<8x512xf32>
    %27 = vector.extract_strided_slice %26 {offsets = [0, 0], sizes = [8, 256], strides = [1, 1]} : vector<8x512xf32> to vector<8x256xf32>
    %28 = math.tanh %27 : vector<8x256xf32>
    %29 = vector.extract_strided_slice %26 {offsets = [0, 256], sizes = [8, 256], strides = [1, 1]} : vector<8x512xf32> to vector<8x256xf32>
    %30 = arith.negf %29 : vector<8x256xf32>
    %31 = math.exp %30 : vector<8x256xf32>
    %cst_20 = arith.constant 1.000000e+00 : f32
    %32 = vector.broadcast %cst_20 : f32 to vector<8x256xf32>
    %33 = arith.addf %32, %31 : vector<8x256xf32>
    %34 = arith.divf %32, %33 : vector<8x256xf32>
    %35 = arith.mulf %28, %34 : vector<8x256xf32>
    %c0_21 = arith.constant 0 : index
    %c0_22 = arith.constant 0 : index
    %36 = vector.load %arg10[%c0_21, %c0_22] : memref<256x256xf32, #tpu.memory_space<vmem>>, vector<256x256xf32>
    %cst_23 = arith.constant dense<0.000000e+00> : vector<8x256xf32>
    %37 = tpu.matmul %35, %36, %cst_23 {dimension_numbers = #tpu.dot_dimension_numbers<[1], [0], [0], [1], [0, 0, 1, 1], [], []>} : vector<8x256xf32>, vector<256x256xf32>, vector<8x256xf32> -> vector<8x256xf32>
    %c0_24 = arith.constant 0 : index
    %c0_25 = arith.constant 0 : index
    %38 = vector.load %arg11[%c0_24, %c0_25] : memref<1x256xf32, #tpu.memory_space<vmem>>, vector<1x256xf32>
    %39 = vector.broadcast %38 : vector<1x256xf32> to vector<8x256xf32>
    %40 = arith.addf %37, %39 : vector<8x256xf32>
    %c0_26 = arith.constant 0 : index
    %c0_27 = arith.constant 0 : index
    %41 = vector.load %arg8[%c0_26, %c0_27] : memref<768x512xf32, #tpu.memory_space<vmem>>, vector<768x512xf32>
    %cst_28 = arith.constant dense<0.000000e+00> : vector<8x512xf32>
    %42 = tpu.matmul %1, %41, %cst_28 {dimension_numbers = #tpu.dot_dimension_numbers<[1], [0], [0], [1], [0, 0, 1, 1], [], []>} : vector<8x768xf32>, vector<768x512xf32>, vector<8x512xf32> -> vector<8x512xf32>
    %c0_29 = arith.constant 0 : index
    %c0_30 = arith.constant 0 : index
    %43 = vector.load %arg9[%c0_29, %c0_30] : memref<1x512xf32, #tpu.memory_space<vmem>>, vector<1x512xf32>
    %44 = vector.broadcast %43 : vector<1x512xf32> to vector<8x512xf32>
    %45 = arith.addf %42, %44 : vector<8x512xf32>
    %46 = vector.extract_strided_slice %45 {offsets = [0, 0], sizes = [8, 256], strides = [1, 1]} : vector<8x512xf32> to vector<8x256xf32>
    %47 = math.tanh %46 : vector<8x256xf32>
    %48 = vector.extract_strided_slice %45 {offsets = [0, 256], sizes = [8, 256], strides = [1, 1]} : vector<8x512xf32> to vector<8x256xf32>
    %49 = arith.negf %48 : vector<8x256xf32>
    %50 = math.exp %49 : vector<8x256xf32>
    %cst_31 = arith.constant 1.000000e+00 : f32
    %51 = vector.broadcast %cst_31 : f32 to vector<8x256xf32>
    %52 = arith.addf %51, %50 : vector<8x256xf32>
    %53 = arith.divf %51, %52 : vector<8x256xf32>
    %54 = arith.mulf %47, %53 : vector<8x256xf32>
    %c0_32 = arith.constant 0 : index
    %c0_33 = arith.constant 0 : index
    %55 = vector.load %arg10[%c0_32, %c0_33] : memref<256x256xf32, #tpu.memory_space<vmem>>, vector<256x256xf32>
    %cst_34 = arith.constant dense<0.000000e+00> : vector<8x256xf32>
    %56 = tpu.matmul %54, %55, %cst_34 {dimension_numbers = #tpu.dot_dimension_numbers<[1], [0], [0], [1], [0, 0, 1, 1], [], []>} : vector<8x256xf32>, vector<256x256xf32>, vector<8x256xf32> -> vector<8x256xf32>
    %c0_35 = arith.constant 0 : index
    %c0_36 = arith.constant 0 : index
    %57 = vector.load %arg11[%c0_35, %c0_36] : memref<1x256xf32, #tpu.memory_space<vmem>>, vector<1x256xf32>
    %58 = vector.broadcast %57 : vector<1x256xf32> to vector<8x256xf32>
    %59 = arith.addf %56, %58 : vector<8x256xf32>
    %c0_37 = arith.constant 0 : index
    %c0_38 = arith.constant 0 : index
    %60 = vector.load %arg12[%c0_37, %c0_38] : memref<256x256xf32, #tpu.memory_space<vmem>>, vector<256x256xf32>
    %cst_39 = arith.constant dense<0.000000e+00> : vector<8x256xf32>
    %61 = tpu.matmul %40, %60, %cst_39 {dimension_numbers = #tpu.dot_dimension_numbers<[1], [0], [0], [1], [0, 0, 1, 1], [], []>} : vector<8x256xf32>, vector<256x256xf32>, vector<8x256xf32> -> vector<8x256xf32>
    %c0_40 = arith.constant 0 : index
    %c0_41 = arith.constant 0 : index
    %62 = vector.load %arg13[%c0_40, %c0_41] : memref<1x256xf32, #tpu.memory_space<vmem>>, vector<1x256xf32>
    %63 = vector.broadcast %62 : vector<1x256xf32> to vector<8x256xf32>
    %64 = arith.addf %61, %63 : vector<8x256xf32>
    %65 = arith.negf %64 : vector<8x256xf32>
    %66 = math.exp %65 : vector<8x256xf32>
    %cst_42 = arith.constant 1.000000e+00 : f32
    %67 = vector.broadcast %cst_42 : f32 to vector<8x256xf32>
    %68 = arith.addf %67, %66 : vector<8x256xf32>
    %69 = arith.divf %67, %68 : vector<8x256xf32>
    %c0_43 = arith.constant 0 : index
    %c0_44 = arith.constant 0 : index
    %70 = vector.load %arg14[%c0_43, %c0_44] : memref<256x256xf32, #tpu.memory_space<vmem>>, vector<256x256xf32>
    %cst_45 = arith.constant dense<0.000000e+00> : vector<8x256xf32>
    %71 = tpu.matmul %21, %70, %cst_45 {dimension_numbers = #tpu.dot_dimension_numbers<[1], [0], [0], [1], [0, 0, 1, 1], [], []>} : vector<8x256xf32>, vector<256x256xf32>, vector<8x256xf32> -> vector<8x256xf32>
    %c0_46 = arith.constant 0 : index
    %c0_47 = arith.constant 0 : index
    %72 = vector.load %arg15[%c0_46, %c0_47] : memref<1x256xf32, #tpu.memory_space<vmem>>, vector<1x256xf32>
    %73 = vector.broadcast %72 : vector<1x256xf32> to vector<8x256xf32>
    %74 = arith.addf %71, %73 : vector<8x256xf32>
    %75 = arith.negf %74 : vector<8x256xf32>
    %76 = math.exp %75 : vector<8x256xf32>
    %cst_48 = arith.constant 1.000000e+00 : f32
    %77 = vector.broadcast %cst_48 : f32 to vector<8x256xf32>
    %78 = arith.addf %77, %76 : vector<8x256xf32>
    %79 = arith.divf %77, %78 : vector<8x256xf32>
    %cst_49 = arith.constant 1.000000e+00 : f32
    %80 = vector.broadcast %cst_49 : f32 to vector<8x256xf32>
    %81 = arith.addf %80, %79 : vector<8x256xf32>
    %82 = arith.mulf %40, %81 : vector<8x256xf32>
    %cst_50 = arith.constant 1.000000e+00 : f32
    %83 = vector.broadcast %cst_50 : f32 to vector<8x256xf32>
    %84 = arith.addf %83, %69 : vector<8x256xf32>
    %85 = arith.mulf %21, %84 : vector<8x256xf32>
    %c0_51 = arith.constant 0 : index
    %c0_52 = arith.constant 0 : index
    %86 = vector.load %arg16[%c0_51, %c0_52] : memref<512x256xf32, #tpu.memory_space<vmem>>, vector<256x256xf32>
    %cst_53 = arith.constant dense<0.000000e+00> : vector<8x256xf32>
    %87 = tpu.matmul %82, %86, %cst_53 {dimension_numbers = #tpu.dot_dimension_numbers<[1], [0], [0], [1], [0, 0, 1, 1], [], []>} : vector<8x256xf32>, vector<256x256xf32>, vector<8x256xf32> -> vector<8x256xf32>
    %c256 = arith.constant 256 : index
    %c0_54 = arith.constant 0 : index
    %88 = vector.load %arg16[%c256, %c0_54] : memref<512x256xf32, #tpu.memory_space<vmem>>, vector<256x256xf32>
    %cst_55 = arith.constant dense<0.000000e+00> : vector<8x256xf32>
    %89 = tpu.matmul %85, %88, %cst_55 {dimension_numbers = #tpu.dot_dimension_numbers<[1], [0], [0], [1], [0, 0, 1, 1], [], []>} : vector<8x256xf32>, vector<256x256xf32>, vector<8x256xf32> -> vector<8x256xf32>
    %90 = arith.addf %87, %89 : vector<8x256xf32>
    %c0_56 = arith.constant 0 : index
    %c0_57 = arith.constant 0 : index
    %91 = vector.load %arg17[%c0_56, %c0_57] : memref<1x256xf32, #tpu.memory_space<vmem>>, vector<1x256xf32>
    %92 = vector.broadcast %91 : vector<1x256xf32> to vector<8x256xf32>
    %93 = arith.addf %90, %92 : vector<8x256xf32>
    %cst_58 = arith.constant 0.000000e+00 : f32
    %94 = vector.broadcast %cst_58 : f32 to vector<8x256xf32>
    %95 = arith.maximumf %93, %94 : vector<8x256xf32>
    %c0_59 = arith.constant 0 : index
    %c0_60 = arith.constant 0 : index
    %96 = vector.load %arg12[%c0_59, %c0_60] : memref<256x256xf32, #tpu.memory_space<vmem>>, vector<256x256xf32>
    %cst_61 = arith.constant dense<0.000000e+00> : vector<8x256xf32>
    %97 = tpu.matmul %59, %96, %cst_61 {dimension_numbers = #tpu.dot_dimension_numbers<[1], [0], [0], [1], [0, 0, 1, 1], [], []>} : vector<8x256xf32>, vector<256x256xf32>, vector<8x256xf32> -> vector<8x256xf32>
    %c0_62 = arith.constant 0 : index
    %c0_63 = arith.constant 0 : index
    %98 = vector.load %arg13[%c0_62, %c0_63] : memref<1x256xf32, #tpu.memory_space<vmem>>, vector<1x256xf32>
    %99 = vector.broadcast %98 : vector<1x256xf32> to vector<8x256xf32>
    %100 = arith.addf %97, %99 : vector<8x256xf32>
    %101 = arith.negf %100 : vector<8x256xf32>
    %102 = math.exp %101 : vector<8x256xf32>
    %cst_64 = arith.constant 1.000000e+00 : f32
    %103 = vector.broadcast %cst_64 : f32 to vector<8x256xf32>
    %104 = arith.addf %103, %102 : vector<8x256xf32>
    %105 = arith.divf %103, %104 : vector<8x256xf32>
    %c0_65 = arith.constant 0 : index
    %c0_66 = arith.constant 0 : index
    %106 = vector.load %arg14[%c0_65, %c0_66] : memref<256x256xf32, #tpu.memory_space<vmem>>, vector<256x256xf32>
    %cst_67 = arith.constant dense<0.000000e+00> : vector<8x256xf32>
    %107 = tpu.matmul %21, %106, %cst_67 {dimension_numbers = #tpu.dot_dimension_numbers<[1], [0], [0], [1], [0, 0, 1, 1], [], []>} : vector<8x256xf32>, vector<256x256xf32>, vector<8x256xf32> -> vector<8x256xf32>
    %c0_68 = arith.constant 0 : index
    %c0_69 = arith.constant 0 : index
    %108 = vector.load %arg15[%c0_68, %c0_69] : memref<1x256xf32, #tpu.memory_space<vmem>>, vector<1x256xf32>
    %109 = vector.broadcast %108 : vector<1x256xf32> to vector<8x256xf32>
    %110 = arith.addf %107, %109 : vector<8x256xf32>
    %111 = arith.negf %110 : vector<8x256xf32>
    %112 = math.exp %111 : vector<8x256xf32>
    %cst_70 = arith.constant 1.000000e+00 : f32
    %113 = vector.broadcast %cst_70 : f32 to vector<8x256xf32>
    %114 = arith.addf %113, %112 : vector<8x256xf32>
    %115 = arith.divf %113, %114 : vector<8x256xf32>
    %cst_71 = arith.constant 1.000000e+00 : f32
    %116 = vector.broadcast %cst_71 : f32 to vector<8x256xf32>
    %117 = arith.addf %116, %115 : vector<8x256xf32>
    %118 = arith.mulf %59, %117 : vector<8x256xf32>
    %cst_72 = arith.constant 1.000000e+00 : f32
    %119 = vector.broadcast %cst_72 : f32 to vector<8x256xf32>
    %120 = arith.addf %119, %105 : vector<8x256xf32>
    %121 = arith.mulf %21, %120 : vector<8x256xf32>
    %c0_73 = arith.constant 0 : index
    %c0_74 = arith.constant 0 : index
    %122 = vector.load %arg16[%c0_73, %c0_74] : memref<512x256xf32, #tpu.memory_space<vmem>>, vector<256x256xf32>
    %cst_75 = arith.constant dense<0.000000e+00> : vector<8x256xf32>
    %123 = tpu.matmul %118, %122, %cst_75 {dimension_numbers = #tpu.dot_dimension_numbers<[1], [0], [0], [1], [0, 0, 1, 1], [], []>} : vector<8x256xf32>, vector<256x256xf32>, vector<8x256xf32> -> vector<8x256xf32>
    %c256_76 = arith.constant 256 : index
    %c0_77 = arith.constant 0 : index
    %124 = vector.load %arg16[%c256_76, %c0_77] : memref<512x256xf32, #tpu.memory_space<vmem>>, vector<256x256xf32>
    %cst_78 = arith.constant dense<0.000000e+00> : vector<8x256xf32>
    %125 = tpu.matmul %121, %124, %cst_78 {dimension_numbers = #tpu.dot_dimension_numbers<[1], [0], [0], [1], [0, 0, 1, 1], [], []>} : vector<8x256xf32>, vector<256x256xf32>, vector<8x256xf32> -> vector<8x256xf32>
    %126 = arith.addf %123, %125 : vector<8x256xf32>
    %c0_79 = arith.constant 0 : index
    %c0_80 = arith.constant 0 : index
    %127 = vector.load %arg17[%c0_79, %c0_80] : memref<1x256xf32, #tpu.memory_space<vmem>>, vector<1x256xf32>
    %128 = vector.broadcast %127 : vector<1x256xf32> to vector<8x256xf32>
    %129 = arith.addf %126, %128 : vector<8x256xf32>
    %cst_81 = arith.constant 0.000000e+00 : f32
    %130 = vector.broadcast %cst_81 : f32 to vector<8x256xf32>
    %131 = arith.maximumf %129, %130 : vector<8x256xf32>
    %c0_82 = arith.constant 0 : index
    %c0_83 = arith.constant 0 : index
    %132 = vector.load %arg18[%c0_82, %c0_83] : memref<256x256xf32, #tpu.memory_space<vmem>>, vector<256x256xf32>
    %cst_84 = arith.constant dense<0.000000e+00> : vector<8x256xf32>
    %133 = tpu.matmul %59, %132, %cst_84 {dimension_numbers = #tpu.dot_dimension_numbers<[1], [0], [0], [1], [0, 0, 1, 1], [], []>} : vector<8x256xf32>, vector<256x256xf32>, vector<8x256xf32> -> vector<8x256xf32>
    %c0_85 = arith.constant 0 : index
    %c0_86 = arith.constant 0 : index
    %134 = vector.load %arg19[%c0_85, %c0_86] : memref<1x256xf32, #tpu.memory_space<vmem>>, vector<1x256xf32>
    %135 = vector.broadcast %134 : vector<1x256xf32> to vector<8x256xf32>
    %136 = arith.addf %133, %135 : vector<8x256xf32>
    %137 = arith.negf %136 : vector<8x256xf32>
    %138 = math.exp %137 : vector<8x256xf32>
    %cst_87 = arith.constant 1.000000e+00 : f32
    %139 = vector.broadcast %cst_87 : f32 to vector<8x256xf32>
    %140 = arith.addf %139, %138 : vector<8x256xf32>
    %141 = arith.divf %139, %140 : vector<8x256xf32>
    %c0_88 = arith.constant 0 : index
    %c0_89 = arith.constant 0 : index
    %142 = vector.load %arg20[%c0_88, %c0_89] : memref<256x256xf32, #tpu.memory_space<vmem>>, vector<256x256xf32>
    %cst_90 = arith.constant dense<0.000000e+00> : vector<8x256xf32>
    %143 = tpu.matmul %40, %142, %cst_90 {dimension_numbers = #tpu.dot_dimension_numbers<[1], [0], [0], [1], [0, 0, 1, 1], [], []>} : vector<8x256xf32>, vector<256x256xf32>, vector<8x256xf32> -> vector<8x256xf32>
    %c0_91 = arith.constant 0 : index
    %c0_92 = arith.constant 0 : index
    %144 = vector.load %arg21[%c0_91, %c0_92] : memref<1x256xf32, #tpu.memory_space<vmem>>, vector<1x256xf32>
    %145 = vector.broadcast %144 : vector<1x256xf32> to vector<8x256xf32>
    %146 = arith.addf %143, %145 : vector<8x256xf32>
    %147 = arith.negf %146 : vector<8x256xf32>
    %148 = math.exp %147 : vector<8x256xf32>
    %cst_93 = arith.constant 1.000000e+00 : f32
    %149 = vector.broadcast %cst_93 : f32 to vector<8x256xf32>
    %150 = arith.addf %149, %148 : vector<8x256xf32>
    %151 = arith.divf %149, %150 : vector<8x256xf32>
    %cst_94 = arith.constant 1.000000e+00 : f32
    %152 = vector.broadcast %cst_94 : f32 to vector<8x256xf32>
    %153 = arith.addf %152, %151 : vector<8x256xf32>
    %154 = arith.mulf %59, %153 : vector<8x256xf32>
    %cst_95 = arith.constant 1.000000e+00 : f32
    %155 = vector.broadcast %cst_95 : f32 to vector<8x256xf32>
    %156 = arith.addf %155, %141 : vector<8x256xf32>
    %157 = arith.mulf %40, %156 : vector<8x256xf32>
    %c0_96 = arith.constant 0 : index
    %c0_97 = arith.constant 0 : index
    %158 = vector.load %arg22[%c0_96, %c0_97] : memref<512x256xf32, #tpu.memory_space<vmem>>, vector<256x256xf32>
    %cst_98 = arith.constant dense<0.000000e+00> : vector<8x256xf32>
    %159 = tpu.matmul %154, %158, %cst_98 {dimension_numbers = #tpu.dot_dimension_numbers<[1], [0], [0], [1], [0, 0, 1, 1], [], []>} : vector<8x256xf32>, vector<256x256xf32>, vector<8x256xf32> -> vector<8x256xf32>
    %c256_99 = arith.constant 256 : index
    %c0_100 = arith.constant 0 : index
    %160 = vector.load %arg22[%c256_99, %c0_100] : memref<512x256xf32, #tpu.memory_space<vmem>>, vector<256x256xf32>
    %cst_101 = arith.constant dense<0.000000e+00> : vector<8x256xf32>
    %161 = tpu.matmul %157, %160, %cst_101 {dimension_numbers = #tpu.dot_dimension_numbers<[1], [0], [0], [1], [0, 0, 1, 1], [], []>} : vector<8x256xf32>, vector<256x256xf32>, vector<8x256xf32> -> vector<8x256xf32>
    %162 = arith.addf %159, %161 : vector<8x256xf32>
    %c0_102 = arith.constant 0 : index
    %c0_103 = arith.constant 0 : index
    %163 = vector.load %arg23[%c0_102, %c0_103] : memref<1x256xf32, #tpu.memory_space<vmem>>, vector<1x256xf32>
    %164 = vector.broadcast %163 : vector<1x256xf32> to vector<8x256xf32>
    %165 = arith.addf %162, %164 : vector<8x256xf32>
    %cst_104 = arith.constant 0.000000e+00 : f32
    %166 = vector.broadcast %cst_104 : f32 to vector<8x256xf32>
    %167 = arith.maximumf %165, %166 : vector<8x256xf32>
    %c0_105 = arith.constant 0 : index
    %c0_106 = arith.constant 0 : index
    %168 = vector.load %arg24[%c0_105, %c0_106] : memref<768x1xf32, #tpu.memory_space<vmem>>, vector<256x1xf32>
    %cst_107 = arith.constant dense<0.000000e+00> : vector<8x1xf32>
    %169 = tpu.matmul %95, %168, %cst_107 {dimension_numbers = #tpu.dot_dimension_numbers<[1], [0], [0], [1], [0, 0, 1, 1], [], []>} : vector<8x256xf32>, vector<256x1xf32>, vector<8x1xf32> -> vector<8x1xf32>
    %c256_108 = arith.constant 256 : index
    %c0_109 = arith.constant 0 : index
    %170 = vector.load %arg24[%c256_108, %c0_109] : memref<768x1xf32, #tpu.memory_space<vmem>>, vector<256x1xf32>
    %cst_110 = arith.constant dense<0.000000e+00> : vector<8x1xf32>
    %171 = tpu.matmul %131, %170, %cst_110 {dimension_numbers = #tpu.dot_dimension_numbers<[1], [0], [0], [1], [0, 0, 1, 1], [], []>} : vector<8x256xf32>, vector<256x1xf32>, vector<8x1xf32> -> vector<8x1xf32>
    %172 = arith.addf %169, %171 : vector<8x1xf32>
    %c512 = arith.constant 512 : index
    %c0_111 = arith.constant 0 : index
    %173 = vector.load %arg24[%c512, %c0_111] : memref<768x1xf32, #tpu.memory_space<vmem>>, vector<256x1xf32>
    %cst_112 = arith.constant dense<0.000000e+00> : vector<8x1xf32>
    %174 = tpu.matmul %167, %173, %cst_112 {dimension_numbers = #tpu.dot_dimension_numbers<[1], [0], [0], [1], [0, 0, 1, 1], [], []>} : vector<8x256xf32>, vector<256x1xf32>, vector<8x1xf32> -> vector<8x1xf32>
    %175 = arith.addf %172, %174 : vector<8x1xf32>
    %c0_113 = arith.constant 0 : index
    %c0_114 = arith.constant 0 : index
    %176 = vector.load %arg25[%c0_113, %c0_114] : memref<1x1xf32, #tpu.memory_space<vmem>>, vector<1x1xf32>
    %177 = vector.broadcast %176 : vector<1x1xf32> to vector<8x1xf32>
    %178 = arith.addf %175, %177 : vector<8x1xf32>
    %179 = arith.negf %178 : vector<8x1xf32>
    %180 = math.exp %179 : vector<8x1xf32>
    %cst_115 = arith.constant 1.000000e+00 : f32
    %181 = vector.broadcast %cst_115 : f32 to vector<8x1xf32>
    %182 = arith.addf %181, %180 : vector<8x1xf32>
    %183 = arith.divf %181, %182 : vector<8x1xf32>
    %c0_116 = arith.constant 0 : index
    %c0_117 = arith.constant 0 : index
    %184 = vector.load %arg26[%c0_116, %c0_117] : memref<8x1xf32, #tpu.memory_space<vmem>>, vector<8x1xf32>
    tpu.vector_store %arg26[%c0_116, %c0_117], %183 {strides = array<i32>} : memref<8x1xf32, #tpu.memory_space<vmem>>, vector<8x1xf32>,
    return
  }
  func.func @transform_0(%arg0: i32) -> (i32, i32) {
    %c0_i32 = arith.constant 0 : i32
    %c0_i32_0 = arith.constant 0 : i32
    return %arg0, %c0_i32 : i32, i32
  }
  func.func @transform_1(%arg0: i32) -> (i32, i32) {
    %c0_i32 = arith.constant 0 : i32
    %c0_i32_0 = arith.constant 0 : i32
    return %arg0, %c0_i32 : i32, i32
  }
  func.func @transform_2(%arg0: i32) -> (i32, i32) {
    %c0_i32 = arith.constant 0 : i32
    %c0_i32_0 = arith.constant 0 : i32
    return %arg0, %c0_i32 : i32, i32
  }
  func.func @transform_3(%arg0: i32) -> (i32, i32) {
    %c0_i32 = arith.constant 0 : i32
    %c0_i32_0 = arith.constant 0 : i32
    %c0_i32_1 = arith.constant 0 : i32
    return %c0_i32, %c0_i32_0 : i32, i32
  }
  func.func @transform_4(%arg0: i32) -> (i32, i32) {
    %c0_i32 = arith.constant 0 : i32
    %c0_i32_0 = arith.constant 0 : i32
    %c0_i32_1 = arith.constant 0 : i32
    return %c0_i32, %c0_i32_0 : i32, i32
  }
  func.func @transform_5(%arg0: i32) -> (i32, i32) {
    %c0_i32 = arith.constant 0 : i32
    %c0_i32_0 = arith.constant 0 : i32
    %c0_i32_1 = arith.constant 0 : i32
    return %c0_i32, %c0_i32_0 : i32, i32
  }
  func.func @transform_6(%arg0: i32) -> (i32, i32) {
    %c0_i32 = arith.constant 0 : i32
    %c0_i32_0 = arith.constant 0 : i32
    %c0_i32_1 = arith.constant 0 : i32
    return %c0_i32, %c0_i32_0 : i32, i32
  }
  func.func @transform_7(%arg0: i32) -> (i32, i32) {
    %c0_i32 = arith.constant 0 : i32
    %c0_i32_0 = arith.constant 0 : i32
    %c0_i32_1 = arith.constant 0 : i32
    return %c0_i32, %c0_i32_0 : i32, i32
  }
  func.func @transform_8(%arg0: i32) -> (i32, i32) {
    %c0_i32 = arith.constant 0 : i32
    %c0_i32_0 = arith.constant 0 : i32
    %c0_i32_1 = arith.constant 0 : i32
    return %c0_i32, %c0_i32_0 : i32, i32
  }
  func.func @transform_9(%arg0: i32) -> (i32, i32) {
    %c0_i32 = arith.constant 0 : i32
    %c0_i32_0 = arith.constant 0 : i32
    %c0_i32_1 = arith.constant 0 : i32
    return %c0_i32, %c0_i32_0 : i32, i32
  }
  func.func @transform_10(%arg0: i32) -> (i32, i32) {
    %c0_i32 = arith.constant 0 : i32
    %c0_i32_0 = arith.constant 0 : i32
    %c0_i32_1 = arith.constant 0 : i32
    return %c0_i32, %c0_i32_0 : i32, i32
  }
  func.func @transform_11(%arg0: i32) -> (i32, i32) {
    %c0_i32 = arith.constant 0 : i32
    %c0_i32_0 = arith.constant 0 : i32
    %c0_i32_1 = arith.constant 0 : i32
    return %c0_i32, %c0_i32_0 : i32, i32
  }
  func.func @transform_12(%arg0: i32) -> (i32, i32) {
    %c0_i32 = arith.constant 0 : i32
    %c0_i32_0 = arith.constant 0 : i32
    %c0_i32_1 = arith.constant 0 : i32
    return %c0_i32, %c0_i32_0 : i32, i32
  }
  func.func @transform_13(%arg0: i32) -> (i32, i32) {
    %c0_i32 = arith.constant 0 : i32
    %c0_i32_0 = arith.constant 0 : i32
    %c0_i32_1 = arith.constant 0 : i32
    return %c0_i32, %c0_i32_0 : i32, i32
  }
  func.func @transform_14(%arg0: i32) -> (i32, i32) {
    %c0_i32 = arith.constant 0 : i32
    %c0_i32_0 = arith.constant 0 : i32
    %c0_i32_1 = arith.constant 0 : i32
    return %c0_i32, %c0_i32_0 : i32, i32
  }
  func.func @transform_15(%arg0: i32) -> (i32, i32) {
    %c0_i32 = arith.constant 0 : i32
    %c0_i32_0 = arith.constant 0 : i32
    %c0_i32_1 = arith.constant 0 : i32
    return %c0_i32, %c0_i32_0 : i32, i32
  }
  func.func @transform_16(%arg0: i32) -> (i32, i32) {
    %c0_i32 = arith.constant 0 : i32
    %c0_i32_0 = arith.constant 0 : i32
    %c0_i32_1 = arith.constant 0 : i32
    return %c0_i32, %c0_i32_0 : i32, i32
  }
  func.func @transform_17(%arg0: i32) -> (i32, i32) {
    %c0_i32 = arith.constant 0 : i32
    %c0_i32_0 = arith.constant 0 : i32
    %c0_i32_1 = arith.constant 0 : i32
    return %c0_i32, %c0_i32_0 : i32, i32
  }
  func.func @transform_18(%arg0: i32) -> (i32, i32) {
    %c0_i32 = arith.constant 0 : i32
    %c0_i32_0 = arith.constant 0 : i32
    %c0_i32_1 = arith.constant 0 : i32
    return %c0_i32, %c0_i32_0 : i32, i32
  }
  func.func @transform_19(%arg0: i32) -> (i32, i32) {
    %c0_i32 = arith.constant 0 : i32
    %c0_i32_0 = arith.constant 0 : i32
    %c0_i32_1 = arith.constant 0 : i32
    return %c0_i32, %c0_i32_0 : i32, i32
  }
  func.func @transform_20(%arg0: i32) -> (i32, i32) {
    %c0_i32 = arith.constant 0 : i32
    %c0_i32_0 = arith.constant 0 : i32
    %c0_i32_1 = arith.constant 0 : i32
    return %c0_i32, %c0_i32_0 : i32, i32
  }
  func.func @transform_21(%arg0: i32) -> (i32, i32) {
    %c0_i32 = arith.constant 0 : i32
    %c0_i32_0 = arith.constant 0 : i32
    %c0_i32_1 = arith.constant 0 : i32
    return %c0_i32, %c0_i32_0 : i32, i32
  }
  func.func @transform_22(%arg0: i32) -> (i32, i32) {
    %c0_i32 = arith.constant 0 : i32
    %c0_i32_0 = arith.constant 0 : i32
    %c0_i32_1 = arith.constant 0 : i32
    return %c0_i32, %c0_i32_0 : i32, i32
  }
  func.func @transform_23(%arg0: i32) -> (i32, i32) {
    %c0_i32 = arith.constant 0 : i32
    %c0_i32_0 = arith.constant 0 : i32
    %c0_i32_1 = arith.constant 0 : i32
    return %c0_i32, %c0_i32_0 : i32, i32
  }
  func.func @transform_24(%arg0: i32) -> (i32, i32) {
    %c0_i32 = arith.constant 0 : i32
    %c0_i32_0 = arith.constant 0 : i32
    %c0_i32_1 = arith.constant 0 : i32
    return %c0_i32, %c0_i32_0 : i32, i32
  }
  func.func @transform_25(%arg0: i32) -> (i32, i32) {
    %c0_i32 = arith.constant 0 : i32
    %c0_i32_0 = arith.constant 0 : i32
    return %arg0, %c0_i32 : i32, i32
  }
}

</mosaic_0001>

<llo_original>
// kernel: tpu_custom_call.1
$region0: #{tpu_custom_call.1}
  #allocation0 [shape = 'u32[]', space=smem, size = 0x4, offset = 0x4, fixed_abs, tag = 'smem constant byte address 0x4 - core index']
  #allocation1 [shape = 'u32[144,128]{1,0:T(1,128)}', space=vmem, size = 0x12000, scoped, tag = 'internal scratch']
  #allocation2 [shape = 'f32[1,1]{1,0:T(1,128)S(1)}', space=vmem, size = 0x200, scoped, tag = 'scoped memory for tpu_custom_call.1']
  %s0 = inlined_call_operand.hbm [shape: f32[8,768], index: 0, kind: input, shape index: {}]
  %s1 = inlined_call_operand.hbm [shape: f32[8,768], index: 1, kind: input, shape index: {}]
  %s2 = inlined_call_operand.hbm [shape: f32[8,128], index: 2, kind: input, shape index: {}]
  %s3 = inlined_call_operand.hbm [shape: f32[128,512], index: 3, kind: input, shape index: {}]
  %s4 = inlined_call_operand.hbm [shape: f32[1,512], index: 4, kind: input, shape index: {}]
  %s5 = inlined_call_operand.hbm [shape: f32[256,256], index: 5, kind: input, shape index: {}]
  %s6 = inlined_call_operand.hbm [shape: f32[1,256], index: 6, kind: input, shape index: {}]
  %s7 = inlined_call_operand.hbm [shape: f32[768,512], index: 7, kind: input, shape index: {}]
  %s8 = inlined_call_operand.hbm [shape: f32[1,512], index: 8, kind: input, shape index: {}]
  %s9 = inlined_call_operand.hbm [shape: f32[256,256], index: 9, kind: input, shape index: {}]
  %s10 = inlined_call_operand.hbm [shape: f32[1,256], index: 10, kind: input, shape index: {}]
  %s11 = inlined_call_operand.hbm [shape: f32[256,256], index: 11, kind: input, shape index: {}]
  %s12 = inlined_call_operand.hbm [shape: f32[1,256], index: 12, kind: input, shape index: {}]
  %s13 = inlined_call_operand.hbm [shape: f32[256,256], index: 13, kind: input, shape index: {}]
  %s14 = inlined_call_operand.hbm [shape: f32[1,256], index: 14, kind: input, shape index: {}]
  %s15 = inlined_call_operand.hbm [shape: f32[512,256], index: 15, kind: input, shape index: {}]
  %s16 = inlined_call_operand.hbm [shape: f32[1,256], index: 16, kind: input, shape index: {}]
  %s17 = inlined_call_operand.hbm [shape: f32[256,256], index: 17, kind: input, shape index: {}]
  %s18 = inlined_call_operand.hbm [shape: f32[1,256], index: 18, kind: input, shape index: {}]
  %s19 = inlined_call_operand.hbm [shape: f32[256,256], index: 19, kind: input, shape index: {}]
  %s20 = inlined_call_operand.hbm [shape: f32[1,256], index: 20, kind: input, shape index: {}]
  %s21 = inlined_call_operand.hbm [shape: f32[512,256], index: 21, kind: input, shape index: {}]
  %s22 = inlined_call_operand.hbm [shape: f32[1,256], index: 22, kind: input, shape index: {}]
  %s23 = inlined_call_operand.vmem [shape: f32[768,1], index: 23, kind: input, shape index: {}]
  %s24 = inlined_call_operand.<no memory space> [shape: f32[1,1], index: 24, kind: input, shape index: {}]
  %s25 = inlined_call_operand.vmem [shape: f32[8,1], index: 25, kind: output, shape index: {}]
  %s26 = sld [smem:[#allocation0]]
  $region202: #{tpu_custom_call.1} parent=0
    _
  %s28 = ssub.s32 1, %s26
  %s29 = scalar_select 0, %s28, %s26
  %v30 = vstv %s24
  %31 = vst [vmem:[#allocation2] sm:$0x1] %v30
  $region1: #{tpu_custom_call.1} parent=0
    #allocation3 [shape = 'u8[24576]{0}', space=vmem, size = 0x6000, scoped, tag = 'input window, operand 0, single buffered']
    #allocation4 [shape = 's32[1]{0}', space=sflag, size = 0x4, scoped, tag = 'scoped memory for tpu_custom_call.1']
    #allocation5 [shape = 'u8[24576]{0}', space=vmem, size = 0x6000, scoped, tag = 'input window, operand 1, single buffered']
    #allocation6 [shape = 's32[1]{0}', space=sflag, size = 0x4, scoped, tag = 'scoped memory for tpu_custom_call.1']
    #allocation7 [shape = 'u8[4096]{0}', space=vmem, size = 0x1000, scoped, tag = 'input window, operand 2, single buffered']
    #allocation8 [shape = 'u8[262144]{0}', space=vmem, size = 0x40000, scoped, tag = 'input window, operand 3, single buffered']
    #allocation9 [shape = 's32[1]{0}', space=sflag, size = 0x4, scoped, tag = 'scoped memory for tpu_custom_call.1']
    #allocation10 [shape = 'u8[2048]{0}', space=vmem, size = 0x800, scoped, tag = 'input window, operand 4, single buffered']
    #allocation11 [shape = 'u8[262144]{0}', space=vmem, size = 0x40000, scoped, tag = 'input window, operand 5, single buffered']
    #allocation12 [shape = 's32[1]{0}', space=sflag, size = 0x4, scoped, tag = 'scoped memory for tpu_custom_call.1']
    #allocation13 [shape = 'u8[1024]{0}', space=vmem, size = 0x400, scoped, tag = 'input window, operand 6, single buffered']
    #allocation14 [shape = 'u8[1572864]{0}', space=vmem, size = 0x180000, scoped, tag = 'input window, operand 7, single buffered']
    #allocation15 [shape = 's32[1]{0}', space=sflag, size = 0x4, scoped, tag = 'scoped memory for tpu_custom_call.1']
    #allocation16 [shape = 'u8[2048]{0}', space=vmem, size = 0x800, scoped, tag = 'input window, operand 8, single buffered']
    #allocation17 [shape = 'u8[262144]{0}', space=vmem, size = 0x40000, scoped, tag = 'input window, operand 9, single buffered']
    #allocation18 [shape = 's32[1]{0}', space=sflag, size = 0x4, scoped, tag = 'scoped memory for tpu_custom_call.1']
    #allocation19 [shape = 'u8[1024]{0}', space=vmem, size = 0x400, scoped, tag = 'input window, operand 10, single buffered']
    #allocation20 [shape = 'u8[262144]{0}', space=vmem, size = 0x40000, scoped, tag = 'input window, operand 11, single buffered']
    #allocation21 [shape = 's32[1]{0}', space=sflag, size = 0x4, scoped, tag = 'scoped memory for tpu_custom_call.1']
    #allocation22 [shape = 'u8[1024]{0}', space=vmem, size = 0x400, scoped, tag = 'input window, operand 12, single buffered']
    #allocation23 [shape = 'u8[262144]{0}', space=vmem, size = 0x40000, scoped, tag = 'input window, operand 13, single buffered']
    #allocation24 [shape = 's32[1]{0}', space=sflag, size = 0x4, scoped, tag = 'scoped memory for tpu_custom_call.1']
    #allocation25 [shape = 'u8[1024]{0}', space=vmem, size = 0x400, scoped, tag = 'input window, operand 14, single buffered']
    #allocation26 [shape = 'u8[524288]{0}', space=vmem, size = 0x80000, scoped, tag = 'input window, operand 15, single buffered']
    #allocation27 [shape = 's32[1]{0}', space=sflag, size = 0x4, scoped, tag = 'scoped memory for tpu_custom_call.1']
    #allocation28 [shape = 'u8[1024]{0}', space=vmem, size = 0x400, scoped, tag = 'input window, operand 16, single buffered']
    #allocation29 [shape = 'u8[262144]{0}', space=vmem, size = 0x40000, scoped, tag = 'input window, operand 17, single buffered']
    #allocation30 [shape = 's32[1]{0}', space=sflag, size = 0x4, scoped, tag = 'scoped memory for tpu_custom_call.1']
    #allocation31 [shape = 'u8[1024]{0}', space=vmem, size = 0x400, scoped, tag = 'input window, operand 18, single buffered']
    #allocation32 [shape = 'u8[262144]{0}', space=vmem, size = 0x40000, scoped, tag = 'input window, operand 19, single buffered']
    #allocation33 [shape = 's32[1]{0}', space=sflag, size = 0x4, scoped, tag = 'scoped memory for tpu_custom_call.1']
    #allocation34 [shape = 'u8[1024]{0}', space=vmem, size = 0x400, scoped, tag = 'input window, operand 20, single buffered']
    #allocation35 [shape = 'u8[524288]{0}', space=vmem, size = 0x80000, scoped, tag = 'input window, operand 21, single buffered']
    #allocation36 [shape = 's32[1]{0}', space=sflag, size = 0x4, scoped, tag = 'scoped memory for tpu_custom_call.1']
    #allocation37 [shape = 'u8[1024]{0}', space=vmem, size = 0x400, scoped, tag = 'input window, operand 22, single buffered']
    %32 = vsyncpa [#allocation4], 0
    %33 = vsyncpa [#allocation6], 0
    %34 = vsyncpa [#allocation9], 0
    %35 = vsyncpa [#allocation12], 0
    %36 = vsyncpa [#allocation15], 0
    %37 = vsyncpa [#allocation18], 0
    %38 = vsyncpa [#allocation21], 0
    %39 = vsyncpa [#allocation24], 0
    %40 = vsyncpa [#allocation27], 0
    %41 = vsyncpa [#allocation30], 0
    %42 = vsyncpa [#allocation33], 0
    %43 = vsyncpa [#allocation36], 0
    // Predicated region
    $region2: #{tpu_custom_call.1} parent=1 // pred_check
      _
    $region3: #{tpu_custom_call.1} parent=1 // pred_check_branch
      %45 = sbr.rel (0) target = $region5
    $region4: #{tpu_custom_call.1} parent=1 // pred_region
      %s47 = ssub.s32 768, 768
      %48 = vsyncadd [#allocation4], %s47
      %s50 = sshll.u32 [#allocation3], 4
      %s51 = int_to_ptr.vmem [resolvable:$true] %s50
      %53 = dma.hbm_to_vmem [thread:$0]  %s0, 768, %s51, [#allocation4]
    $region5: #{tpu_custom_call.1} parent=1 // pred_fallthru
      _
    // Predicated region
    $region6: #{tpu_custom_call.1} parent=1 // pred_check
      _
    $region7: #{tpu_custom_call.1} parent=1 // pred_check_branch
      %55 = sbr.rel (0) target = $region9
    $region8: #{tpu_custom_call.1} parent=1 // pred_region
      %s57 = ssub.s32 768, 768
      %58 = vsyncadd [#allocation6], %s57
      %s60 = sshll.u32 [#allocation5], 4
      %s61 = int_to_ptr.vmem [resolvable:$true] %s60
      %63 = dma.hbm_to_vmem [thread:$0]  %s1, 768, %s61, [#allocation6]
    $region9: #{tpu_custom_call.1} parent=1 // pred_fallthru
      _
    // Predicated region
    $region10: #{tpu_custom_call.1} parent=1 // pred_check
      _
    $region11: #{tpu_custom_call.1} parent=1 // pred_check_branch
      %65 = sbr.rel (0) target = $region13
    $region12: #{tpu_custom_call.1} parent=1 // pred_region
      %s67 = ssub.s32 128, 128
      %68 = vsyncadd [#allocation6], %s67
      %s70 = sshll.u32 [#allocation7], 4
      %s71 = int_to_ptr.vmem [resolvable:$true] %s70
      %73 = dma.hbm_to_vmem [thread:$0]  %s2, 128, %s71, [#allocation6]
    $region13: #{tpu_custom_call.1} parent=1 // pred_fallthru
      _
    // Predicated region
    $region14: #{tpu_custom_call.1} parent=1 // pred_check
      _
    $region15: #{tpu_custom_call.1} parent=1 // pred_check_branch
      %75 = sbr.rel (0) target = $region17
    $region16: #{tpu_custom_call.1} parent=1 // pred_region
      %s77 = ssub.s32 8192, 8192
      %78 = vsyncadd [#allocation9], %s77
      %s79 = sshll.u32 [#allocation8], 4
      %s80 = int_to_ptr.vmem [resolvable:$true] %s79
      %85 = dma.hbm_to_vmem [thread:$0]  %s3, 8192, %s80, [#allocation9], 512, 512, 32
    $region17: #{tpu_custom_call.1} parent=1 // pred_fallthru
      _
    // Predicated region
    $region18: #{tpu_custom_call.1} parent=1 // pred_check
      _
    $region19: #{tpu_custom_call.1} parent=1 // pred_check_branch
      %87 = sbr.rel (0) target = $region21
    $region20: #{tpu_custom_call.1} parent=1 // pred_region
      %s89 = ssub.s32 64, 64
      %90 = vsyncadd [#allocation9], %s89
      %s92 = sshll.u32 [#allocation10], 4
      %s93 = int_to_ptr.vmem [resolvable:$true] %s92
      %95 = dma.hbm_to_vmem [thread:$0]  %s4, 64, %s93, [#allocation9]
    $region21: #{tpu_custom_call.1} parent=1 // pred_fallthru
      _
    // Predicated region
    $region22: #{tpu_custom_call.1} parent=1 // pred_check
      _
    $region23: #{tpu_custom_call.1} parent=1 // pred_check_branch
      %97 = sbr.rel (0) target = $region25
    $region24: #{tpu_custom_call.1} parent=1 // pred_region
      %s99 = ssub.s32 8192, 8192
      %100 = vsyncadd [#allocation12], %s99
      %s101 = sshll.u32 [#allocation11], 4
      %s102 = int_to_ptr.vmem [resolvable:$true] %s101
      %107 = dma.hbm_to_vmem [thread:$0]  %s5, 8192, %s102, [#allocation12], 256, 256, 16
    $region25: #{tpu_custom_call.1} parent=1 // pred_fallthru
      _
    // Predicated region
    $region26: #{tpu_custom_call.1} parent=1 // pred_check
      _
    $region27: #{tpu_custom_call.1} parent=1 // pred_check_branch
      %109 = sbr.rel (0) target = $region29
    $region28: #{tpu_custom_call.1} parent=1 // pred_region
      %s111 = ssub.s32 32, 32
      %112 = vsyncadd [#allocation12], %s111
      %s114 = sshll.u32 [#allocation13], 4
      %s115 = int_to_ptr.vmem [resolvable:$true] %s114
      %117 = dma.hbm_to_vmem [thread:$0]  %s6, 32, %s115, [#allocation12]
    $region29: #{tpu_custom_call.1} parent=1 // pred_fallthru
      _
    // Predicated region
    $region30: #{tpu_custom_call.1} parent=1 // pred_check
      _
    $region31: #{tpu_custom_call.1} parent=1 // pred_check_branch
      %119 = sbr.rel (0) target = $region33
    $region32: #{tpu_custom_call.1} parent=1 // pred_region
      %s121 = ssub.s32 49152, 49152
      %122 = vsyncadd [#allocation15], %s121
      %s123 = sshll.u32 [#allocation14], 4
      %s124 = int_to_ptr.vmem [resolvable:$true] %s123
      %129 = dma.hbm_to_vmem [thread:$0]  %s7, 49152, %s124, [#allocation15], 512, 512, 32
    $region33: #{tpu_custom_call.1} parent=1 // pred_fallthru
      _
    // Predicated region
    $region34: #{tpu_custom_call.1} parent=1 // pred_check
      _
    $region35: #{tpu_custom_call.1} parent=1 // pred_check_branch
      %131 = sbr.rel (0) target = $region37
    $region36: #{tpu_custom_call.1} parent=1 // pred_region
      %s133 = ssub.s32 64, 64
      %134 = vsyncadd [#allocation15], %s133
      %s136 = sshll.u32 [#allocation16], 4
      %s137 = int_to_ptr.vmem [resolvable:$true] %s136
      %139 = dma.hbm_to_vmem [thread:$0]  %s8, 64, %s137, [#allocation15]
    $region37: #{tpu_custom_call.1} parent=1 // pred_fallthru
      _
    // Predicated region
    $region38: #{tpu_custom_call.1} parent=1 // pred_check
      _
    $region39: #{tpu_custom_call.1} parent=1 // pred_check_branch
      %141 = sbr.rel (0) target = $region41
    $region40: #{tpu_custom_call.1} parent=1 // pred_region
      %s143 = ssub.s32 8192, 8192
      %144 = vsyncadd [#allocation18], %s143
      %s145 = sshll.u32 [#allocation17], 4
      %s146 = int_to_ptr.vmem [resolvable:$true] %s145
      %151 = dma.hbm_to_vmem [thread:$0]  %s9, 8192, %s146, [#allocation18], 256, 256, 16
    $region41: #{tpu_custom_call.1} parent=1 // pred_fallthru
      _
    // Predicated region
    $region42: #{tpu_custom_call.1} parent=1 // pred_check
      _
    $region43: #{tpu_custom_call.1} parent=1 // pred_check_branch
      %153 = sbr.rel (0) target = $region45
    $region44: #{tpu_custom_call.1} parent=1 // pred_region
      %s155 = ssub.s32 32, 32
      %156 = vsyncadd [#allocation18], %s155
      %s158 = sshll.u32 [#allocation19], 4
      %s159 = int_to_ptr.vmem [resolvable:$true] %s158
      %161 = dma.hbm_to_vmem [thread:$0]  %s10, 32, %s159, [#allocation18]
    $region45: #{tpu_custom_call.1} parent=1 // pred_fallthru
      _
    // Predicated region
    $region46: #{tpu_custom_call.1} parent=1 // pred_check
      _
    $region47: #{tpu_custom_call.1} parent=1 // pred_check_branch
      %163 = sbr.rel (0) target = $region49
    $region48: #{tpu_custom_call.1} parent=1 // pred_region
      %s165 = ssub.s32 8192, 8192
      %166 = vsyncadd [#allocation21], %s165
      %s167 = sshll.u32 [#allocation20], 4
      %s168 = int_to_ptr.vmem [resolvable:$true] %s167
      %173 = dma.hbm_to_vmem [thread:$0]  %s11, 8192, %s168, [#allocation21], 256, 256, 16
    $region49: #{tpu_custom_call.1} parent=1 // pred_fallthru
      _
    // Predicated region
    $region50: #{tpu_custom_call.1} parent=1 // pred_check
      _
    $region51: #{tpu_custom_call.1} parent=1 // pred_check_branch
      %175 = sbr.rel (0) target = $region53
    $region52: #{tpu_custom_call.1} parent=1 // pred_region
      %s177 = ssub.s32 32, 32
      %178 = vsyncadd [#allocation21], %s177
      %s180 = sshll.u32 [#allocation22], 4
      %s181 = int_to_ptr.vmem [resolvable:$true] %s180
      %183 = dma.hbm_to_vmem [thread:$0]  %s12, 32, %s181, [#allocation21]
    $region53: #{tpu_custom_call.1} parent=1 // pred_fallthru
      _
    // Predicated region
    $region54: #{tpu_custom_call.1} parent=1 // pred_check
      _
    $region55: #{tpu_custom_call.1} parent=1 // pred_check_branch
      %185 = sbr.rel (0) target = $region57
    $region56: #{tpu_custom_call.1} parent=1 // pred_region
      %s187 = ssub.s32 8192, 8192
      %188 = vsyncadd [#allocation24], %s187
      %s189 = sshll.u32 [#allocation23], 4
      %s190 = int_to_ptr.vmem [resolvable:$true] %s189
      %195 = dma.hbm_to_vmem [thread:$0]  %s13, 8192, %s190, [#allocation24], 256, 256, 16
    $region57: #{tpu_custom_call.1} parent=1 // pred_fallthru
      _
    // Predicated region
    $region58: #{tpu_custom_call.1} parent=1 // pred_check
      _
    $region59: #{tpu_custom_call.1} parent=1 // pred_check_branch
      %197 = sbr.rel (0) target = $region61
    $region60: #{tpu_custom_call.1} parent=1 // pred_region
      %s199 = ssub.s32 32, 32
      %200 = vsyncadd [#allocation24], %s199
      %s202 = sshll.u32 [#allocation25], 4
      %s203 = int_to_ptr.vmem [resolvable:$true] %s202
      %205 = dma.hbm_to_vmem [thread:$0]  %s14, 32, %s203, [#allocation24]
    $region61: #{tpu_custom_call.1} parent=1 // pred_fallthru
      _
    // Predicated region
    $region62: #{tpu_custom_call.1} parent=1 // pred_check
      _
    $region63: #{tpu_custom_call.1} parent=1 // pred_check_branch
      %207 = sbr.rel (0) target = $region65
    $region64: #{tpu_custom_call.1} parent=1 // pred_region
      %s209 = ssub.s32 16384, 16384
      %210 = vsyncadd [#allocation27], %s209
      %s211 = sshll.u32 [#allocation26], 4
      %s212 = int_to_ptr.vmem [resolvable:$true] %s211
      %217 = dma.hbm_to_vmem [thread:$0]  %s15, 16384, %s212, [#allocation27], 256, 256, 16
    $region65: #{tpu_custom_call.1} parent=1 // pred_fallthru
      _
    // Predicated region
    $region66: #{tpu_custom_call.1} parent=1 // pred_check
      _
    $region67: #{tpu_custom_call.1} parent=1 // pred_check_branch
      %219 = sbr.rel (0) target = $region69
    $region68: #{tpu_custom_call.1} parent=1 // pred_region
      %s221 = ssub.s32 32, 32
      %222 = vsyncadd [#allocation27], %s221
      %s224 = sshll.u32 [#allocation28], 4
      %s225 = int_to_ptr.vmem [resolvable:$true] %s224
      %227 = dma.hbm_to_vmem [thread:$0]  %s16, 32, %s225, [#allocation27]
    $region69: #{tpu_custom_call.1} parent=1 // pred_fallthru
      _
    // Predicated region
    $region70: #{tpu_custom_call.1} parent=1 // pred_check
      _
    $region71: #{tpu_custom_call.1} parent=1 // pred_check_branch
      %229 = sbr.rel (0) target = $region73
    $region72: #{tpu_custom_call.1} parent=1 // pred_region
      %s231 = ssub.s32 8192, 8192
      %232 = vsyncadd [#allocation30], %s231
      %s233 = sshll.u32 [#allocation29], 4
      %s234 = int_to_ptr.vmem [resolvable:$true] %s233
      %239 = dma.hbm_to_vmem [thread:$0]  %s17, 8192, %s234, [#allocation30], 256, 256, 16
    $region73: #{tpu_custom_call.1} parent=1 // pred_fallthru
      _
    // Predicated region
    $region74: #{tpu_custom_call.1} parent=1 // pred_check
      _
    $region75: #{tpu_custom_call.1} parent=1 // pred_check_branch
      %241 = sbr.rel (0) target = $region77
    $region76: #{tpu_custom_call.1} parent=1 // pred_region
      %s243 = ssub.s32 32, 32
      %244 = vsyncadd [#allocation30], %s243
      %s246 = sshll.u32 [#allocation31], 4
      %s247 = int_to_ptr.vmem [resolvable:$true] %s246
      %249 = dma.hbm_to_vmem [thread:$0]  %s18, 32, %s247, [#allocation30]
    $region77: #{tpu_custom_call.1} parent=1 // pred_fallthru
      _
    // Predicated region
    $region78: #{tpu_custom_call.1} parent=1 // pred_check
      _
    $region79: #{tpu_custom_call.1} parent=1 // pred_check_branch
      %251 = sbr.rel (0) target = $region81
    $region80: #{tpu_custom_call.1} parent=1 // pred_region
      %s253 = ssub.s32 8192, 8192
      %254 = vsyncadd [#allocation33], %s253
      %s255 = sshll.u32 [#allocation32], 4
      %s256 = int_to_ptr.vmem [resolvable:$true] %s255
      %261 = dma.hbm_to_vmem [thread:$0]  %s19, 8192, %s256, [#allocation33], 256, 256, 16
    $region81: #{tpu_custom_call.1} parent=1 // pred_fallthru
      _
    // Predicated region
    $region82: #{tpu_custom_call.1} parent=1 // pred_check
      _
    $region83: #{tpu_custom_call.1} parent=1 // pred_check_branch
      %263 = sbr.rel (0) target = $region85
    $region84: #{tpu_custom_call.1} parent=1 // pred_region
      %s265 = ssub.s32 32, 32
      %266 = vsyncadd [#allocation33], %s265
      %s268 = sshll.u32 [#allocation34], 4
      %s269 = int_to_ptr.vmem [resolvable:$true] %s268
      %271 = dma.hbm_to_vmem [thread:$0]  %s20, 32, %s269, [#allocation33]
    $region85: #{tpu_custom_call.1} parent=1 // pred_fallthru
      _
    // Predicated region
    $region86: #{tpu_custom_call.1} parent=1 // pred_check
      _
    $region87: #{tpu_custom_call.1} parent=1 // pred_check_branch
      %273 = sbr.rel (0) target = $region89
    $region88: #{tpu_custom_call.1} parent=1 // pred_region
      %s275 = ssub.s32 16384, 16384
      %276 = vsyncadd [#allocation36], %s275
      %s277 = sshll.u32 [#allocation35], 4
      %s278 = int_to_ptr.vmem [resolvable:$true] %s277
      %283 = dma.hbm_to_vmem [thread:$0]  %s21, 16384, %s278, [#allocation36], 256, 256, 16
    $region89: #{tpu_custom_call.1} parent=1 // pred_fallthru
      _
    // Predicated region
    $region90: #{tpu_custom_call.1} parent=1 // pred_check
      _
    $region91: #{tpu_custom_call.1} parent=1 // pred_check_branch
      %285 = sbr.rel (0) target = $region93
    $region92: #{tpu_custom_call.1} parent=1 // pred_region
      %s287 = ssub.s32 32, 32
      %288 = vsyncadd [#allocation36], %s287
      %s290 = sshll.u32 [#allocation37], 4
      %s291 = int_to_ptr.vmem [resolvable:$true] %s290
      %293 = dma.hbm_to_vmem [thread:$0]  %s22, 32, %s291, [#allocation36]
    $region93: #{tpu_custom_call.1} parent=1 // pred_fallthru
      _
    // Predicated region
    $region94: #{tpu_custom_call.1} parent=1 // pred_check
      _
    $region95: #{tpu_custom_call.1} parent=1 // pred_check_branch
      %295 = sbr.rel (0) target = $region97
    $region96: #{tpu_custom_call.1} parent=1 // pred_region
      _
    $region97: #{tpu_custom_call.1} parent=1 // pred_fallthru
      _
    // Predicated region
    $region98: #{tpu_custom_call.1} parent=1 // pred_check
      _
    $region99: #{tpu_custom_call.1} parent=1 // pred_check_branch
      %297 = sbr.rel (0) target = $region101
    $region100: #{tpu_custom_call.1} parent=1 // pred_region
      _
    $region101: #{tpu_custom_call.1} parent=1 // pred_fallthru
      _
    // Predicated region
    $region102: #{tpu_custom_call.1} parent=1 // pred_check
      _
    $region103: #{tpu_custom_call.1} parent=1 // pred_check_branch
      %299 = sbr.rel (0) target = $region105
    $region104: #{tpu_custom_call.1} parent=1 // pred_region
      %300 = dma.done [#allocation4], 768
    $region105: #{tpu_custom_call.1} parent=1 // pred_fallthru
      _
    // Predicated region
    $region106: #{tpu_custom_call.1} parent=1 // pred_check
      _
    $region107: #{tpu_custom_call.1} parent=1 // pred_check_branch
      %302 = sbr.rel (0) target = $region109
    $region108: #{tpu_custom_call.1} parent=1 // pred_region
      %303 = dma.done [#allocation6], 768
    $region109: #{tpu_custom_call.1} parent=1 // pred_fallthru
      _
    // Predicated region
    $region110: #{tpu_custom_call.1} parent=1 // pred_check
      _
    $region111: #{tpu_custom_call.1} parent=1 // pred_check_branch
      %305 = sbr.rel (0) target = $region113
    $region112: #{tpu_custom_call.1} parent=1 // pred_region
      %306 = dma.done [#allocation6], 128
    $region113: #{tpu_custom_call.1} parent=1 // pred_fallthru
      _
    // Predicated region
    $region114: #{tpu_custom_call.1} parent=1 // pred_check
      _
    $region115: #{tpu_custom_call.1} parent=1 // pred_check_branch
      %308 = sbr.rel (0) target = $region117
    $region116: #{tpu_custom_call.1} parent=1 // pred_region
      %309 = dma.done [#allocation9], 8192
    $region117: #{tpu_custom_call.1} parent=1 // pred_fallthru
      _
    // Predicated region
    $region118: #{tpu_custom_call.1} parent=1 // pred_check
      _
    $region119: #{tpu_custom_call.1} parent=1 // pred_check_branch
      %311 = sbr.rel (0) target = $region121
    $region120: #{tpu_custom_call.1} parent=1 // pred_region
      %312 = dma.done [#allocation9], 64
    $region121: #{tpu_custom_call.1} parent=1 // pred_fallthru
      _
    // Predicated region
    $region122: #{tpu_custom_call.1} parent=1 // pred_check
      _
    $region123: #{tpu_custom_call.1} parent=1 // pred_check_branch
      %314 = sbr.rel (0) target = $region125
    $region124: #{tpu_custom_call.1} parent=1 // pred_region
      %315 = dma.done [#allocation12], 8192
    $region125: #{tpu_custom_call.1} parent=1 // pred_fallthru
      _
    // Predicated region
    $region126: #{tpu_custom_call.1} parent=1 // pred_check
      _
    $region127: #{tpu_custom_call.1} parent=1 // pred_check_branch
      %317 = sbr.rel (0) target = $region129
    $region128: #{tpu_custom_call.1} parent=1 // pred_region
      %318 = dma.done [#allocation12], 32
    $region129: #{tpu_custom_call.1} parent=1 // pred_fallthru
      _
    // Predicated region
    $region130: #{tpu_custom_call.1} parent=1 // pred_check
      _
    $region131: #{tpu_custom_call.1} parent=1 // pred_check_branch
      %320 = sbr.rel (0) target = $region133
    $region132: #{tpu_custom_call.1} parent=1 // pred_region
      %321 = dma.done [#allocation15], 49152
    $region133: #{tpu_custom_call.1} parent=1 // pred_fallthru
      _
    // Predicated region
    $region134: #{tpu_custom_call.1} parent=1 // pred_check
      _
    $region135: #{tpu_custom_call.1} parent=1 // pred_check_branch
      %323 = sbr.rel (0) target = $region137
    $region136: #{tpu_custom_call.1} parent=1 // pred_region
      %324 = dma.done [#allocation15], 64
    $region137: #{tpu_custom_call.1} parent=1 // pred_fallthru
      _
    // Predicated region
    $region138: #{tpu_custom_call.1} parent=1 // pred_check
      _
    $region139: #{tpu_custom_call.1} parent=1 // pred_check_branch
      %326 = sbr.rel (0) target = $region141
    $region140: #{tpu_custom_call.1} parent=1 // pred_region
      %327 = dma.done [#allocation18], 8192
    $region141: #{tpu_custom_call.1} parent=1 // pred_fallthru
      _
    // Predicated region
    $region142: #{tpu_custom_call.1} parent=1 // pred_check
      _
    $region143: #{tpu_custom_call.1} parent=1 // pred_check_branch
      %329 = sbr.rel (0) target = $region145
    $region144: #{tpu_custom_call.1} parent=1 // pred_region
      %330 = dma.done [#allocation18], 32
    $region145: #{tpu_custom_call.1} parent=1 // pred_fallthru
      _
    // Predicated region
    $region146: #{tpu_custom_call.1} parent=1 // pred_check
      _
    $region147: #{tpu_custom_call.1} parent=1 // pred_check_branch
      %332 = sbr.rel (0) target = $region149
    $region148: #{tpu_custom_call.1} parent=1 // pred_region
      %333 = dma.done [#allocation21], 8192
    $region149: #{tpu_custom_call.1} parent=1 // pred_fallthru
      _
    // Predicated region
    $region150: #{tpu_custom_call.1} parent=1 // pred_check
      _
    $region151: #{tpu_custom_call.1} parent=1 // pred_check_branch
      %335 = sbr.rel (0) target = $region153
    $region152: #{tpu_custom_call.1} parent=1 // pred_region
      %336 = dma.done [#allocation21], 32
    $region153: #{tpu_custom_call.1} parent=1 // pred_fallthru
      _
    // Predicated region
    $region154: #{tpu_custom_call.1} parent=1 // pred_check
      _
    $region155: #{tpu_custom_call.1} parent=1 // pred_check_branch
      %338 = sbr.rel (0) target = $region157
    $region156: #{tpu_custom_call.1} parent=1 // pred_region
      %339 = dma.done [#allocation24], 8192
    $region157: #{tpu_custom_call.1} parent=1 // pred_fallthru
      _
    // Predicated region
    $region158: #{tpu_custom_call.1} parent=1 // pred_check
      _
    $region159: #{tpu_custom_call.1} parent=1 // pred_check_branch
      %341 = sbr.rel (0) target = $region161
    $region160: #{tpu_custom_call.1} parent=1 // pred_region
      %342 = dma.done [#allocation24], 32
    $region161: #{tpu_custom_call.1} parent=1 // pred_fallthru
      _
    // Predicated region
    $region162: #{tpu_custom_call.1} parent=1 // pred_check
      _
    $region163: #{tpu_custom_call.1} parent=1 // pred_check_branch
      %344 = sbr.rel (0) target = $region165
    $region164: #{tpu_custom_call.1} parent=1 // pred_region
      %345 = dma.done [#allocation27], 16384
    $region165: #{tpu_custom_call.1} parent=1 // pred_fallthru
      _
    // Predicated region
    $region166: #{tpu_custom_call.1} parent=1 // pred_check
      _
    $region167: #{tpu_custom_call.1} parent=1 // pred_check_branch
      %347 = sbr.rel (0) target = $region169
    $region168: #{tpu_custom_call.1} parent=1 // pred_region
      %348 = dma.done [#allocation27], 32
    $region169: #{tpu_custom_call.1} parent=1 // pred_fallthru
      _
    // Predicated region
    $region170: #{tpu_custom_call.1} parent=1 // pred_check
      _
    $region171: #{tpu_custom_call.1} parent=1 // pred_check_branch
      %350 = sbr.rel (0) target = $region173
    $region172: #{tpu_custom_call.1} parent=1 // pred_region
      %351 = dma.done [#allocation30], 8192
    $region173: #{tpu_custom_call.1} parent=1 // pred_fallthru
      _
    // Predicated region
    $region174: #{tpu_custom_call.1} parent=1 // pred_check
      _
    $region175: #{tpu_custom_call.1} parent=1 // pred_check_branch
      %353 = sbr.rel (0) target = $region177
    $region176: #{tpu_custom_call.1} parent=1 // pred_region
      %354 = dma.done [#allocation30], 32
    $region177: #{tpu_custom_call.1} parent=1 // pred_fallthru
      _
    // Predicated region
    $region178: #{tpu_custom_call.1} parent=1 // pred_check
      _
    $region179: #{tpu_custom_call.1} parent=1 // pred_check_branch
      %356 = sbr.rel (0) target = $region181
    $region180: #{tpu_custom_call.1} parent=1 // pred_region
      %357 = dma.done [#allocation33], 8192
    $region181: #{tpu_custom_call.1} parent=1 // pred_fallthru
      _
    // Predicated region
    $region182: #{tpu_custom_call.1} parent=1 // pred_check
      _
    $region183: #{tpu_custom_call.1} parent=1 // pred_check_branch
      %359 = sbr.rel (0) target = $region185
    $region184: #{tpu_custom_call.1} parent=1 // pred_region
      %360 = dma.done [#allocation33], 32
    $region185: #{tpu_custom_call.1} parent=1 // pred_fallthru
      _
    // Predicated region
    $region186: #{tpu_custom_call.1} parent=1 // pred_check
      _
    $region187: #{tpu_custom_call.1} parent=1 // pred_check_branch
      %362 = sbr.rel (0) target = $region189
    $region188: #{tpu_custom_call.1} parent=1 // pred_region
      %363 = dma.done [#allocation36], 16384
    $region189: #{tpu_custom_call.1} parent=1 // pred_fallthru
      _
    // Predicated region
    $region190: #{tpu_custom_call.1} parent=1 // pred_check
      _
    $region191: #{tpu_custom_call.1} parent=1 // pred_check_branch
      %365 = sbr.rel (0) target = $region193
    $region192: #{tpu_custom_call.1} parent=1 // pred_region
      %366 = dma.done [#allocation36], 32
    $region193: #{tpu_custom_call.1} parent=1 // pred_fallthru
      _
    %v367 = vld [vmem:[#allocation3] sm:$0xff]
    %v368 = vld [vmem:[#allocation3 + $0x8] sm:$0xff]
    %v369 = vld [vmem:[#allocation3 + $0x10] sm:$0xff]
    %v370 = vld [vmem:[#allocation3 + $0x18] sm:$0xff]
    %v371 = vld [vmem:[#allocation3 + $0x20] sm:$0xff]
    %v372 = vld [vmem:[#allocation3 + $0x28] sm:$0xff]
    %v373 = vld [vmem:[#allocation5] sm:$0xff]
    %v374 = vld [vmem:[#allocation5 + $0x8] sm:$0xff]
    %v375 = vld [vmem:[#allocation5 + $0x10] sm:$0xff]
    %v376 = vld [vmem:[#allocation5 + $0x18] sm:$0xff]
    %v377 = vld [vmem:[#allocation5 + $0x20] sm:$0xff]
    %v378 = vld [vmem:[#allocation5 + $0x28] sm:$0xff]
    %v379 = vld [vmem:[#allocation7] sm:$0xff]
    %v380 = vld [vmem:[#allocation8] sm:$0xff]
    %v381 = vld [vmem:[#allocation8 + $0x8] sm:$0xff]
    %v382 = vld [vmem:[#allocation8 + $0x10] sm:$0xff]
    %v383 = vld [vmem:[#allocation8 + $0x18] sm:$0xff]
    %v384 = vld [vmem:[#allocation8 + $0x20] sm:$0xff]
    %v385 = vld [vmem:[#allocation8 + $0x28] sm:$0xff]
    %v386 = vld [vmem:[#allocation8 + $0x30] sm:$0xff]
    %v387 = vld [vmem:[#allocation8 + $0x38] sm:$0xff]
    %v388 = vld [vmem:[#allocation8 + $0x40] sm:$0xff]
    %v389 = vld [vmem:[#allocation8 + $0x48] sm:$0xff]
    %v390 = vld [vmem:[#allocation8 + $0x50] sm:$0xff]
    %v391 = vld [vmem:[#allocation8 + $0x58] sm:$0xff]
    %v392 = vld [vmem:[#allocation8 + $0x60] sm:$0xff]
    %v393 = vld [vmem:[#allocation8 + $0x68] sm:$0xff]
    %v394 = vld [vmem:[#allocation8 + $0x70] sm:$0xff]
    %v395 = vld [vmem:[#allocation8 + $0x78] sm:$0xff]
    %v396 = vld [vmem:[#allocation8 + $0x80] sm:$0xff]
    %v397 = vld [vmem:[#allocation8 + $0x88] sm:$0xff]
    %v398 = vld [vmem:[#allocation8 + $0x90] sm:$0xff]
    %v399 = vld [vmem:[#allocation8 + $0x98] sm:$0xff]
    %v400 = vld [vmem:[#allocation8 + $0xa0] sm:$0xff]
    %v401 = vld [vmem:[#allocation8 + $0xa8] sm:$0xff]
    %v402 = vld [vmem:[#allocation8 + $0xb0] sm:$0xff]
    %v403 = vld [vmem:[#allocation8 + $0xb8] sm:$0xff]
    %v404 = vld [vmem:[#allocation8 + $0xc0] sm:$0xff]
    %v405 = vld [vmem:[#allocation8 + $0xc8] sm:$0xff]
    %v406 = vld [vmem:[#allocation8 + $0xd0] sm:$0xff]
    %v407 = vld [vmem:[#allocation8 + $0xd8] sm:$0xff]
    %v408 = vld [vmem:[#allocation8 + $0xe0] sm:$0xff]
    %v409 = vld [vmem:[#allocation8 + $0xe8] sm:$0xff]
    %v410 = vld [vmem:[#allocation8 + $0xf0] sm:$0xff]
    %v411 = vld [vmem:[#allocation8 + $0xf8] sm:$0xff]
    %v412 = vld [vmem:[#allocation8 + $0x100] sm:$0xff]
    %v413 = vld [vmem:[#allocation8 + $0x108] sm:$0xff]
    %v414 = vld [vmem:[#allocation8 + $0x110] sm:$0xff]
    %v415 = vld [vmem:[#allocation8 + $0x118] sm:$0xff]
    %v416 = vld [vmem:[#allocation8 + $0x120] sm:$0xff]
    %v417 = vld [vmem:[#allocation8 + $0x128] sm:$0xff]
    %v418 = vld [vmem:[#allocation8 + $0x130] sm:$0xff]
    %v419 = vld [vmem:[#allocation8 + $0x138] sm:$0xff]
    %v420 = vld [vmem:[#allocation8 + $0x140] sm:$0xff]
    %v421 = vld [vmem:[#allocation8 + $0x148] sm:$0xff]
    %v422 = vld [vmem:[#allocation8 + $0x150] sm:$0xff]
    %v423 = vld [vmem:[#allocation8 + $0x158] sm:$0xff]
    %v424 = vld [vmem:[#allocation8 + $0x160] sm:$0xff]
    %v425 = vld [vmem:[#allocation8 + $0x168] sm:$0xff]
    %v426 = vld [vmem:[#allocation8 + $0x170] sm:$0xff]
    %v427 = vld [vmem:[#allocation8 + $0x178] sm:$0xff]
    %v428 = vld [vmem:[#allocation8 + $0x180] sm:$0xff]
    %v429 = vld [vmem:[#allocation8 + $0x188] sm:$0xff]
    %v430 = vld [vmem:[#allocation8 + $0x190] sm:$0xff]
    %v431 = vld [vmem:[#allocation8 + $0x198] sm:$0xff]
    %v432 = vld [vmem:[#allocation8 + $0x1a0] sm:$0xff]
    %v433 = vld [vmem:[#allocation8 + $0x1a8] sm:$0xff]
    %v434 = vld [vmem:[#allocation8 + $0x1b0] sm:$0xff]
    %v435 = vld [vmem:[#allocation8 + $0x1b8] sm:$0xff]
    %v436 = vld [vmem:[#allocation8 + $0x1c0] sm:$0xff]
    %v437 = vld [vmem:[#allocation8 + $0x1c8] sm:$0xff]
    %v438 = vld [vmem:[#allocation8 + $0x1d0] sm:$0xff]
    %v439 = vld [vmem:[#allocation8 + $0x1d8] sm:$0xff]
    %v440 = vld [vmem:[#allocation8 + $0x1e0] sm:$0xff]
    %v441 = vld [vmem:[#allocation8 + $0x1e8] sm:$0xff]
    %v442 = vld [vmem:[#allocation8 + $0x1f0] sm:$0xff]
    %v443 = vld [vmem:[#allocation8 + $0x1f8] sm:$0xff]
    %v444 = vld [vmem:[#allocation10] sm:$0xf]
    %v446 = vlaneseq
    %v447 = vshrl.u32 %v446, 7
    %v448 = vsub.s32 0, %v447
    %v449 = vrot.slane %v444, %v448
    %v450 = vlaneseq
    %v451 = vshrl.u32 %v450, 7
    %v452 = vsub.s32 1, %v451
    %v453 = vrot.slane %v444, %v452
    %v454 = vlaneseq
    %v455 = vshrl.u32 %v454, 7
    %v456 = vsub.s32 2, %v455
    %v457 = vrot.slane %v444, %v456
    %v458 = vlaneseq
    %v459 = vshrl.u32 %v458, 7
    %v460 = vsub.s32 3, %v459
    %v461 = vrot.slane %v444, %v460
    %466 = vmatprep.subr.mxu0 %v381
    %467 = vmatpush1.msra.mxu0 %v380
    %468 = vmatprep.subr.mxu0 %v385
    %469 = vmatpush1.msra.mxu0 %v384
    %470 = vmatprep.subr.mxu0 %v389
    %471 = vmatpush1.msra.mxu0 %v388
    %472 = vmatprep.subr.mxu0 %v393
    %473 = vmatpush1.msra.mxu0 %v392
    %474 = vmatprep.subr.mxu0 %v397
    %475 = vmatpush1.msra.mxu0 %v396
    %476 = vmatprep.subr.mxu0 %v401
    %477 = vmatpush1.msra.mxu0 %v400
    %478 = vmatprep.subr.mxu0 %v405
    %479 = vmatpush1.msra.mxu0 %v404
    %480 = vmatprep.subr.mxu0 %v409
    %481 = vmatpush1.msra.mxu0 %v408
    %482 = vmatprep.subr.mxu0 %v413
    %483 = vmatpush1.msra.mxu0 %v412
    %484 = vmatprep.subr.mxu0 %v417
    %485 = vmatpush1.msra.mxu0 %v416
    %486 = vmatprep.subr.mxu0 %v421
    %487 = vmatpush1.msra.mxu0 %v420
    %488 = vmatprep.subr.mxu0 %v425
    %489 = vmatpush1.msra.mxu0 %v424
    %490 = vmatprep.subr.mxu0 %v429
    %491 = vmatpush1.msra.mxu0 %v428
    %492 = vmatprep.subr.mxu0 %v433
    %493 = vmatpush1.msra.mxu0 %v432
    %494 = vmatprep.subr.mxu0 %v437
    %495 = vmatpush1.msra.mxu0 %v436
    %496 = vmatprep.subr.mxu0 %v441
    %497 = vmatpush1.msra.mxu0 %v440
    %498 = vmatprep.subr.mxu0 0.0
    %499 = vmatpush1.msra.mxu0 0.0
    %500 = vmatprep.subr.mxu0 0.0
    %501 = vmatpush1.msra.mxu0 0.0
    %502 = vmatprep.subr.mxu0 0.0
    %503 = vmatpush1.msra.mxu0 0.0
    %504 = vmatprep.subr.mxu0 0.0
    %505 = vmatpush1.msra.mxu0 0.0
    %506 = vmatprep.subr.mxu0 0.0
    %507 = vmatpush1.msra.mxu0 0.0
    %508 = vmatprep.subr.mxu0 0.0
    %509 = vmatpush1.msra.mxu0 0.0
    %510 = vmatprep.subr.mxu0 0.0
    %511 = vmatpush1.msra.mxu0 0.0
    %512 = vmatprep.subr.mxu0 0.0
    %513 = vmatpush1.msra.mxu0 0.0
    %514 = vmatprep.subr.mxu0 0.0
    %515 = vmatpush1.msra.mxu0 0.0
    %516 = vmatprep.subr.mxu0 0.0
    %517 = vmatpush1.msra.mxu0 0.0
    %518 = vmatprep.subr.mxu0 0.0
    %519 = vmatpush1.msra.mxu0 0.0
    %520 = vmatprep.subr.mxu0 0.0
    %521 = vmatpush1.msra.mxu0 0.0
    %522 = vmatprep.subr.mxu0 0.0
    %523 = vmatpush1.msra.mxu0 0.0
    %524 = vmatprep.subr.mxu0 0.0
    %525 = vmatpush1.msra.mxu0 0.0
    %526 = vmatprep.subr.mxu0 0.0
    %527 = vmatpush1.msra.mxu0 0.0
    %528 = vmatprep.subr.mxu0 0.0
    %529 = vmatpush1.msra.mxu0 0.0
    %530 = vmatprep.mubr.f32.mxu0 0.0
    %531 = vmatmul.mubr.f32.gmra.mrb[0].mxu0 %v379
    %v532 = vpop.f32.mrb[0].mxu0
    %v533 = vadd.f32 %v449, %v532
    %v534 = vpop.f32.mrb[0].mxu0
    %v535 = vadd.f32 %v453, %v534
    %536 = vdwg.mxu0
    %537 = vmatprep.subr.mxu0 %v383
    %538 = vmatpush1.msra.mxu0 %v382
    %539 = vmatprep.subr.mxu0 %v387
    %540 = vmatpush1.msra.mxu0 %v386
    %541 = vmatprep.subr.mxu0 %v391
    %542 = vmatpush1.msra.mxu0 %v390
    %543 = vmatprep.subr.mxu0 %v395
    %544 = vmatpush1.msra.mxu0 %v394
    %545 = vmatprep.subr.mxu0 %v399
    %546 = vmatpush1.msra.mxu0 %v398
    %547 = vmatprep.subr.mxu0 %v403
    %548 = vmatpush1.msra.mxu0 %v402
    %549 = vmatprep.subr.mxu0 %v407
    %550 = vmatpush1.msra.mxu0 %v406
    %551 = vmatprep.subr.mxu0 %v411
    %552 = vmatpush1.msra.mxu0 %v410
    %553 = vmatprep.subr.mxu0 %v415
    %554 = vmatpush1.msra.mxu0 %v414
    %555 = vmatprep.subr.mxu0 %v419
    %556 = vmatpush1.msra.mxu0 %v418
    %557 = vmatprep.subr.mxu0 %v423
    %558 = vmatpush1.msra.mxu0 %v422
    %559 = vmatprep.subr.mxu0 %v427
    %560 = vmatpush1.msra.mxu0 %v426
    %561 = vmatprep.subr.mxu0 %v431
    %562 = vmatpush1.msra.mxu0 %v430
    %563 = vmatprep.subr.mxu0 %v435
    %564 = vmatpush1.msra.mxu0 %v434
    %565 = vmatprep.subr.mxu0 %v439
    %566 = vmatpush1.msra.mxu0 %v438
    %567 = vmatprep.subr.mxu0 %v443
    %568 = vmatpush1.msra.mxu0 %v442
    %569 = vmatprep.subr.mxu0 0.0
    %570 = vmatpush1.msra.mxu0 0.0
    %571 = vmatprep.subr.mxu0 0.0
    %572 = vmatpush1.msra.mxu0 0.0
    %573 = vmatprep.subr.mxu0 0.0
    %574 = vmatpush1.msra.mxu0 0.0
    %575 = vmatprep.subr.mxu0 0.0
    %576 = vmatpush1.msra.mxu0 0.0
    %577 = vmatprep.subr.mxu0 0.0
    %578 = vmatpush1.msra.mxu0 0.0
    %579 = vmatprep.subr.mxu0 0.0
    %580 = vmatpush1.msra.mxu0 0.0
    %581 = vmatprep.subr.mxu0 0.0
    %582 = vmatpush1.msra.mxu0 0.0
    %583 = vmatprep.subr.mxu0 0.0
    %584 = vmatpush1.msra.mxu0 0.0
    %585 = vmatprep.subr.mxu0 0.0
    %586 = vmatpush1.msra.mxu0 0.0
    %587 = vmatprep.subr.mxu0 0.0
    %588 = vmatpush1.msra.mxu0 0.0
    %589 = vmatprep.subr.mxu0 0.0
    %590 = vmatpush1.msra.mxu0 0.0
    %591 = vmatprep.subr.mxu0 0.0
    %592 = vmatpush1.msra.mxu0 0.0
    %593 = vmatprep.subr.mxu0 0.0
    %594 = vmatpush1.msra.mxu0 0.0
    %595 = vmatprep.subr.mxu0 0.0
    %596 = vmatpush1.msra.mxu0 0.0
    %597 = vmatprep.subr.mxu0 0.0
    %598 = vmatpush1.msra.mxu0 0.0
    %599 = vmatprep.subr.mxu0 0.0
    %600 = vmatpush1.msra.mxu0 0.0
    %601 = vmatprep.mubr.f32.mxu0 0.0
    %602 = vmatmul.mubr.f32.gmra.mrb[0].mxu0 %v379
    %v603 = vpop.f32.mrb[0].mxu0
    %v604 = vadd.f32 %v457, %v603
    %v605 = vpop.f32.mrb[0].mxu0
    %v606 = vadd.f32 %v461, %v605
    %607 = vdwg.mxu0
    %v608 = vtanh.pop %v533
    %v609 = vtanh.pop %v535
    %v610 = vxor.u32 %v604, 2147483648
    %v611 = vxor.u32 %v606, 2147483648
    %v612 = vmul.f32 %v610, 1.442695
    %v613 = vpow.pop %v612
    %v614 = vmul.f32 %v611, 1.442695
    %v615 = vpow.pop %v614
    %v616 = vadd.f32 %v613, 1.0
    %v617 = vadd.f32 %v615, 1.0
    %v618 = vrcp.pop %v616
    %v619 = vmul.f32 1.0, %v618
    %v620 = vrcp.pop %v617
    %v621 = vmul.f32 1.0, %v620
    %v622 = vmul.f32 %v608, %v619
    %v623 = vmul.f32 %v609, %v621
    %v624 = vld [vmem:[#allocation11] sm:$0xff]
    %v625 = vld [vmem:[#allocation11 + $0x8] sm:$0xff]
    %v626 = vld [vmem:[#allocation11 + $0x10] sm:$0xff]
    %v627 = vld [vmem:[#allocation11 + $0x18] sm:$0xff]
    %v628 = vld [vmem:[#allocation11 + $0x20] sm:$0xff]
    %v629 = vld [vmem:[#allocation11 + $0x28] sm:$0xff]
    %v630 = vld [vmem:[#allocation11 + $0x30] sm:$0xff]
    %v631 = vld [vmem:[#allocation11 + $0x38] sm:$0xff]
    %v632 = vld [vmem:[#allocation11 + $0x40] sm:$0xff]
    %v633 = vld [vmem:[#allocation11 + $0x48] sm:$0xff]
    %v634 = vld [vmem:[#allocation11 + $0x50] sm:$0xff]
    %v635 = vld [vmem:[#allocation11 + $0x58] sm:$0xff]
    %v636 = vld [vmem:[#allocation11 + $0x60] sm:$0xff]
    %v637 = vld [vmem:[#allocation11 + $0x68] sm:$0xff]
    %v638 = vld [vmem:[#allocation11 + $0x70] sm:$0xff]
    %v639 = vld [vmem:[#allocation11 + $0x78] sm:$0xff]
    %v640 = vld [vmem:[#allocation11 + $0x80] sm:$0xff]
    %v641 = vld [vmem:[#allocation11 + $0x88] sm:$0xff]
    %v642 = vld [vmem:[#allocation11 + $0x90] sm:$0xff]
    %v643 = vld [vmem:[#allocation11 + $0x98] sm:$0xff]
    %v644 = vld [vmem:[#allocation11 + $0xa0] sm:$0xff]
    %v645 = vld [vmem:[#allocation11 + $0xa8] sm:$0xff]
    %v646 = vld [vmem:[#allocation11 + $0xb0] sm:$0xff]
    %v647 = vld [vmem:[#allocation11 + $0xb8] sm:$0xff]
    %v648 = vld [vmem:[#allocation11 + $0xc0] sm:$0xff]
    %v649 = vld [vmem:[#allocation11 + $0xc8] sm:$0xff]
    %v650 = vld [vmem:[#allocation11 + $0xd0] sm:$0xff]
    %v651 = vld [vmem:[#allocation11 + $0xd8] sm:$0xff]
    %v652 = vld [vmem:[#allocation11 + $0xe0] sm:$0xff]
    %v653 = vld [vmem:[#allocation11 + $0xe8] sm:$0xff]
    %v654 = vld [vmem:[#allocation11 + $0xf0] sm:$0xff]
    %v655 = vld [vmem:[#allocation11 + $0xf8] sm:$0xff]
    %v656 = vld [vmem:[#allocation11 + $0x100] sm:$0xff]
    %v657 = vld [vmem:[#allocation11 + $0x108] sm:$0xff]
    %v658 = vld [vmem:[#allocation11 + $0x110] sm:$0xff]
    %v659 = vld [vmem:[#allocation11 + $0x118] sm:$0xff]
    %v660 = vld [vmem:[#allocation11 + $0x120] sm:$0xff]
    %v661 = vld [vmem:[#allocation11 + $0x128] sm:$0xff]
    %v662 = vld [vmem:[#allocation11 + $0x130] sm:$0xff]
    %v663 = vld [vmem:[#allocation11 + $0x138] sm:$0xff]
    %v664 = vld [vmem:[#allocation11 + $0x140] sm:$0xff]
    %v665 = vld [vmem:[#allocation11 + $0x148] sm:$0xff]
    %v666 = vld [vmem:[#allocation11 + $0x150] sm:$0xff]
    %v667 = vld [vmem:[#allocation11 + $0x158] sm:$0xff]
    %v668 = vld [vmem:[#allocation11 + $0x160] sm:$0xff]
    %v669 = vld [vmem:[#allocation11 + $0x168] sm:$0xff]
    %v670 = vld [vmem:[#allocation11 + $0x170] sm:$0xff]
    %v671 = vld [vmem:[#allocation11 + $0x178] sm:$0xff]
    %v672 = vld [vmem:[#allocation11 + $0x180] sm:$0xff]
    %v673 = vld [vmem:[#allocation11 + $0x188] sm:$0xff]
    %v674 = vld [vmem:[#allocation11 + $0x190] sm:$0xff]
    %v675 = vld [vmem:[#allocation11 + $0x198] sm:$0xff]
    %v676 = vld [vmem:[#allocation11 + $0x1a0] sm:$0xff]
    %v677 = vld [vmem:[#allocation11 + $0x1a8] sm:$0xff]
    %v678 = vld [vmem:[#allocation11 + $0x1b0] sm:$0xff]
    %v679 = vld [vmem:[#allocation11 + $0x1b8] sm:$0xff]
    %v680 = vld [vmem:[#allocation11 + $0x1c0] sm:$0xff]
    %v681 = vld [vmem:[#allocation11 + $0x1c8] sm:$0xff]
    %v682 = vld [vmem:[#allocation11 + $0x1d0] sm:$0xff]
    %v683 = vld [vmem:[#allocation11 + $0x1d8] sm:$0xff]
    %v684 = vld [vmem:[#allocation11 + $0x1e0] sm:$0xff]
    %v685 = vld [vmem:[#allocation11 + $0x1e8] sm:$0xff]
    %v686 = vld [vmem:[#allocation11 + $0x1f0] sm:$0xff]
    %v687 = vld [vmem:[#allocation11 + $0x1f8] sm:$0xff]
    %v688 = vld [vmem:[#allocation13] sm:$0x3]
    %v690 = vlaneseq
    %v691 = vshrl.u32 %v690, 7
    %v692 = vsub.s32 0, %v691
    %v693 = vrot.slane %v688, %v692
    %v694 = vlaneseq
    %v695 = vshrl.u32 %v694, 7
    %v696 = vsub.s32 1, %v695
    %v697 = vrot.slane %v688, %v696
    %700 = vmatprep.subr.mxu0 %v625
    %701 = vmatpush1.msra.mxu0 %v624
    %702 = vmatprep.subr.mxu0 %v627
    %703 = vmatpush1.msra.mxu0 %v626
    %704 = vmatprep.subr.mxu0 %v629
    %705 = vmatpush1.msra.mxu0 %v628
    %706 = vmatprep.subr.mxu0 %v631
    %707 = vmatpush1.msra.mxu0 %v630
    %708 = vmatprep.subr.mxu0 %v633
    %709 = vmatpush1.msra.mxu0 %v632
    %710 = vmatprep.subr.mxu0 %v635
    %711 = vmatpush1.msra.mxu0 %v634
    %712 = vmatprep.subr.mxu0 %v637
    %713 = vmatpush1.msra.mxu0 %v636
    %714 = vmatprep.subr.mxu0 %v639
    %715 = vmatpush1.msra.mxu0 %v638
    %716 = vmatprep.subr.mxu0 %v641
    %717 = vmatpush1.msra.mxu0 %v640
    %718 = vmatprep.subr.mxu0 %v643
    %719 = vmatpush1.msra.mxu0 %v642
    %720 = vmatprep.subr.mxu0 %v645
    %721 = vmatpush1.msra.mxu0 %v644
    %722 = vmatprep.subr.mxu0 %v647
    %723 = vmatpush1.msra.mxu0 %v646
    %724 = vmatprep.subr.mxu0 %v649
    %725 = vmatpush1.msra.mxu0 %v648
    %726 = vmatprep.subr.mxu0 %v651
    %727 = vmatpush1.msra.mxu0 %v650
    %728 = vmatprep.subr.mxu0 %v653
    %729 = vmatpush1.msra.mxu0 %v652
    %730 = vmatprep.subr.mxu0 %v655
    %731 = vmatpush1.msra.mxu0 %v654
    %732 = vmatprep.subr.mxu0 %v657
    %733 = vmatpush1.msra.mxu0 %v656
    %734 = vmatprep.subr.mxu0 %v659
    %735 = vmatpush1.msra.mxu0 %v658
    %736 = vmatprep.subr.mxu0 %v661
    %737 = vmatpush1.msra.mxu0 %v660
    %738 = vmatprep.subr.mxu0 %v663
    %739 = vmatpush1.msra.mxu0 %v662
    %740 = vmatprep.subr.mxu0 %v665
    %741 = vmatpush1.msra.mxu0 %v664
    %742 = vmatprep.subr.mxu0 %v667
    %743 = vmatpush1.msra.mxu0 %v666
    %744 = vmatprep.subr.mxu0 %v669
    %745 = vmatpush1.msra.mxu0 %v668
    %746 = vmatprep.subr.mxu0 %v671
    %747 = vmatpush1.msra.mxu0 %v670
    %748 = vmatprep.subr.mxu0 %v673
    %749 = vmatpush1.msra.mxu0 %v672
    %750 = vmatprep.subr.mxu0 %v675
    %751 = vmatpush1.msra.mxu0 %v674
    %752 = vmatprep.subr.mxu0 %v677
    %753 = vmatpush1.msra.mxu0 %v676
    %754 = vmatprep.subr.mxu0 %v679
    %755 = vmatpush1.msra.mxu0 %v678
    %756 = vmatprep.subr.mxu0 %v681
    %757 = vmatpush1.msra.mxu0 %v680
    %758 = vmatprep.subr.mxu0 %v683
    %759 = vmatpush1.msra.mxu0 %v682
    %760 = vmatprep.subr.mxu0 %v685
    %761 = vmatpush1.msra.mxu0 %v684
    %762 = vmatprep.subr.mxu0 %v687
    %763 = vmatpush1.msra.mxu0 %v686
    %764 = vmatprep.mubr.f32.mxu0 %v623
    %765 = vmatmul.mubr.f32.gmra.mrb[0].mxu0 %v622
    %v766 = vpop.f32.mrb[0].mxu0
    %v767 = vadd.f32 %v693, %v766
    %v768 = vpop.f32.mrb[0].mxu0
    %v769 = vadd.f32 %v697, %v768
    %770 = vdwg.mxu0
    %v771 = vld [vmem:[#allocation14] sm:$0xff]
    %v772 = vld [vmem:[#allocation14 + $0x8] sm:$0xff]
    %v773 = vld [vmem:[#allocation14 + $0x10] sm:$0xff]
    %v774 = vld [vmem:[#allocation14 + $0x18] sm:$0xff]
    %v775 = vld [vmem:[#allocation14 + $0x20] sm:$0xff]
    %v776 = vld [vmem:[#allocation14 + $0x28] sm:$0xff]
    %v777 = vld [vmem:[#allocation14 + $0x30] sm:$0xff]
    %v778 = vld [vmem:[#allocation14 + $0x38] sm:$0xff]
    %v779 = vld [vmem:[#allocation14 + $0x40] sm:$0xff]
    %v780 = vld [vmem:[#allocation14 + $0x48] sm:$0xff]
    %v781 = vld [vmem:[#allocation14 + $0x50] sm:$0xff]
    %v782 = vld [vmem:[#allocation14 + $0x58] sm:$0xff]
    %v783 = vld [vmem:[#allocation14 + $0x60] sm:$0xff]
    %v784 = vld [vmem:[#allocation14 + $0x68] sm:$0xff]
    %v785 = vld [vmem:[#allocation14 + $0x70] sm:$0xff]
    %v786 = vld [vmem:[#allocation14 + $0x78] sm:$0xff]
    %v787 = vld [vmem:[#allocation14 + $0x80] sm:$0xff]
    %v788 = vld [vmem:[#allocation14 + $0x88] sm:$0xff]
    %v789 = vld [vmem:[#allocation14 + $0x90] sm:$0xff]
    %v790 = vld [vmem:[#allocation14 + $0x98] sm:$0xff]
    %v791 = vld [vmem:[#allocation14 + $0xa0] sm:$0xff]
    %v792 = vld [vmem:[#allocation14 + $0xa8] sm:$0xff]
    %v793 = vld [vmem:[#allocation14 + $0xb0] sm:$0xff]
    %v794 = vld [vmem:[#allocation14 + $0xb8] sm:$0xff]
    %v795 = vld [vmem:[#allocation14 + $0xc0] sm:$0xff]
    %v796 = vld [vmem:[#allocation14 + $0xc8] sm:$0xff]
    %v797 = vld [vmem:[#allocation14 + $0xd0] sm:$0xff]
    %v798 = vld [vmem:[#allocation14 + $0xd8] sm:$0xff]
    %v799 = vld [vmem:[#allocation14 + $0xe0] sm:$0xff]
    %v800 = vld [vmem:[#allocation14 + $0xe8] sm:$0xff]
    %v801 = vld [vmem:[#allocation14 + $0xf0] sm:$0xff]
    %v802 = vld [vmem:[#allocation14 + $0xf8] sm:$0xff]
    %v803 = vld [vmem:[#allocation14 + $0x100] sm:$0xff]
    %v804 = vld [vmem:[#allocation14 + $0x108] sm:$0xff]
    %v805 = vld [vmem:[#allocation14 + $0x110] sm:$0xff]
    %v806 = vld [vmem:[#allocation14 + $0x118] sm:$0xff]
    %v807 = vld [vmem:[#allocation14 + $0x120] sm:$0xff]
    %v808 = vld [vmem:[#allocation14 + $0x128] sm:$0xff]
    %v809 = vld [vmem:[#allocation14 + $0x130] sm:$0xff]
    %v810 = vld [vmem:[#allocation14 + $0x138] sm:$0xff]
    %v811 = vld [vmem:[#allocation14 + $0x140] sm:$0xff]
    %v812 = vld [vmem:[#allocation14 + $0x148] sm:$0xff]
    %v813 = vld [vmem:[#allocation14 + $0x150] sm:$0xff]
    %v814 = vld [vmem:[#allocation14 + $0x158] sm:$0xff]
    %v815 = vld [vmem:[#allocation14 + $0x160] sm:$0xff]
    %v816 = vld [vmem:[#allocation14 + $0x168] sm:$0xff]
    %v817 = vld [vmem:[#allocation14 + $0x170] sm:$0xff]
    %v818 = vld [vmem:[#allocation14 + $0x178] sm:$0xff]
    %v819 = vld [vmem:[#allocation14 + $0x180] sm:$0xff]
    %v820 = vld [vmem:[#allocation14 + $0x188] sm:$0xff]
    %v821 = vld [vmem:[#allocation14 + $0x190] sm:$0xff]
    %v822 = vld [vmem:[#allocation14 + $0x198] sm:$0xff]
    %v823 = vld [vmem:[#allocation14 + $0x1a0] sm:$0xff]
    %v824 = vld [vmem:[#allocation14 + $0x1a8] sm:$0xff]
    %v825 = vld [vmem:[#allocation14 + $0x1b0] sm:$0xff]
    %v826 = vld [vmem:[#allocation14 + $0x1b8] sm:$0xff]
    %v827 = vld [vmem:[#allocation14 + $0x1c0] sm:$0xff]
    %v828 = vld [vmem:[#allocation14 + $0x1c8] sm:$0xff]
    %v829 = vld [vmem:[#allocation14 + $0x1d0] sm:$0xff]
    %v830 = vld [vmem:[#allocation14 + $0x1d8] sm:$0xff]
    %v831 = vld [vmem:[#allocation14 + $0x1e0] sm:$0xff]
    %v832 = vld [vmem:[#allocation14 + $0x1e8] sm:$0xff]
    %v833 = vld [vmem:[#allocation14 + $0x1f0] sm:$0xff]
    %v834 = vld [vmem:[#allocation14 + $0x1f8] sm:$0xff]
    %v835 = vld [vmem:[#allocation14 + $0x200] sm:$0xff]
    %v836 = vld [vmem:[#allocation14 + $0x208] sm:$0xff]
    %v837 = vld [vmem:[#allocation14 + $0x210] sm:$0xff]
    %v838 = vld [vmem:[#allocation14 + $0x218] sm:$0xff]
    %v839 = vld [vmem:[#allocation14 + $0x220] sm:$0xff]
    %v840 = vld [vmem:[#allocation14 + $0x228] sm:$0xff]
    %v841 = vld [vmem:[#allocation14 + $0x230] sm:$0xff]
    %v842 = vld [vmem:[#allocation14 + $0x238] sm:$0xff]
    %v843 = vld [vmem:[#allocation14 + $0x240] sm:$0xff]
    %v844 = vld [vmem:[#allocation14 + $0x248] sm:$0xff]
    %v845 = vld [vmem:[#allocation14 + $0x250] sm:$0xff]
    %v846 = vld [vmem:[#allocation14 + $0x258] sm:$0xff]
    %v847 = vld [vmem:[#allocation14 + $0x260] sm:$0xff]
    %v848 = vld [vmem:[#allocation14 + $0x268] sm:$0xff]
    %v849 = vld [vmem:[#allocation14 + $0x270] sm:$0xff]
    %v850 = vld [vmem:[#allocation14 + $0x278] sm:$0xff]
    %v851 = vld [vmem:[#allocation14 + $0x280] sm:$0xff]
    %v852 = vld [vmem:[#allocation14 + $0x288] sm:$0xff]
    %v853 = vld [vmem:[#allocation14 + $0x290] sm:$0xff]
    %v854 = vld [vmem:[#allocation14 + $0x298] sm:$0xff]
    %v855 = vld [vmem:[#allocation14 + $0x2a0] sm:$0xff]
    %v856 = vld [vmem:[#allocation14 + $0x2a8] sm:$0xff]
    %v857 = vld [vmem:[#allocation14 + $0x2b0] sm:$0xff]
    %v858 = vld [vmem:[#allocation14 + $0x2b8] sm:$0xff]
    %v859 = vld [vmem:[#allocation14 + $0x2c0] sm:$0xff]
    %v860 = vld [vmem:[#allocation14 + $0x2c8] sm:$0xff]
    %v861 = vld [vmem:[#allocation14 + $0x2d0] sm:$0xff]
    %v862 = vld [vmem:[#allocation14 + $0x2d8] sm:$0xff]
    %v863 = vld [vmem:[#allocation14 + $0x2e0] sm:$0xff]
    %v864 = vld [vmem:[#allocation14 + $0x2e8] sm:$0xff]
    %v865 = vld [vmem:[#allocation14 + $0x2f0] sm:$0xff]
    %v866 = vld [vmem:[#allocation14 + $0x2f8] sm:$0xff]
    %v867 = vld [vmem:[#allocation14 + $0x300] sm:$0xff]
    %v868 = vld [vmem:[#allocation14 + $0x308] sm:$0xff]
    %v869 = vld [vmem:[#allocation14 + $0x310] sm:$0xff]
    %v870 = vld [vmem:[#allocation14 + $0x318] sm:$0xff]
    %v871 = vld [vmem:[#allocation14 + $0x320] sm:$0xff]
    %v872 = vld [vmem:[#allocation14 + $0x328] sm:$0xff]
    %v873 = vld [vmem:[#allocation14 + $0x330] sm:$0xff]
    %v874 = vld [vmem:[#allocation14 + $0x338] sm:$0xff]
    %v875 = vld [vmem:[#allocation14 + $0x340] sm:$0xff]
    %v876 = vld [vmem:[#allocation14 + $0x348] sm:$0xff]
    %v877 = vld [vmem:[#allocation14 + $0x350] sm:$0xff]
    %v878 = vld [vmem:[#allocation14 + $0x358] sm:$0xff]
    %v879 = vld [vmem:[#allocation14 + $0x360] sm:$0xff]
    %v880 = vld [vmem:[#allocation14 + $0x368] sm:$0xff]
    %v881 = vld [vmem:[#allocation14 + $0x370] sm:$0xff]
    %v882 = vld [vmem:[#allocation14 + $0x378] sm:$0xff]
    %v883 = vld [vmem:[#allocation14 + $0x380] sm:$0xff]
    %v884 = vld [vmem:[#allocation14 + $0x388] sm:$0xff]
    %v885 = vld [vmem:[#allocation14 + $0x390] sm:$0xff]
    %v886 = vld [vmem:[#allocation14 + $0x398] sm:$0xff]
    %v887 = vld [vmem:[#allocation14 + $0x3a0] sm:$0xff]
    %v888 = vld [vmem:[#allocation14 + $0x3a8] sm:$0xff]
    %v889 = vld [vmem:[#allocation14 + $0x3b0] sm:$0xff]
    %v890 = vld [vmem:[#allocation14 + $0x3b8] sm:$0xff]
    %v891 = vld [vmem:[#allocation14 + $0x3c0] sm:$0xff]
    %v892 = vld [vmem:[#allocation14 + $0x3c8] sm:$0xff]
    %v893 = vld [vmem:[#allocation14 + $0x3d0] sm:$0xff]
    %v894 = vld [vmem:[#allocation14 + $0x3d8] sm:$0xff]
    %v895 = vld [vmem:[#allocation14 + $0x3e0] sm:$0xff]
    %v896 = vld [vmem:[#allocation14 + $0x3e8] sm:$0xff]
    %v897 = vld [vmem:[#allocation14 + $0x3f0] sm:$0xff]
    %v898 = vld [vmem:[#allocation14 + $0x3f8] sm:$0xff]
    %v899 = vld [vmem:[#allocation14 + $0x400] sm:$0xff]
    %v900 = vld [vmem:[#allocation14 + $0x408] sm:$0xff]
    %v901 = vld [vmem:[#allocation14 + $0x410] sm:$0xff]
    %v902 = vld [vmem:[#allocation14 + $0x418] sm:$0xff]
    %v903 = vld [vmem:[#allocation14 + $0x420] sm:$0xff]
    %v904 = vld [vmem:[#allocation14 + $0x428] sm:$0xff]
    %v905 = vld [vmem:[#allocation14 + $0x430] sm:$0xff]
    %v906 = vld [vmem:[#allocation14 + $0x438] sm:$0xff]
    %v907 = vld [vmem:[#allocation14 + $0x440] sm:$0xff]
    %v908 = vld [vmem:[#allocation14 + $0x448] sm:$0xff]
    %v909 = vld [vmem:[#allocation14 + $0x450] sm:$0xff]
    %v910 = vld [vmem:[#allocation14 + $0x458] sm:$0xff]
    %v911 = vld [vmem:[#allocation14 + $0x460] sm:$0xff]
    %v912 = vld [vmem:[#allocation14 + $0x468] sm:$0xff]
    %v913 = vld [vmem:[#allocation14 + $0x470] sm:$0xff]
    %v914 = vld [vmem:[#allocation14 + $0x478] sm:$0xff]
    %v915 = vld [vmem:[#allocation14 + $0x480] sm:$0xff]
    %v916 = vld [vmem:[#allocation14 + $0x488] sm:$0xff]
    %v917 = vld [vmem:[#allocation14 + $0x490] sm:$0xff]
    %v918 = vld [vmem:[#allocation14 + $0x498] sm:$0xff]
    %v919 = vld [vmem:[#allocation14 + $0x4a0] sm:$0xff]
    %v920 = vld [vmem:[#allocation14 + $0x4a8] sm:$0xff]
    %v921 = vld [vmem:[#allocation14 + $0x4b0] sm:$0xff]
    %v922 = vld [vmem:[#allocation14 + $0x4b8] sm:$0xff]
    %v923 = vld [vmem:[#allocation14 + $0x4c0] sm:$0xff]
    %v924 = vld [vmem:[#allocation14 + $0x4c8] sm:$0xff]
    %v925 = vld [vmem:[#allocation14 + $0x4d0] sm:$0xff]
    %v926 = vld [vmem:[#allocation14 + $0x4d8] sm:$0xff]
    %v927 = vld [vmem:[#allocation14 + $0x4e0] sm:$0xff]
    %v928 = vld [vmem:[#allocation14 + $0x4e8] sm:$0xff]
    %v929 = vld [vmem:[#allocation14 + $0x4f0] sm:$0xff]
    %v930 = vld [vmem:[#allocation14 + $0x4f8] sm:$0xff]
    %v931 = vld [vmem:[#allocation14 + $0x500] sm:$0xff]
    %v932 = vld [vmem:[#allocation14 + $0x508] sm:$0xff]
    %v933 = vld [vmem:[#allocation14 + $0x510] sm:$0xff]
    %v934 = vld [vmem:[#allocation14 + $0x518] sm:$0xff]
    %v935 = vld [vmem:[#allocation14 + $0x520] sm:$0xff]
    %v936 = vld [vmem:[#allocation14 + $0x528] sm:$0xff]
    %v937 = vld [vmem:[#allocation14 + $0x530] sm:$0xff]
    %v938 = vld [vmem:[#allocation14 + $0x538] sm:$0xff]
    %v939 = vld [vmem:[#allocation14 + $0x540] sm:$0xff]
    %v940 = vld [vmem:[#allocation14 + $0x548] sm:$0xff]
    %v941 = vld [vmem:[#allocation14 + $0x550] sm:$0xff]
    %v942 = vld [vmem:[#allocation14 + $0x558] sm:$0xff]
    %v943 = vld [vmem:[#allocation14 + $0x560] sm:$0xff]
    %v944 = vld [vmem:[#allocation14 + $0x568] sm:$0xff]
    %v945 = vld [vmem:[#allocation14 + $0x570] sm:$0xff]
    %v946 = vld [vmem:[#allocation14 + $0x578] sm:$0xff]
    %v947 = vld [vmem:[#allocation14 + $0x580] sm:$0xff]
    %v948 = vld [vmem:[#allocation14 + $0x588] sm:$0xff]
    %v949 = vld [vmem:[#allocation14 + $0x590] sm:$0xff]
    %v950 = vld [vmem:[#allocation14 + $0x598] sm:$0xff]
    %v951 = vld [vmem:[#allocation14 + $0x5a0] sm:$0xff]
    %v952 = vld [vmem:[#allocation14 + $0x5a8] sm:$0xff]
    %v953 = vld [vmem:[#allocation14 + $0x5b0] sm:$0xff]
    %v954 = vld [vmem:[#allocation14 + $0x5b8] sm:$0xff]
    %v955 = vld [vmem:[#allocation14 + $0x5c0] sm:$0xff]
    %v956 = vld [vmem:[#allocation14 + $0x5c8] sm:$0xff]
    %v957 = vld [vmem:[#allocation14 + $0x5d0] sm:$0xff]
    %v958 = vld [vmem:[#allocation14 + $0x5d8] sm:$0xff]
    %v959 = vld [vmem:[#allocation14 + $0x5e0] sm:$0xff]
    %v960 = vld [vmem:[#allocation14 + $0x5e8] sm:$0xff]
    %v961 = vld [vmem:[#allocation14 + $0x5f0] sm:$0xff]
    %v962 = vld [vmem:[#allocation14 + $0x5f8] sm:$0xff]
    %v963 = vld [vmem:[#allocation14 + $0x600] sm:$0xff]
    %v964 = vld [vmem:[#allocation14 + $0x608] sm:$0xff]
    %v965 = vld [vmem:[#allocation14 + $0x610] sm:$0xff]
    %v966 = vld [vmem:[#allocation14 + $0x618] sm:$0xff]
    %v967 = vld [vmem:[#allocation14 + $0x620] sm:$0xff]
    %v968 = vld [vmem:[#allocation14 + $0x628] sm:$0xff]
    %v969 = vld [vmem:[#allocation14 + $0x630] sm:$0xff]
    %v970 = vld [vmem:[#allocation14 + $0x638] sm:$0xff]
    %v971 = vld [vmem:[#allocation14 + $0x640] sm:$0xff]
    %v972 = vld [vmem:[#allocation14 + $0x648] sm:$0xff]
    %v973 = vld [vmem:[#allocation14 + $0x650] sm:$0xff]
    %v974 = vld [vmem:[#allocation14 + $0x658] sm:$0xff]
    %v975 = vld [vmem:[#allocation14 + $0x660] sm:$0xff]
    %v976 = vld [vmem:[#allocation14 + $0x668] sm:$0xff]
    %v977 = vld [vmem:[#allocation14 + $0x670] sm:$0xff]
    %v978 = vld [vmem:[#allocation14 + $0x678] sm:$0xff]
    %v979 = vld [vmem:[#allocation14 + $0x680] sm:$0xff]
    %v980 = vld [vmem:[#allocation14 + $0x688] sm:$0xff]
    %v981 = vld [vmem:[#allocation14 + $0x690] sm:$0xff]
    %v982 = vld [vmem:[#allocation14 + $0x698] sm:$0xff]
    %v983 = vld [vmem:[#allocation14 + $0x6a0] sm:$0xff]
    %v984 = vld [vmem:[#allocation14 + $0x6a8] sm:$0xff]
    %v985 = vld [vmem:[#allocation14 + $0x6b0] sm:$0xff]
    %v986 = vld [vmem:[#allocation14 + $0x6b8] sm:$0xff]
    %v987 = vld [vmem:[#allocation14 + $0x6c0] sm:$0xff]
    %v988 = vld [vmem:[#allocation14 + $0x6c8] sm:$0xff]
    %v989 = vld [vmem:[#allocation14 + $0x6d0] sm:$0xff]
    %v990 = vld [vmem:[#allocation14 + $0x6d8] sm:$0xff]
    %v991 = vld [vmem:[#allocation14 + $0x6e0] sm:$0xff]
    %v992 = vld [vmem:[#allocation14 + $0x6e8] sm:$0xff]
    %v993 = vld [vmem:[#allocation14 + $0x6f0] sm:$0xff]
    %v994 = vld [vmem:[#allocation14 + $0x6f8] sm:$0xff]
    %v995 = vld [vmem:[#allocation14 + $0x700] sm:$0xff]
    %v996 = vld [vmem:[#allocation14 + $0x708] sm:$0xff]
    %v997 = vld [vmem:[#allocation14 + $0x710] sm:$0xff]
    %v998 = vld [vmem:[#allocation14 + $0x718] sm:$0xff]
    %v999 = vld [vmem:[#allocation14 + $0x720] sm:$0xff]
    %v1000 = vld [vmem:[#allocation14 + $0x728] sm:$0xff]
    %v1001 = vld [vmem:[#allocation14 + $0x730] sm:$0xff]
    %v1002 = vld [vmem:[#allocation14 + $0x738] sm:$0xff]
    %v1003 = vld [vmem:[#allocation14 + $0x740] sm:$0xff]
    %v1004 = vld [vmem:[#allocation14 + $0x748] sm:$0xff]
    %v1005 = vld [vmem:[#allocation14 + $0x750] sm:$0xff]
    %v1006 = vld [vmem:[#allocation14 + $0x758] sm:$0xff]
    %v1007 = vld [vmem:[#allocation14 + $0x760] sm:$0xff]
    %v1008 = vld [vmem:[#allocation14 + $0x768] sm:$0xff]
    %v1009 = vld [vmem:[#allocation14 + $0x770] sm:$0xff]
    %v1010 = vld [vmem:[#allocation14 + $0x778] sm:$0xff]
    %v1011 = vld [vmem:[#allocation14 + $0x780] sm:$0xff]
    %v1012 = vld [vmem:[#allocation14 + $0x788] sm:$0xff]
    %v1013 = vld [vmem:[#allocation14 + $0x790] sm:$0xff]
    %v1014 = vld [vmem:[#allocation14 + $0x798] sm:$0xff]
    %v1015 = vld [vmem:[#allocation14 + $0x7a0] sm:$0xff]
    %v1016 = vld [vmem:[#allocation14 + $0x7a8] sm:$0xff]
    %v1017 = vld [vmem:[#allocation14 + $0x7b0] sm:$0xff]
    %v1018 = vld [vmem:[#allocation14 + $0x7b8] sm:$0xff]
    %v1019 = vld [vmem:[#allocation14 + $0x7c0] sm:$0xff]
    %v1020 = vld [vmem:[#allocation14 + $0x7c8] sm:$0xff]
    %v1021 = vld [vmem:[#allocation14 + $0x7d0] sm:$0xff]
    %v1022 = vld [vmem:[#allocation14 + $0x7d8] sm:$0xff]
    %v1023 = vld [vmem:[#allocation14 + $0x7e0] sm:$0xff]
    %v1024 = vld [vmem:[#allocation14 + $0x7e8] sm:$0xff]
    %v1025 = vld [vmem:[#allocation14 + $0x7f0] sm:$0xff]
    %v1026 = vld [vmem:[#allocation14 + $0x7f8] sm:$0xff]
    %v1027 = vld [vmem:[#allocation14 + $0x800] sm:$0xff]
    %v1028 = vld [vmem:[#allocation14 + $0x808] sm:$0xff]
    %v1029 = vld [vmem:[#allocation14 + $0x810] sm:$0xff]
    %v1030 = vld [vmem:[#allocation14 + $0x818] sm:$0xff]
    %v1031 = vld [vmem:[#allocation14 + $0x820] sm:$0xff]
    %v1032 = vld [vmem:[#allocation14 + $0x828] sm:$0xff]
    %v1033 = vld [vmem:[#allocation14 + $0x830] sm:$0xff]
    %v1034 = vld [vmem:[#allocation14 + $0x838] sm:$0xff]
    %v1035 = vld [vmem:[#allocation14 + $0x840] sm:$0xff]
    %v1036 = vld [vmem:[#allocation14 + $0x848] sm:$0xff]
    %v1037 = vld [vmem:[#allocation14 + $0x850] sm:$0xff]
    %v1038 = vld [vmem:[#allocation14 + $0x858] sm:$0xff]
    %v1039 = vld [vmem:[#allocation14 + $0x860] sm:$0xff]
    %v1040 = vld [vmem:[#allocation14 + $0x868] sm:$0xff]
    %v1041 = vld [vmem:[#allocation14 + $0x870] sm:$0xff]
    %v1042 = vld [vmem:[#allocation14 + $0x878] sm:$0xff]
    %v1043 = vld [vmem:[#allocation14 + $0x880] sm:$0xff]
    %v1044 = vld [vmem:[#allocation14 + $0x888] sm:$0xff]
    %v1045 = vld [vmem:[#allocation14 + $0x890] sm:$0xff]
    %v1046 = vld [vmem:[#allocation14 + $0x898] sm:$0xff]
    %v1047 = vld [vmem:[#allocation14 + $0x8a0] sm:$0xff]
    %v1048 = vld [vmem:[#allocation14 + $0x8a8] sm:$0xff]
    %v1049 = vld [vmem:[#allocation14 + $0x8b0] sm:$0xff]
    %v1050 = vld [vmem:[#allocation14 + $0x8b8] sm:$0xff]
    %v1051 = vld [vmem:[#allocation14 + $0x8c0] sm:$0xff]
    %v1052 = vld [vmem:[#allocation14 + $0x8c8] sm:$0xff]
    %v1053 = vld [vmem:[#allocation14 + $0x8d0] sm:$0xff]
    %v1054 = vld [vmem:[#allocation14 + $0x8d8] sm:$0xff]
    %v1055 = vld [vmem:[#allocation14 + $0x8e0] sm:$0xff]
    %v1056 = vld [vmem:[#allocation14 + $0x8e8] sm:$0xff]
    %v1057 = vld [vmem:[#allocation14 + $0x8f0] sm:$0xff]
    %v1058 = vld [vmem:[#allocation14 + $0x8f8] sm:$0xff]
    %v1059 = vld [vmem:[#allocation14 + $0x900] sm:$0xff]
    %v1060 = vld [vmem:[#allocation14 + $0x908] sm:$0xff]
    %v1061 = vld [vmem:[#allocation14 + $0x910] sm:$0xff]
    %v1062 = vld [vmem:[#allocation14 + $0x918] sm:$0xff]
    %v1063 = vld [vmem:[#allocation14 + $0x920] sm:$0xff]
    %v1064 = vld [vmem:[#allocation14 + $0x928] sm:$0xff]
    %v1065 = vld [vmem:[#allocation14 + $0x930] sm:$0xff]
    %v1066 = vld [vmem:[#allocation14 + $0x938] sm:$0xff]
    %v1067 = vld [vmem:[#allocation14 + $0x940] sm:$0xff]
    %v1068 = vld [vmem:[#allocation14 + $0x948] sm:$0xff]
    %v1069 = vld [vmem:[#allocation14 + $0x950] sm:$0xff]
    %v1070 = vld [vmem:[#allocation14 + $0x958] sm:$0xff]
    %v1071 = vld [vmem:[#allocation14 + $0x960] sm:$0xff]
    %v1072 = vld [vmem:[#allocation14 + $0x968] sm:$0xff]
    %v1073 = vld [vmem:[#allocation14 + $0x970] sm:$0xff]
    %v1074 = vld [vmem:[#allocation14 + $0x978] sm:$0xff]
    %v1075 = vld [vmem:[#allocation14 + $0x980] sm:$0xff]
    %v1076 = vld [vmem:[#allocation14 + $0x988] sm:$0xff]
    %v1077 = vld [vmem:[#allocation14 + $0x990] sm:$0xff]
    %v1078 = vld [vmem:[#allocation14 + $0x998] sm:$0xff]
    %v1079 = vld [vmem:[#allocation14 + $0x9a0] sm:$0xff]
    %v1080 = vld [vmem:[#allocation14 + $0x9a8] sm:$0xff]
    %v1081 = vld [vmem:[#allocation14 + $0x9b0] sm:$0xff]
    %v1082 = vld [vmem:[#allocation14 + $0x9b8] sm:$0xff]
    %v1083 = vld [vmem:[#allocation14 + $0x9c0] sm:$0xff]
    %v1084 = vld [vmem:[#allocation14 + $0x9c8] sm:$0xff]
    %v1085 = vld [vmem:[#allocation14 + $0x9d0] sm:$0xff]
    %v1086 = vld [vmem:[#allocation14 + $0x9d8] sm:$0xff]
    %v1087 = vld [vmem:[#allocation14 + $0x9e0] sm:$0xff]
    %v1088 = vld [vmem:[#allocation14 + $0x9e8] sm:$0xff]
    %v1089 = vld [vmem:[#allocation14 + $0x9f0] sm:$0xff]
    %v1090 = vld [vmem:[#allocation14 + $0x9f8] sm:$0xff]
    %v1091 = vld [vmem:[#allocation14 + $0xa00] sm:$0xff]
    %v1092 = vld [vmem:[#allocation14 + $0xa08] sm:$0xff]
    %v1093 = vld [vmem:[#allocation14 + $0xa10] sm:$0xff]
    %v1094 = vld [vmem:[#allocation14 + $0xa18] sm:$0xff]
    %v1095 = vld [vmem:[#allocation14 + $0xa20] sm:$0xff]
    %v1096 = vld [vmem:[#allocation14 + $0xa28] sm:$0xff]
    %v1097 = vld [vmem:[#allocation14 + $0xa30] sm:$0xff]
    %v1098 = vld [vmem:[#allocation14 + $0xa38] sm:$0xff]
    %v1099 = vld [vmem:[#allocation14 + $0xa40] sm:$0xff]
    %v1100 = vld [vmem:[#allocation14 + $0xa48] sm:$0xff]
    %v1101 = vld [vmem:[#allocation14 + $0xa50] sm:$0xff]
    %v1102 = vld [vmem:[#allocation14 + $0xa58] sm:$0xff]
    %v1103 = vld [vmem:[#allocation14 + $0xa60] sm:$0xff]
    %v1104 = vld [vmem:[#allocation14 + $0xa68] sm:$0xff]
    %v1105 = vld [vmem:[#allocation14 + $0xa70] sm:$0xff]
    %v1106 = vld [vmem:[#allocation14 + $0xa78] sm:$0xff]
    %v1107 = vld [vmem:[#allocation14 + $0xa80] sm:$0xff]
    %v1108 = vld [vmem:[#allocation14 + $0xa88] sm:$0xff]
    %v1109 = vld [vmem:[#allocation14 + $0xa90] sm:$0xff]
    %v1110 = vld [vmem:[#allocation14 + $0xa98] sm:$0xff]
    %v1111 = vld [vmem:[#allocation14 + $0xaa0] sm:$0xff]
    %v1112 = vld [vmem:[#allocation14 + $0xaa8] sm:$0xff]
    %v1113 = vld [vmem:[#allocation14 + $0xab0] sm:$0xff]
    %v1114 = vld [vmem:[#allocation14 + $0xab8] sm:$0xff]
    %v1115 = vld [vmem:[#allocation14 + $0xac0] sm:$0xff]
    %v1116 = vld [vmem:[#allocation14 + $0xac8] sm:$0xff]
    %v1117 = vld [vmem:[#allocation14 + $0xad0] sm:$0xff]
    %v1118 = vld [vmem:[#allocation14 + $0xad8] sm:$0xff]
    %v1119 = vld [vmem:[#allocation14 + $0xae0] sm:$0xff]
    %v1120 = vld [vmem:[#allocation14 + $0xae8] sm:$0xff]
    %v1121 = vld [vmem:[#allocation14 + $0xaf0] sm:$0xff]
    %v1122 = vld [vmem:[#allocation14 + $0xaf8] sm:$0xff]
    %v1123 = vld [vmem:[#allocation14 + $0xb00] sm:$0xff]
    %v1124 = vld [vmem:[#allocation14 + $0xb08] sm:$0xff]
    %v1125 = vld [vmem:[#allocation14 + $0xb10] sm:$0xff]
    %v1126 = vld [vmem:[#allocation14 + $0xb18] sm:$0xff]
    %v1127 = vld [vmem:[#allocation14 + $0xb20] sm:$0xff]
    %v1128 = vld [vmem:[#allocation14 + $0xb28] sm:$0xff]
    %v1129 = vld [vmem:[#allocation14 + $0xb30] sm:$0xff]
    %v1130 = vld [vmem:[#allocation14 + $0xb38] sm:$0xff]
    %v1131 = vld [vmem:[#allocation14 + $0xb40] sm:$0xff]
    %v1132 = vld [vmem:[#allocation14 + $0xb48] sm:$0xff]
    %v1133 = vld [vmem:[#allocation14 + $0xb50] sm:$0xff]
    %v1134 = vld [vmem:[#allocation14 + $0xb58] sm:$0xff]
    %v1135 = vld [vmem:[#allocation14 + $0xb60] sm:$0xff]
    %v1136 = vld [vmem:[#allocation14 + $0xb68] sm:$0xff]
    %v1137 = vld [vmem:[#allocation14 + $0xb70] sm:$0xff]
    %v1138 = vld [vmem:[#allocation14 + $0xb78] sm:$0xff]
    %v1139 = vld [vmem:[#allocation14 + $0xb80] sm:$0xff]
    %v1140 = vld [vmem:[#allocation14 + $0xb88] sm:$0xff]
    %v1141 = vld [vmem:[#allocation14 + $0xb90] sm:$0xff]
    %v1142 = vld [vmem:[#allocation14 + $0xb98] sm:$0xff]
    %v1143 = vld [vmem:[#allocation14 + $0xba0] sm:$0xff]
    %v1144 = vld [vmem:[#allocation14 + $0xba8] sm:$0xff]
    %v1145 = vld [vmem:[#allocation14 + $0xbb0] sm:$0xff]
    %v1146 = vld [vmem:[#allocation14 + $0xbb8] sm:$0xff]
    %v1147 = vld [vmem:[#allocation14 + $0xbc0] sm:$0xff]
    %v1148 = vld [vmem:[#allocation14 + $0xbc8] sm:$0xff]
    %v1149 = vld [vmem:[#allocation14 + $0xbd0] sm:$0xff]
    %v1150 = vld [vmem:[#allocation14 + $0xbd8] sm:$0xff]
    %v1151 = vld [vmem:[#allocation14 + $0xbe0] sm:$0xff]
    %v1152 = vld [vmem:[#allocation14 + $0xbe8] sm:$0xff]
    %v1153 = vld [vmem:[#allocation14 + $0xbf0] sm:$0xff]
    %v1154 = vld [vmem:[#allocation14 + $0xbf8] sm:$0xff]
    %v1155 = vld [vmem:[#allocation16] sm:$0xf]
    %v1157 = vlaneseq
    %v1158 = vshrl.u32 %v1157, 7
    %v1159 = vsub.s32 0, %v1158
    %v1160 = vrot.slane %v1155, %v1159
    %v1161 = vlaneseq
    %v1162 = vshrl.u32 %v1161, 7
    %v1163 = vsub.s32 1, %v1162
    %v1164 = vrot.slane %v1155, %v1163
    %v1165 = vlaneseq
    %v1166 = vshrl.u32 %v1165, 7
    %v1167 = vsub.s32 2, %v1166
    %v1168 = vrot.slane %v1155, %v1167
    %v1169 = vlaneseq
    %v1170 = vshrl.u32 %v1169, 7
    %v1171 = vsub.s32 3, %v1170
    %v1172 = vrot.slane %v1155, %v1171
    %1177 = vmatprep.subr.mxu0 %v772
    %1178 = vmatpush1.msra.mxu0 %v771
    %1179 = vmatprep.subr.mxu0 %v776
    %1180 = vmatpush1.msra.mxu0 %v775
    %1181 = vmatprep.subr.mxu0 %v780
    %1182 = vmatpush1.msra.mxu0 %v779
    %1183 = vmatprep.subr.mxu0 %v784
    %1184 = vmatpush1.msra.mxu0 %v783
    %1185 = vmatprep.subr.mxu0 %v788
    %1186 = vmatpush1.msra.mxu0 %v787
    %1187 = vmatprep.subr.mxu0 %v792
    %1188 = vmatpush1.msra.mxu0 %v791
    %1189 = vmatprep.subr.mxu0 %v796
    %1190 = vmatpush1.msra.mxu0 %v795
    %1191 = vmatprep.subr.mxu0 %v800
    %1192 = vmatpush1.msra.mxu0 %v799
    %1193 = vmatprep.subr.mxu0 %v804
    %1194 = vmatpush1.msra.mxu0 %v803
    %1195 = vmatprep.subr.mxu0 %v808
    %1196 = vmatpush1.msra.mxu0 %v807
    %1197 = vmatprep.subr.mxu0 %v812
    %1198 = vmatpush1.msra.mxu0 %v811
    %1199 = vmatprep.subr.mxu0 %v816
    %1200 = vmatpush1.msra.mxu0 %v815
    %1201 = vmatprep.subr.mxu0 %v820
    %1202 = vmatpush1.msra.mxu0 %v819
    %1203 = vmatprep.subr.mxu0 %v824
    %1204 = vmatpush1.msra.mxu0 %v823
    %1205 = vmatprep.subr.mxu0 %v828
    %1206 = vmatpush1.msra.mxu0 %v827
    %1207 = vmatprep.subr.mxu0 %v832
    %1208 = vmatpush1.msra.mxu0 %v831
    %1209 = vmatprep.subr.mxu0 %v836
    %1210 = vmatpush1.msra.mxu0 %v835
    %1211 = vmatprep.subr.mxu0 %v840
    %1212 = vmatpush1.msra.mxu0 %v839
    %1213 = vmatprep.subr.mxu0 %v844
    %1214 = vmatpush1.msra.mxu0 %v843
    %1215 = vmatprep.subr.mxu0 %v848
    %1216 = vmatpush1.msra.mxu0 %v847
    %1217 = vmatprep.subr.mxu0 %v852
    %1218 = vmatpush1.msra.mxu0 %v851
    %1219 = vmatprep.subr.mxu0 %v856
    %1220 = vmatpush1.msra.mxu0 %v855
    %1221 = vmatprep.subr.mxu0 %v860
    %1222 = vmatpush1.msra.mxu0 %v859
    %1223 = vmatprep.subr.mxu0 %v864
    %1224 = vmatpush1.msra.mxu0 %v863
    %1225 = vmatprep.subr.mxu0 %v868
    %1226 = vmatpush1.msra.mxu0 %v867
    %1227 = vmatprep.subr.mxu0 %v872
    %1228 = vmatpush1.msra.mxu0 %v871
    %1229 = vmatprep.subr.mxu0 %v876
    %1230 = vmatpush1.msra.mxu0 %v875
    %1231 = vmatprep.subr.mxu0 %v880
    %1232 = vmatpush1.msra.mxu0 %v879
    %1233 = vmatprep.subr.mxu0 %v884
    %1234 = vmatpush1.msra.mxu0 %v883
    %1235 = vmatprep.subr.mxu0 %v888
    %1236 = vmatpush1.msra.mxu0 %v887
    %1237 = vmatprep.subr.mxu0 %v892
    %1238 = vmatpush1.msra.mxu0 %v891
    %1239 = vmatprep.subr.mxu0 %v896
    %1240 = vmatpush1.msra.mxu0 %v895
    %1241 = vmatprep.mubr.f32.mxu0 %v368
    %1242 = vmatmul.mubr.f32.gmra.mrb[0].mxu0 %v367
    %v1243 = vpop.f32.mrb[0].mxu0
    %v1244 = vadd.f32 %v1160, %v1243
    %v1245 = vpop.f32.mrb[0].mxu0
    %v1246 = vadd.f32 %v1164, %v1245
    %1247 = vdwg.mxu0
    %1248 = vmatprep.subr.mxu0 %v900
    %1249 = vmatpush1.msra.mxu0 %v899
    %1250 = vmatprep.subr.mxu0 %v904
    %1251 = vmatpush1.msra.mxu0 %v903
    %1252 = vmatprep.subr.mxu0 %v908
    %1253 = vmatpush1.msra.mxu0 %v907
    %1254 = vmatprep.subr.mxu0 %v912
    %1255 = vmatpush1.msra.mxu0 %v911
    %1256 = vmatprep.subr.mxu0 %v916
    %1257 = vmatpush1.msra.mxu0 %v915
    %1258 = vmatprep.subr.mxu0 %v920
    %1259 = vmatpush1.msra.mxu0 %v919
    %1260 = vmatprep.subr.mxu0 %v924
    %1261 = vmatpush1.msra.mxu0 %v923
    %1262 = vmatprep.subr.mxu0 %v928
    %1263 = vmatpush1.msra.mxu0 %v927
    %1264 = vmatprep.subr.mxu0 %v932
    %1265 = vmatpush1.msra.mxu0 %v931
    %1266 = vmatprep.subr.mxu0 %v936
    %1267 = vmatpush1.msra.mxu0 %v935
    %1268 = vmatprep.subr.mxu0 %v940
    %1269 = vmatpush1.msra.mxu0 %v939
    %1270 = vmatprep.subr.mxu0 %v944
    %1271 = vmatpush1.msra.mxu0 %v943
    %1272 = vmatprep.subr.mxu0 %v948
    %1273 = vmatpush1.msra.mxu0 %v947
    %1274 = vmatprep.subr.mxu0 %v952
    %1275 = vmatpush1.msra.mxu0 %v951
    %1276 = vmatprep.subr.mxu0 %v956
    %1277 = vmatpush1.msra.mxu0 %v955
    %1278 = vmatprep.subr.mxu0 %v960
    %1279 = vmatpush1.msra.mxu0 %v959
    %1280 = vmatprep.subr.mxu0 %v964
    %1281 = vmatpush1.msra.mxu0 %v963
    %1282 = vmatprep.subr.mxu0 %v968
    %1283 = vmatpush1.msra.mxu0 %v967
    %1284 = vmatprep.subr.mxu0 %v972
    %1285 = vmatpush1.msra.mxu0 %v971
    %1286 = vmatprep.subr.mxu0 %v976
    %1287 = vmatpush1.msra.mxu0 %v975
    %1288 = vmatprep.subr.mxu0 %v980
    %1289 = vmatpush1.msra.mxu0 %v979
    %1290 = vmatprep.subr.mxu0 %v984
    %1291 = vmatpush1.msra.mxu0 %v983
    %1292 = vmatprep.subr.mxu0 %v988
    %1293 = vmatpush1.msra.mxu0 %v987
    %1294 = vmatprep.subr.mxu0 %v992
    %1295 = vmatpush1.msra.mxu0 %v991
    %1296 = vmatprep.subr.mxu0 %v996
    %1297 = vmatpush1.msra.mxu0 %v995
    %1298 = vmatprep.subr.mxu0 %v1000
    %1299 = vmatpush1.msra.mxu0 %v999
    %1300 = vmatprep.subr.mxu0 %v1004
    %1301 = vmatpush1.msra.mxu0 %v1003
    %1302 = vmatprep.subr.mxu0 %v1008
    %1303 = vmatpush1.msra.mxu0 %v1007
    %1304 = vmatprep.subr.mxu0 %v1012
    %1305 = vmatpush1.msra.mxu0 %v1011
    %1306 = vmatprep.subr.mxu0 %v1016
    %1307 = vmatpush1.msra.mxu0 %v1015
    %1308 = vmatprep.subr.mxu0 %v1020
    %1309 = vmatpush1.msra.mxu0 %v1019
    %1310 = vmatprep.subr.mxu0 %v1024
    %1311 = vmatpush1.msra.mxu0 %v1023
    %1312 = vmatprep.mubr.f32.mxu0 %v370
    %1313 = vmatmul.mubr.f32.gmra.mrb[0].mxu0 %v369
    %v1314 = vpop.f32.mrb[0].mxu0
    %v1315 = vadd.f32 %v1244, %v1314
    %v1316 = vpop.f32.mrb[0].mxu0
    %v1317 = vadd.f32 %v1246, %v1316
    %1318 = vdwg.mxu0
    %1319 = vmatprep.subr.mxu0 %v1028
    %1320 = vmatpush1.msra.mxu0 %v1027
    %1321 = vmatprep.subr.mxu0 %v1032
    %1322 = vmatpush1.msra.mxu0 %v1031
    %1323 = vmatprep.subr.mxu0 %v1036
    %1324 = vmatpush1.msra.mxu0 %v1035
    %1325 = vmatprep.subr.mxu0 %v1040
    %1326 = vmatpush1.msra.mxu0 %v1039
    %1327 = vmatprep.subr.mxu0 %v1044
    %1328 = vmatpush1.msra.mxu0 %v1043
    %1329 = vmatprep.subr.mxu0 %v1048
    %1330 = vmatpush1.msra.mxu0 %v1047
    %1331 = vmatprep.subr.mxu0 %v1052
    %1332 = vmatpush1.msra.mxu0 %v1051
    %1333 = vmatprep.subr.mxu0 %v1056
    %1334 = vmatpush1.msra.mxu0 %v1055
    %1335 = vmatprep.subr.mxu0 %v1060
    %1336 = vmatpush1.msra.mxu0 %v1059
    %1337 = vmatprep.subr.mxu0 %v1064
    %1338 = vmatpush1.msra.mxu0 %v1063
    %1339 = vmatprep.subr.mxu0 %v1068
    %1340 = vmatpush1.msra.mxu0 %v1067
    %1341 = vmatprep.subr.mxu0 %v1072
    %1342 = vmatpush1.msra.mxu0 %v1071
    %1343 = vmatprep.subr.mxu0 %v1076
    %1344 = vmatpush1.msra.mxu0 %v1075
    %1345 = vmatprep.subr.mxu0 %v1080
    %1346 = vmatpush1.msra.mxu0 %v1079
    %1347 = vmatprep.subr.mxu0 %v1084
    %1348 = vmatpush1.msra.mxu0 %v1083
    %1349 = vmatprep.subr.mxu0 %v1088
    %1350 = vmatpush1.msra.mxu0 %v1087
    %1351 = vmatprep.subr.mxu0 %v1092
    %1352 = vmatpush1.msra.mxu0 %v1091
    %1353 = vmatprep.subr.mxu0 %v1096
    %1354 = vmatpush1.msra.mxu0 %v1095
    %1355 = vmatprep.subr.mxu0 %v1100
    %1356 = vmatpush1.msra.mxu0 %v1099
    %1357 = vmatprep.subr.mxu0 %v1104
    %1358 = vmatpush1.msra.mxu0 %v1103
    %1359 = vmatprep.subr.mxu0 %v1108
    %1360 = vmatpush1.msra.mxu0 %v1107
    %1361 = vmatprep.subr.mxu0 %v1112
    %1362 = vmatpush1.msra.mxu0 %v1111
    %1363 = vmatprep.subr.mxu0 %v1116
    %1364 = vmatpush1.msra.mxu0 %v1115
    %1365 = vmatprep.subr.mxu0 %v1120
    %1366 = vmatpush1.msra.mxu0 %v1119
    %1367 = vmatprep.subr.mxu0 %v1124
    %1368 = vmatpush1.msra.mxu0 %v1123
    %1369 = vmatprep.subr.mxu0 %v1128
    %1370 = vmatpush1.msra.mxu0 %v1127
    %1371 = vmatprep.subr.mxu0 %v1132
    %1372 = vmatpush1.msra.mxu0 %v1131
    %1373 = vmatprep.subr.mxu0 %v1136
    %1374 = vmatpush1.msra.mxu0 %v1135
    %1375 = vmatprep.subr.mxu0 %v1140
    %1376 = vmatpush1.msra.mxu0 %v1139
    %1377 = vmatprep.subr.mxu0 %v1144
    %1378 = vmatpush1.msra.mxu0 %v1143
    %1379 = vmatprep.subr.mxu0 %v1148
    %1380 = vmatpush1.msra.mxu0 %v1147
    %1381 = vmatprep.subr.mxu0 %v1152
    %1382 = vmatpush1.msra.mxu0 %v1151
    %1383 = vmatprep.mubr.f32.mxu0 %v372
    %1384 = vmatmul.mubr.f32.gmra.mrb[0].mxu0 %v371
    %v1385 = vpop.f32.mrb[0].mxu0
    %v1386 = vadd.f32 %v1315, %v1385
    %v1387 = vpop.f32.mrb[0].mxu0
    %v1388 = vadd.f32 %v1317, %v1387
    %1389 = vdwg.mxu0
    %1390 = vmatprep.subr.mxu0 %v774
    %1391 = vmatpush1.msra.mxu0 %v773
    %1392 = vmatprep.subr.mxu0 %v778
    %1393 = vmatpush1.msra.mxu0 %v777
    %1394 = vmatprep.subr.mxu0 %v782
    %1395 = vmatpush1.msra.mxu0 %v781
    %1396 = vmatprep.subr.mxu0 %v786
    %1397 = vmatpush1.msra.mxu0 %v785
    %1398 = vmatprep.subr.mxu0 %v790
    %1399 = vmatpush1.msra.mxu0 %v789
    %1400 = vmatprep.subr.mxu0 %v794
    %1401 = vmatpush1.msra.mxu0 %v793
    %1402 = vmatprep.subr.mxu0 %v798
    %1403 = vmatpush1.msra.mxu0 %v797
    %1404 = vmatprep.subr.mxu0 %v802
    %1405 = vmatpush1.msra.mxu0 %v801
    %1406 = vmatprep.subr.mxu0 %v806
    %1407 = vmatpush1.msra.mxu0 %v805
    %1408 = vmatprep.subr.mxu0 %v810
    %1409 = vmatpush1.msra.mxu0 %v809
    %1410 = vmatprep.subr.mxu0 %v814
    %1411 = vmatpush1.msra.mxu0 %v813
    %1412 = vmatprep.subr.mxu0 %v818
    %1413 = vmatpush1.msra.mxu0 %v817
    %1414 = vmatprep.subr.mxu0 %v822
    %1415 = vmatpush1.msra.mxu0 %v821
    %1416 = vmatprep.subr.mxu0 %v826
    %1417 = vmatpush1.msra.mxu0 %v825
    %1418 = vmatprep.subr.mxu0 %v830
    %1419 = vmatpush1.msra.mxu0 %v829
    %1420 = vmatprep.subr.mxu0 %v834
    %1421 = vmatpush1.msra.mxu0 %v833
    %1422 = vmatprep.subr.mxu0 %v838
    %1423 = vmatpush1.msra.mxu0 %v837
    %1424 = vmatprep.subr.mxu0 %v842
    %1425 = vmatpush1.msra.mxu0 %v841
    %1426 = vmatprep.subr.mxu0 %v846
    %1427 = vmatpush1.msra.mxu0 %v845
    %1428 = vmatprep.subr.mxu0 %v850
    %1429 = vmatpush1.msra.mxu0 %v849
    %1430 = vmatprep.subr.mxu0 %v854
    %1431 = vmatpush1.msra.mxu0 %v853
    %1432 = vmatprep.subr.mxu0 %v858
    %1433 = vmatpush1.msra.mxu0 %v857
    %1434 = vmatprep.subr.mxu0 %v862
    %1435 = vmatpush1.msra.mxu0 %v861
    %1436 = vmatprep.subr.mxu0 %v866
    %1437 = vmatpush1.msra.mxu0 %v865
    %1438 = vmatprep.subr.mxu0 %v870
    %1439 = vmatpush1.msra.mxu0 %v869
    %1440 = vmatprep.subr.mxu0 %v874
    %1441 = vmatpush1.msra.mxu0 %v873
    %1442 = vmatprep.subr.mxu0 %v878
    %1443 = vmatpush1.msra.mxu0 %v877
    %1444 = vmatprep.subr.mxu0 %v882
    %1445 = vmatpush1.msra.mxu0 %v881
    %1446 = vmatprep.subr.mxu0 %v886
    %1447 = vmatpush1.msra.mxu0 %v885
    %1448 = vmatprep.subr.mxu0 %v890
    %1449 = vmatpush1.msra.mxu0 %v889
    %1450 = vmatprep.subr.mxu0 %v894
    %1451 = vmatpush1.msra.mxu0 %v893
    %1452 = vmatprep.subr.mxu0 %v898
    %1453 = vmatpush1.msra.mxu0 %v897
    %1454 = vmatprep.mubr.f32.mxu0 %v368
    %1455 = vmatmul.mubr.f32.gmra.mrb[0].mxu0 %v367
    %v1456 = vpop.f32.mrb[0].mxu0
    %v1457 = vadd.f32 %v1168, %v1456
    %v1458 = vpop.f32.mrb[0].mxu0
    %v1459 = vadd.f32 %v1172, %v1458
    %1460 = vdwg.mxu0
    %1461 = vmatprep.subr.mxu0 %v902
    %1462 = vmatpush1.msra.mxu0 %v901
    %1463 = vmatprep.subr.mxu0 %v906
    %1464 = vmatpush1.msra.mxu0 %v905
    %1465 = vmatprep.subr.mxu0 %v910
    %1466 = vmatpush1.msra.mxu0 %v909
    %1467 = vmatprep.subr.mxu0 %v914
    %1468 = vmatpush1.msra.mxu0 %v913
    %1469 = vmatprep.subr.mxu0 %v918
    %1470 = vmatpush1.msra.mxu0 %v917
    %1471 = vmatprep.subr.mxu0 %v922
    %1472 = vmatpush1.msra.mxu0 %v921
    %1473 = vmatprep.subr.mxu0 %v926
    %1474 = vmatpush1.msra.mxu0 %v925
    %1475 = vmatprep.subr.mxu0 %v930
    %1476 = vmatpush1.msra.mxu0 %v929
    %1477 = vmatprep.subr.mxu0 %v934
    %1478 = vmatpush1.msra.mxu0 %v933
    %1479 = vmatprep.subr.mxu0 %v938
    %1480 = vmatpush1.msra.mxu0 %v937
    %1481 = vmatprep.subr.mxu0 %v942
    %1482 = vmatpush1.msra.mxu0 %v941
    %1483 = vmatprep.subr.mxu0 %v946
    %1484 = vmatpush1.msra.mxu0 %v945
    %1485 = vmatprep.subr.mxu0 %v950
    %1486 = vmatpush1.msra.mxu0 %v949
    %1487 = vmatprep.subr.mxu0 %v954
    %1488 = vmatpush1.msra.mxu0 %v953
    %1489 = vmatprep.subr.mxu0 %v958
    %1490 = vmatpush1.msra.mxu0 %v957
    %1491 = vmatprep.subr.mxu0 %v962
    %1492 = vmatpush1.msra.mxu0 %v961
    %1493 = vmatprep.subr.mxu0 %v966
    %1494 = vmatpush1.msra.mxu0 %v965
    %1495 = vmatprep.subr.mxu0 %v970
    %1496 = vmatpush1.msra.mxu0 %v969
    %1497 = vmatprep.subr.mxu0 %v974
    %1498 = vmatpush1.msra.mxu0 %v973
    %1499 = vmatprep.subr.mxu0 %v978
    %1500 = vmatpush1.msra.mxu0 %v977
    %1501 = vmatprep.subr.mxu0 %v982
    %1502 = vmatpush1.msra.mxu0 %v981
    %1503 = vmatprep.subr.mxu0 %v986
    %1504 = vmatpush1.msra.mxu0 %v985
    %1505 = vmatprep.subr.mxu0 %v990
    %1506 = vmatpush1.msra.mxu0 %v989
    %1507 = vmatprep.subr.mxu0 %v994
    %1508 = vmatpush1.msra.mxu0 %v993
    %1509 = vmatprep.subr.mxu0 %v998
    %1510 = vmatpush1.msra.mxu0 %v997
    %1511 = vmatprep.subr.mxu0 %v1002
    %1512 = vmatpush1.msra.mxu0 %v1001
    %1513 = vmatprep.subr.mxu0 %v1006
    %1514 = vmatpush1.msra.mxu0 %v1005
    %1515 = vmatprep.subr.mxu0 %v1010
    %1516 = vmatpush1.msra.mxu0 %v1009
    %1517 = vmatprep.subr.mxu0 %v1014
    %1518 = vmatpush1.msra.mxu0 %v1013
    %1519 = vmatprep.subr.mxu0 %v1018
    %1520 = vmatpush1.msra.mxu0 %v1017
    %1521 = vmatprep.subr.mxu0 %v1022
    %1522 = vmatpush1.msra.mxu0 %v1021
    %1523 = vmatprep.subr.mxu0 %v1026
    %1524 = vmatpush1.msra.mxu0 %v1025
    %1525 = vmatprep.mubr.f32.mxu0 %v370
    %1526 = vmatmul.mubr.f32.gmra.mrb[0].mxu0 %v369
    %v1527 = vpop.f32.mrb[0].mxu0
    %v1528 = vadd.f32 %v1457, %v1527
    %v1529 = vpop.f32.mrb[0].mxu0
    %v1530 = vadd.f32 %v1459, %v1529
    %1531 = vdwg.mxu0
    %1532 = vmatprep.subr.mxu0 %v1030
    %1533 = vmatpush1.msra.mxu0 %v1029
    %1534 = vmatprep.subr.mxu0 %v1034
    %1535 = vmatpush1.msra.mxu0 %v1033
    %1536 = vmatprep.subr.mxu0 %v1038
    %1537 = vmatpush1.msra.mxu0 %v1037
    %1538 = vmatprep.subr.mxu0 %v1042
    %1539 = vmatpush1.msra.mxu0 %v1041
    %1540 = vmatprep.subr.mxu0 %v1046
    %1541 = vmatpush1.msra.mxu0 %v1045
    %1542 = vmatprep.subr.mxu0 %v1050
    %1543 = vmatpush1.msra.mxu0 %v1049
    %1544 = vmatprep.subr.mxu0 %v1054
    %1545 = vmatpush1.msra.mxu0 %v1053
    %1546 = vmatprep.subr.mxu0 %v1058
    %1547 = vmatpush1.msra.mxu0 %v1057
    %1548 = vmatprep.subr.mxu0 %v1062
    %1549 = vmatpush1.msra.mxu0 %v1061
    %1550 = vmatprep.subr.mxu0 %v1066
    %1551 = vmatpush1.msra.mxu0 %v1065
    %1552 = vmatprep.subr.mxu0 %v1070
    %1553 = vmatpush1.msra.mxu0 %v1069
    %1554 = vmatprep.subr.mxu0 %v1074
    %1555 = vmatpush1.msra.mxu0 %v1073
    %1556 = vmatprep.subr.mxu0 %v1078
    %1557 = vmatpush1.msra.mxu0 %v1077
    %1558 = vmatprep.subr.mxu0 %v1082
    %1559 = vmatpush1.msra.mxu0 %v1081
    %1560 = vmatprep.subr.mxu0 %v1086
    %1561 = vmatpush1.msra.mxu0 %v1085
    %1562 = vmatprep.subr.mxu0 %v1090
    %1563 = vmatpush1.msra.mxu0 %v1089
    %1564 = vmatprep.subr.mxu0 %v1094
    %1565 = vmatpush1.msra.mxu0 %v1093
    %1566 = vmatprep.subr.mxu0 %v1098
    %1567 = vmatpush1.msra.mxu0 %v1097
    %1568 = vmatprep.subr.mxu0 %v1102
    %1569 = vmatpush1.msra.mxu0 %v1101
    %1570 = vmatprep.subr.mxu0 %v1106
    %1571 = vmatpush1.msra.mxu0 %v1105
    %1572 = vmatprep.subr.mxu0 %v1110
    %1573 = vmatpush1.msra.mxu0 %v1109
    %1574 = vmatprep.subr.mxu0 %v1114
    %1575 = vmatpush1.msra.mxu0 %v1113
    %1576 = vmatprep.subr.mxu0 %v1118
    %1577 = vmatpush1.msra.mxu0 %v1117
    %1578 = vmatprep.subr.mxu0 %v1122
    %1579 = vmatpush1.msra.mxu0 %v1121
    %1580 = vmatprep.subr.mxu0 %v1126
    %1581 = vmatpush1.msra.mxu0 %v1125
    %1582 = vmatprep.subr.mxu0 %v1130
    %1583 = vmatpush1.msra.mxu0 %v1129
    %1584 = vmatprep.subr.mxu0 %v1134
    %1585 = vmatpush1.msra.mxu0 %v1133
    %1586 = vmatprep.subr.mxu0 %v1138
    %1587 = vmatpush1.msra.mxu0 %v1137
    %1588 = vmatprep.subr.mxu0 %v1142
    %1589 = vmatpush1.msra.mxu0 %v1141
    %1590 = vmatprep.subr.mxu0 %v1146
    %1591 = vmatpush1.msra.mxu0 %v1145
    %1592 = vmatprep.subr.mxu0 %v1150
    %1593 = vmatpush1.msra.mxu0 %v1149
    %1594 = vmatprep.subr.mxu0 %v1154
    %1595 = vmatpush1.msra.mxu0 %v1153
    %1596 = vmatprep.mubr.f32.mxu0 %v372
    %1597 = vmatmul.mubr.f32.gmra.mrb[0].mxu0 %v371
    %v1598 = vpop.f32.mrb[0].mxu0
    %v1599 = vadd.f32 %v1528, %v1598
    %v1600 = vpop.f32.mrb[0].mxu0
    %v1601 = vadd.f32 %v1530, %v1600
    %1602 = vdwg.mxu0
    %v1603 = vtanh.pop %v1386
    %v1604 = vtanh.pop %v1388
    %v1605 = vxor.u32 %v1599, 2147483648
    %v1606 = vxor.u32 %v1601, 2147483648
    %v1607 = vmul.f32 %v1605, 1.442695
    %v1608 = vpow.pop %v1607
    %v1609 = vmul.f32 %v1606, 1.442695
    %v1610 = vpow.pop %v1609
    %v1611 = vadd.f32 %v1608, 1.0
    %v1612 = vadd.f32 %v1610, 1.0
    %v1613 = vrcp.pop %v1611
    %v1614 = vmul.f32 1.0, %v1613
    %v1615 = vrcp.pop %v1612
    %v1616 = vmul.f32 1.0, %v1615
    %v1617 = vmul.f32 %v1603, %v1614
    %v1618 = vmul.f32 %v1604, %v1616
    %v1619 = vld [vmem:[#allocation17] sm:$0xff]
    %v1620 = vld [vmem:[#allocation17 + $0x8] sm:$0xff]
    %v1621 = vld [vmem:[#allocation17 + $0x10] sm:$0xff]
    %v1622 = vld [vmem:[#allocation17 + $0x18] sm:$0xff]
    %v1623 = vld [vmem:[#allocation17 + $0x20] sm:$0xff]
    %v1624 = vld [vmem:[#allocation17 + $0x28] sm:$0xff]
    %v1625 = vld [vmem:[#allocation17 + $0x30] sm:$0xff]
    %v1626 = vld [vmem:[#allocation17 + $0x38] sm:$0xff]
    %v1627 = vld [vmem:[#allocation17 + $0x40] sm:$0xff]
    %v1628 = vld [vmem:[#allocation17 + $0x48] sm:$0xff]
    %v1629 = vld [vmem:[#allocation17 + $0x50] sm:$0xff]
    %v1630 = vld [vmem:[#allocation17 + $0x58] sm:$0xff]
    %v1631 = vld [vmem:[#allocation17 + $0x60] sm:$0xff]
    %v1632 = vld [vmem:[#allocation17 + $0x68] sm:$0xff]
    %v1633 = vld [vmem:[#allocation17 + $0x70] sm:$0xff]
    %v1634 = vld [vmem:[#allocation17 + $0x78] sm:$0xff]
    %v1635 = vld [vmem:[#allocation17 + $0x80] sm:$0xff]
    %v1636 = vld [vmem:[#allocation17 + $0x88] sm:$0xff]
    %v1637 = vld [vmem:[#allocation17 + $0x90] sm:$0xff]
    %v1638 = vld [vmem:[#allocation17 + $0x98] sm:$0xff]
    %v1639 = vld [vmem:[#allocation17 + $0xa0] sm:$0xff]
    %v1640 = vld [vmem:[#allocation17 + $0xa8] sm:$0xff]
    %v1641 = vld [vmem:[#allocation17 + $0xb0] sm:$0xff]
    %v1642 = vld [vmem:[#allocation17 + $0xb8] sm:$0xff]
    %v1643 = vld [vmem:[#allocation17 + $0xc0] sm:$0xff]
    %v1644 = vld [vmem:[#allocation17 + $0xc8] sm:$0xff]
    %v1645 = vld [vmem:[#allocation17 + $0xd0] sm:$0xff]
    %v1646 = vld [vmem:[#allocation17 + $0xd8] sm:$0xff]
    %v1647 = vld [vmem:[#allocation17 + $0xe0] sm:$0xff]
    %v1648 = vld [vmem:[#allocation17 + $0xe8] sm:$0xff]
    %v1649 = vld [vmem:[#allocation17 + $0xf0] sm:$0xff]
    %v1650 = vld [vmem:[#allocation17 + $0xf8] sm:$0xff]
    %v1651 = vld [vmem:[#allocation17 + $0x100] sm:$0xff]
    %v1652 = vld [vmem:[#allocation17 + $0x108] sm:$0xff]
    %v1653 = vld [vmem:[#allocation17 + $0x110] sm:$0xff]
    %v1654 = vld [vmem:[#allocation17 + $0x118] sm:$0xff]
    %v1655 = vld [vmem:[#allocation17 + $0x120] sm:$0xff]
    %v1656 = vld [vmem:[#allocation17 + $0x128] sm:$0xff]
    %v1657 = vld [vmem:[#allocation17 + $0x130] sm:$0xff]
    %v1658 = vld [vmem:[#allocation17 + $0x138] sm:$0xff]
    %v1659 = vld [vmem:[#allocation17 + $0x140] sm:$0xff]
    %v1660 = vld [vmem:[#allocation17 + $0x148] sm:$0xff]
    %v1661 = vld [vmem:[#allocation17 + $0x150] sm:$0xff]
    %v1662 = vld [vmem:[#allocation17 + $0x158] sm:$0xff]
    %v1663 = vld [vmem:[#allocation17 + $0x160] sm:$0xff]
    %v1664 = vld [vmem:[#allocation17 + $0x168] sm:$0xff]
    %v1665 = vld [vmem:[#allocation17 + $0x170] sm:$0xff]
    %v1666 = vld [vmem:[#allocation17 + $0x178] sm:$0xff]
    %v1667 = vld [vmem:[#allocation17 + $0x180] sm:$0xff]
    %v1668 = vld [vmem:[#allocation17 + $0x188] sm:$0xff]
    %v1669 = vld [vmem:[#allocation17 + $0x190] sm:$0xff]
    %v1670 = vld [vmem:[#allocation17 + $0x198] sm:$0xff]
    %v1671 = vld [vmem:[#allocation17 + $0x1a0] sm:$0xff]
    %v1672 = vld [vmem:[#allocation17 + $0x1a8] sm:$0xff]
    %v1673 = vld [vmem:[#allocation17 + $0x1b0] sm:$0xff]
    %v1674 = vld [vmem:[#allocation17 + $0x1b8] sm:$0xff]
    %v1675 = vld [vmem:[#allocation17 + $0x1c0] sm:$0xff]
    %v1676 = vld [vmem:[#allocation17 + $0x1c8] sm:$0xff]
    %v1677 = vld [vmem:[#allocation17 + $0x1d0] sm:$0xff]
    %v1678 = vld [vmem:[#allocation17 + $0x1d8] sm:$0xff]
    %v1679 = vld [vmem:[#allocation17 + $0x1e0] sm:$0xff]
    %v1680 = vld [vmem:[#allocation17 + $0x1e8] sm:$0xff]
    %v1681 = vld [vmem:[#allocation17 + $0x1f0] sm:$0xff]
    %v1682 = vld [vmem:[#allocation17 + $0x1f8] sm:$0xff]
    %v1683 = vld [vmem:[#allocation19] sm:$0x3]
    %v1685 = vlaneseq
    %v1686 = vshrl.u32 %v1685, 7
    %v1687 = vsub.s32 0, %v1686
    %v1688 = vrot.slane %v1683, %v1687
    %v1689 = vlaneseq
    %v1690 = vshrl.u32 %v1689, 7
    %v1691 = vsub.s32 1, %v1690
    %v1692 = vrot.slane %v1683, %v1691
    %1695 = vmatprep.subr.mxu0 %v1620
    %1696 = vmatpush1.msra.mxu0 %v1619
    %1697 = vmatprep.subr.mxu0 %v1622
    %1698 = vmatpush1.msra.mxu0 %v1621
    %1699 = vmatprep.subr.mxu0 %v1624
    %1700 = vmatpush1.msra.mxu0 %v1623
    %1701 = vmatprep.subr.mxu0 %v1626
    %1702 = vmatpush1.msra.mxu0 %v1625
    %1703 = vmatprep.subr.mxu0 %v1628
    %1704 = vmatpush1.msra.mxu0 %v1627
    %1705 = vmatprep.subr.mxu0 %v1630
    %1706 = vmatpush1.msra.mxu0 %v1629
    %1707 = vmatprep.subr.mxu0 %v1632
    %1708 = vmatpush1.msra.mxu0 %v1631
    %1709 = vmatprep.subr.mxu0 %v1634
    %1710 = vmatpush1.msra.mxu0 %v1633
    %1711 = vmatprep.subr.mxu0 %v1636
    %1712 = vmatpush1.msra.mxu0 %v1635
    %1713 = vmatprep.subr.mxu0 %v1638
    %1714 = vmatpush1.msra.mxu0 %v1637
    %1715 = vmatprep.subr.mxu0 %v1640
    %1716 = vmatpush1.msra.mxu0 %v1639
    %1717 = vmatprep.subr.mxu0 %v1642
    %1718 = vmatpush1.msra.mxu0 %v1641
    %1719 = vmatprep.subr.mxu0 %v1644
    %1720 = vmatpush1.msra.mxu0 %v1643
    %1721 = vmatprep.subr.mxu0 %v1646
    %1722 = vmatpush1.msra.mxu0 %v1645
    %1723 = vmatprep.subr.mxu0 %v1648
    %1724 = vmatpush1.msra.mxu0 %v1647
    %1725 = vmatprep.subr.mxu0 %v1650
    %1726 = vmatpush1.msra.mxu0 %v1649
    %1727 = vmatprep.subr.mxu0 %v1652
    %1728 = vmatpush1.msra.mxu0 %v1651
    %1729 = vmatprep.subr.mxu0 %v1654
    %1730 = vmatpush1.msra.mxu0 %v1653
    %1731 = vmatprep.subr.mxu0 %v1656
    %1732 = vmatpush1.msra.mxu0 %v1655
    %1733 = vmatprep.subr.mxu0 %v1658
    %1734 = vmatpush1.msra.mxu0 %v1657
    %1735 = vmatprep.subr.mxu0 %v1660
    %1736 = vmatpush1.msra.mxu0 %v1659
    %1737 = vmatprep.subr.mxu0 %v1662
    %1738 = vmatpush1.msra.mxu0 %v1661
    %1739 = vmatprep.subr.mxu0 %v1664
    %1740 = vmatpush1.msra.mxu0 %v1663
    %1741 = vmatprep.subr.mxu0 %v1666
    %1742 = vmatpush1.msra.mxu0 %v1665
    %1743 = vmatprep.subr.mxu0 %v1668
    %1744 = vmatpush1.msra.mxu0 %v1667
    %1745 = vmatprep.subr.mxu0 %v1670
    %1746 = vmatpush1.msra.mxu0 %v1669
    %1747 = vmatprep.subr.mxu0 %v1672
    %1748 = vmatpush1.msra.mxu0 %v1671
    %1749 = vmatprep.subr.mxu0 %v1674
    %1750 = vmatpush1.msra.mxu0 %v1673
    %1751 = vmatprep.subr.mxu0 %v1676
    %1752 = vmatpush1.msra.mxu0 %v1675
    %1753 = vmatprep.subr.mxu0 %v1678
    %1754 = vmatpush1.msra.mxu0 %v1677
    %1755 = vmatprep.subr.mxu0 %v1680
    %1756 = vmatpush1.msra.mxu0 %v1679
    %1757 = vmatprep.subr.mxu0 %v1682
    %1758 = vmatpush1.msra.mxu0 %v1681
    %1759 = vmatprep.mubr.f32.mxu0 %v1618
    %1760 = vmatmul.mubr.f32.gmra.mrb[0].mxu0 %v1617
    %v1761 = vpop.f32.mrb[0].mxu0
    %v1762 = vadd.f32 %v1688, %v1761
    %v1763 = vpop.f32.mrb[0].mxu0
    %v1764 = vadd.f32 %v1692, %v1763
    %1765 = vdwg.mxu0
    %1766 = vmatprep.subr.mxu0 %v772
    %1767 = vmatpush1.msra.mxu0 %v771
    %1768 = vmatprep.subr.mxu0 %v776
    %1769 = vmatpush1.msra.mxu0 %v775
    %1770 = vmatprep.subr.mxu0 %v780
    %1771 = vmatpush1.msra.mxu0 %v779
    %1772 = vmatprep.subr.mxu0 %v784
    %1773 = vmatpush1.msra.mxu0 %v783
    %1774 = vmatprep.subr.mxu0 %v788
    %1775 = vmatpush1.msra.mxu0 %v787
    %1776 = vmatprep.subr.mxu0 %v792
    %1777 = vmatpush1.msra.mxu0 %v791
    %1778 = vmatprep.subr.mxu0 %v796
    %1779 = vmatpush1.msra.mxu0 %v795
    %1780 = vmatprep.subr.mxu0 %v800
    %1781 = vmatpush1.msra.mxu0 %v799
    %1782 = vmatprep.subr.mxu0 %v804
    %1783 = vmatpush1.msra.mxu0 %v803
    %1784 = vmatprep.subr.mxu0 %v808
    %1785 = vmatpush1.msra.mxu0 %v807
    %1786 = vmatprep.subr.mxu0 %v812
    %1787 = vmatpush1.msra.mxu0 %v811
    %1788 = vmatprep.subr.mxu0 %v816
    %1789 = vmatpush1.msra.mxu0 %v815
    %1790 = vmatprep.subr.mxu0 %v820
    %1791 = vmatpush1.msra.mxu0 %v819
    %1792 = vmatprep.subr.mxu0 %v824
    %1793 = vmatpush1.msra.mxu0 %v823
    %1794 = vmatprep.subr.mxu0 %v828
    %1795 = vmatpush1.msra.mxu0 %v827
    %1796 = vmatprep.subr.mxu0 %v832
    %1797 = vmatpush1.msra.mxu0 %v831
    %1798 = vmatprep.subr.mxu0 %v836
    %1799 = vmatpush1.msra.mxu0 %v835
    %1800 = vmatprep.subr.mxu0 %v840
    %1801 = vmatpush1.msra.mxu0 %v839
    %1802 = vmatprep.subr.mxu0 %v844
    %1803 = vmatpush1.msra.mxu0 %v843
    %1804 = vmatprep.subr.mxu0 %v848
    %1805 = vmatpush1.msra.mxu0 %v847
    %1806 = vmatprep.subr.mxu0 %v852
    %1807 = vmatpush1.msra.mxu0 %v851
    %1808 = vmatprep.subr.mxu0 %v856
    %1809 = vmatpush1.msra.mxu0 %v855
    %1810 = vmatprep.subr.mxu0 %v860
    %1811 = vmatpush1.msra.mxu0 %v859
    %1812 = vmatprep.subr.mxu0 %v864
    %1813 = vmatpush1.msra.mxu0 %v863
    %1814 = vmatprep.subr.mxu0 %v868
    %1815 = vmatpush1.msra.mxu0 %v867
    %1816 = vmatprep.subr.mxu0 %v872
    %1817 = vmatpush1.msra.mxu0 %v871
    %1818 = vmatprep.subr.mxu0 %v876
    %1819 = vmatpush1.msra.mxu0 %v875
    %1820 = vmatprep.subr.mxu0 %v880
    %1821 = vmatpush1.msra.mxu0 %v879
    %1822 = vmatprep.subr.mxu0 %v884
    %1823 = vmatpush1.msra.mxu0 %v883
    %1824 = vmatprep.subr.mxu0 %v888
    %1825 = vmatpush1.msra.mxu0 %v887
    %1826 = vmatprep.subr.mxu0 %v892
    %1827 = vmatpush1.msra.mxu0 %v891
    %1828 = vmatprep.subr.mxu0 %v896
    %1829 = vmatpush1.msra.mxu0 %v895
    %1830 = vmatprep.mubr.f32.mxu0 %v374
    %1831 = vmatmul.mubr.f32.gmra.mrb[0].mxu0 %v373
    %v1832 = vpop.f32.mrb[0].mxu0
    %v1833 = vadd.f32 %v1160, %v1832
    %v1834 = vpop.f32.mrb[0].mxu0
    %v1835 = vadd.f32 %v1164, %v1834
    %1836 = vdwg.mxu0
    %1837 = vmatprep.subr.mxu0 %v900
    %1838 = vmatpush1.msra.mxu0 %v899
    %1839 = vmatprep.subr.mxu0 %v904
    %1840 = vmatpush1.msra.mxu0 %v903
    %1841 = vmatprep.subr.mxu0 %v908
    %1842 = vmatpush1.msra.mxu0 %v907
    %1843 = vmatprep.subr.mxu0 %v912
    %1844 = vmatpush1.msra.mxu0 %v911
    %1845 = vmatprep.subr.mxu0 %v916
    %1846 = vmatpush1.msra.mxu0 %v915
    %1847 = vmatprep.subr.mxu0 %v920
    %1848 = vmatpush1.msra.mxu0 %v919
    %1849 = vmatprep.subr.mxu0 %v924
    %1850 = vmatpush1.msra.mxu0 %v923
    %1851 = vmatprep.subr.mxu0 %v928
    %1852 = vmatpush1.msra.mxu0 %v927
    %1853 = vmatprep.subr.mxu0 %v932
    %1854 = vmatpush1.msra.mxu0 %v931
    %1855 = vmatprep.subr.mxu0 %v936
    %1856 = vmatpush1.msra.mxu0 %v935
    %1857 = vmatprep.subr.mxu0 %v940
    %1858 = vmatpush1.msra.mxu0 %v939
    %1859 = vmatprep.subr.mxu0 %v944
    %1860 = vmatpush1.msra.mxu0 %v943
    %1861 = vmatprep.subr.mxu0 %v948
    %1862 = vmatpush1.msra.mxu0 %v947
    %1863 = vmatprep.subr.mxu0 %v952
    %1864 = vmatpush1.msra.mxu0 %v951
    %1865 = vmatprep.subr.mxu0 %v956
    %1866 = vmatpush1.msra.mxu0 %v955
    %1867 = vmatprep.subr.mxu0 %v960
    %1868 = vmatpush1.msra.mxu0 %v959
    %1869 = vmatprep.subr.mxu0 %v964
    %1870 = vmatpush1.msra.mxu0 %v963
    %1871 = vmatprep.subr.mxu0 %v968
    %1872 = vmatpush1.msra.mxu0 %v967
    %1873 = vmatprep.subr.mxu0 %v972
    %1874 = vmatpush1.msra.mxu0 %v971
    %1875 = vmatprep.subr.mxu0 %v976
    %1876 = vmatpush1.msra.mxu0 %v975
    %1877 = vmatprep.subr.mxu0 %v980
    %1878 = vmatpush1.msra.mxu0 %v979
    %1879 = vmatprep.subr.mxu0 %v984
    %1880 = vmatpush1.msra.mxu0 %v983
    %1881 = vmatprep.subr.mxu0 %v988
    %1882 = vmatpush1.msra.mxu0 %v987
    %1883 = vmatprep.subr.mxu0 %v992
    %1884 = vmatpush1.msra.mxu0 %v991
    %1885 = vmatprep.subr.mxu0 %v996
    %1886 = vmatpush1.msra.mxu0 %v995
    %1887 = vmatprep.subr.mxu0 %v1000
    %1888 = vmatpush1.msra.mxu0 %v999
    %1889 = vmatprep.subr.mxu0 %v1004
    %1890 = vmatpush1.msra.mxu0 %v1003
    %1891 = vmatprep.subr.mxu0 %v1008
    %1892 = vmatpush1.msra.mxu0 %v1007
    %1893 = vmatprep.subr.mxu0 %v1012
    %1894 = vmatpush1.msra.mxu0 %v1011
    %1895 = vmatprep.subr.mxu0 %v1016
    %1896 = vmatpush1.msra.mxu0 %v1015
    %1897 = vmatprep.subr.mxu0 %v1020
    %1898 = vmatpush1.msra.mxu0 %v1019
    %1899 = vmatprep.subr.mxu0 %v1024
    %1900 = vmatpush1.msra.mxu0 %v1023
    %1901 = vmatprep.mubr.f32.mxu0 %v376
    %1902 = vmatmul.mubr.f32.gmra.mrb[0].mxu0 %v375
    %v1903 = vpop.f32.mrb[0].mxu0
    %v1904 = vadd.f32 %v1833, %v1903
    %v1905 = vpop.f32.mrb[0].mxu0
    %v1906 = vadd.f32 %v1835, %v1905
    %1907 = vdwg.mxu0
    %1908 = vmatprep.subr.mxu0 %v1028
    %1909 = vmatpush1.msra.mxu0 %v1027
    %1910 = vmatprep.subr.mxu0 %v1032
    %1911 = vmatpush1.msra.mxu0 %v1031
    %1912 = vmatprep.subr.mxu0 %v1036
    %1913 = vmatpush1.msra.mxu0 %v1035
    %1914 = vmatprep.subr.mxu0 %v1040
    %1915 = vmatpush1.msra.mxu0 %v1039
    %1916 = vmatprep.subr.mxu0 %v1044
    %1917 = vmatpush1.msra.mxu0 %v1043
    %1918 = vmatprep.subr.mxu0 %v1048
    %1919 = vmatpush1.msra.mxu0 %v1047
    %1920 = vmatprep.subr.mxu0 %v1052
    %1921 = vmatpush1.msra.mxu0 %v1051
    %1922 = vmatprep.subr.mxu0 %v1056
    %1923 = vmatpush1.msra.mxu0 %v1055
    %1924 = vmatprep.subr.mxu0 %v1060
    %1925 = vmatpush1.msra.mxu0 %v1059
    %1926 = vmatprep.subr.mxu0 %v1064
    %1927 = vmatpush1.msra.mxu0 %v1063
    %1928 = vmatprep.subr.mxu0 %v1068
    %1929 = vmatpush1.msra.mxu0 %v1067
    %1930 = vmatprep.subr.mxu0 %v1072
    %1931 = vmatpush1.msra.mxu0 %v1071
    %1932 = vmatprep.subr.mxu0 %v1076
    %1933 = vmatpush1.msra.mxu0 %v1075
    %1934 = vmatprep.subr.mxu0 %v1080
    %1935 = vmatpush1.msra.mxu0 %v1079
    %1936 = vmatprep.subr.mxu0 %v1084
    %1937 = vmatpush1.msra.mxu0 %v1083
    %1938 = vmatprep.subr.mxu0 %v1088
    %1939 = vmatpush1.msra.mxu0 %v1087
    %1940 = vmatprep.subr.mxu0 %v1092
    %1941 = vmatpush1.msra.mxu0 %v1091
    %1942 = vmatprep.subr.mxu0 %v1096
    %1943 = vmatpush1.msra.mxu0 %v1095
    %1944 = vmatprep.subr.mxu0 %v1100
    %1945 = vmatpush1.msra.mxu0 %v1099
    %1946 = vmatprep.subr.mxu0 %v1104
    %1947 = vmatpush1.msra.mxu0 %v1103
    %1948 = vmatprep.subr.mxu0 %v1108
    %1949 = vmatpush1.msra.mxu0 %v1107
    %1950 = vmatprep.subr.mxu0 %v1112
    %1951 = vmatpush1.msra.mxu0 %v1111
    %1952 = vmatprep.subr.mxu0 %v1116
    %1953 = vmatpush1.msra.mxu0 %v1115
    %1954 = vmatprep.subr.mxu0 %v1120
    %1955 = vmatpush1.msra.mxu0 %v1119
    %1956 = vmatprep.subr.mxu0 %v1124
    %1957 = vmatpush1.msra.mxu0 %v1123
    %1958 = vmatprep.subr.mxu0 %v1128
    %1959 = vmatpush1.msra.mxu0 %v1127
    %1960 = vmatprep.subr.mxu0 %v1132
    %1961 = vmatpush1.msra.mxu0 %v1131
    %1962 = vmatprep.subr.mxu0 %v1136
    %1963 = vmatpush1.msra.mxu0 %v1135
    %1964 = vmatprep.subr.mxu0 %v1140
    %1965 = vmatpush1.msra.mxu0 %v1139
    %1966 = vmatprep.subr.mxu0 %v1144
    %1967 = vmatpush1.msra.mxu0 %v1143
    %1968 = vmatprep.subr.mxu0 %v1148
    %1969 = vmatpush1.msra.mxu0 %v1147
    %1970 = vmatprep.subr.mxu0 %v1152
    %1971 = vmatpush1.msra.mxu0 %v1151
    %1972 = vmatprep.mubr.f32.mxu0 %v378
    %1973 = vmatmul.mubr.f32.gmra.mrb[0].mxu0 %v377
    %v1974 = vpop.f32.mrb[0].mxu0
    %v1975 = vadd.f32 %v1904, %v1974
    %v1976 = vpop.f32.mrb[0].mxu0
    %v1977 = vadd.f32 %v1906, %v1976
    %1978 = vdwg.mxu0
    %1979 = vmatprep.subr.mxu0 %v774
    %1980 = vmatpush1.msra.mxu0 %v773
    %1981 = vmatprep.subr.mxu0 %v778
    %1982 = vmatpush1.msra.mxu0 %v777
    %1983 = vmatprep.subr.mxu0 %v782
    %1984 = vmatpush1.msra.mxu0 %v781
    %1985 = vmatprep.subr.mxu0 %v786
    %1986 = vmatpush1.msra.mxu0 %v785
    %1987 = vmatprep.subr.mxu0 %v790
    %1988 = vmatpush1.msra.mxu0 %v789
    %1989 = vmatprep.subr.mxu0 %v794
    %1990 = vmatpush1.msra.mxu0 %v793
    %1991 = vmatprep.subr.mxu0 %v798
    %1992 = vmatpush1.msra.mxu0 %v797
    %1993 = vmatprep.subr.mxu0 %v802
    %1994 = vmatpush1.msra.mxu0 %v801
    %1995 = vmatprep.subr.mxu0 %v806
    %1996 = vmatpush1.msra.mxu0 %v805
    %1997 = vmatprep.subr.mxu0 %v810
    %1998 = vmatpush1.msra.mxu0 %v809
    %1999 = vmatprep.subr.mxu0 %v814
    %2000 = vmatpush1.msra.mxu0 %v813
    %2001 = vmatprep.subr.mxu0 %v818
    %2002 = vmatpush1.msra.mxu0 %v817
    %2003 = vmatprep.subr.mxu0 %v822
    %2004 = vmatpush1.msra.mxu0 %v821
    %2005 = vmatprep.subr.mxu0 %v826
    %2006 = vmatpush1.msra.mxu0 %v825
    %2007 = vmatprep.subr.mxu0 %v830
    %2008 = vmatpush1.msra.mxu0 %v829
    %2009 = vmatprep.subr.mxu0 %v834
    %2010 = vmatpush1.msra.mxu0 %v833
    %2011 = vmatprep.subr.mxu0 %v838
    %2012 = vmatpush1.msra.mxu0 %v837
    %2013 = vmatprep.subr.mxu0 %v842
    %2014 = vmatpush1.msra.mxu0 %v841
    %2015 = vmatprep.subr.mxu0 %v846
    %2016 = vmatpush1.msra.mxu0 %v845
    %2017 = vmatprep.subr.mxu0 %v850
    %2018 = vmatpush1.msra.mxu0 %v849
    %2019 = vmatprep.subr.mxu0 %v854
    %2020 = vmatpush1.msra.mxu0 %v853
    %2021 = vmatprep.subr.mxu0 %v858
    %2022 = vmatpush1.msra.mxu0 %v857
    %2023 = vmatprep.subr.mxu0 %v862
    %2024 = vmatpush1.msra.mxu0 %v861
    %2025 = vmatprep.subr.mxu0 %v866
    %2026 = vmatpush1.msra.mxu0 %v865
    %2027 = vmatprep.subr.mxu0 %v870
    %2028 = vmatpush1.msra.mxu0 %v869
    %2029 = vmatprep.subr.mxu0 %v874
    %2030 = vmatpush1.msra.mxu0 %v873
    %2031 = vmatprep.subr.mxu0 %v878
    %2032 = vmatpush1.msra.mxu0 %v877
    %2033 = vmatprep.subr.mxu0 %v882
    %2034 = vmatpush1.msra.mxu0 %v881
    %2035 = vmatprep.subr.mxu0 %v886
    %2036 = vmatpush1.msra.mxu0 %v885
    %2037 = vmatprep.subr.mxu0 %v890
    %2038 = vmatpush1.msra.mxu0 %v889
    %2039 = vmatprep.subr.mxu0 %v894
    %2040 = vmatpush1.msra.mxu0 %v893
    %2041 = vmatprep.subr.mxu0 %v898
    %2042 = vmatpush1.msra.mxu0 %v897
    %2043 = vmatprep.mubr.f32.mxu0 %v374
    %2044 = vmatmul.mubr.f32.gmra.mrb[0].mxu0 %v373
    %v2045 = vpop.f32.mrb[0].mxu0
    %v2046 = vadd.f32 %v1168, %v2045
    %v2047 = vpop.f32.mrb[0].mxu0
    %v2048 = vadd.f32 %v1172, %v2047
    %2049 = vdwg.mxu0
    %2050 = vmatprep.subr.mxu0 %v902
    %2051 = vmatpush1.msra.mxu0 %v901
    %2052 = vmatprep.subr.mxu0 %v906
    %2053 = vmatpush1.msra.mxu0 %v905
    %2054 = vmatprep.subr.mxu0 %v910
    %2055 = vmatpush1.msra.mxu0 %v909
    %2056 = vmatprep.subr.mxu0 %v914
    %2057 = vmatpush1.msra.mxu0 %v913
    %2058 = vmatprep.subr.mxu0 %v918
    %2059 = vmatpush1.msra.mxu0 %v917
    %2060 = vmatprep.subr.mxu0 %v922
    %2061 = vmatpush1.msra.mxu0 %v921
    %2062 = vmatprep.subr.mxu0 %v926
    %2063 = vmatpush1.msra.mxu0 %v925
    %2064 = vmatprep.subr.mxu0 %v930
    %2065 = vmatpush1.msra.mxu0 %v929
    %2066 = vmatprep.subr.mxu0 %v934
    %2067 = vmatpush1.msra.mxu0 %v933
    %2068 = vmatprep.subr.mxu0 %v938
    %2069 = vmatpush1.msra.mxu0 %v937
    %2070 = vmatprep.subr.mxu0 %v942
    %2071 = vmatpush1.msra.mxu0 %v941
    %2072 = vmatprep.subr.mxu0 %v946
    %2073 = vmatpush1.msra.mxu0 %v945
    %2074 = vmatprep.subr.mxu0 %v950
    %2075 = vmatpush1.msra.mxu0 %v949
    %2076 = vmatprep.subr.mxu0 %v954
    %2077 = vmatpush1.msra.mxu0 %v953
    %2078 = vmatprep.subr.mxu0 %v958
    %2079 = vmatpush1.msra.mxu0 %v957
    %2080 = vmatprep.subr.mxu0 %v962
    %2081 = vmatpush1.msra.mxu0 %v961
    %2082 = vmatprep.subr.mxu0 %v966
    %2083 = vmatpush1.msra.mxu0 %v965
    %2084 = vmatprep.subr.mxu0 %v970
    %2085 = vmatpush1.msra.mxu0 %v969
    %2086 = vmatprep.subr.mxu0 %v974
    %2087 = vmatpush1.msra.mxu0 %v973
    %2088 = vmatprep.subr.mxu0 %v978
    %2089 = vmatpush1.msra.mxu0 %v977
    %2090 = vmatprep.subr.mxu0 %v982
    %2091 = vmatpush1.msra.mxu0 %v981
    %2092 = vmatprep.subr.mxu0 %v986
    %2093 = vmatpush1.msra.mxu0 %v985
    %2094 = vmatprep.subr.mxu0 %v990
    %2095 = vmatpush1.msra.mxu0 %v989
    %2096 = vmatprep.subr.mxu0 %v994
    %2097 = vmatpush1.msra.mxu0 %v993
    %2098 = vmatprep.subr.mxu0 %v998
    %2099 = vmatpush1.msra.mxu0 %v997
    %2100 = vmatprep.subr.mxu0 %v1002
    %2101 = vmatpush1.msra.mxu0 %v1001
    %2102 = vmatprep.subr.mxu0 %v1006
    %2103 = vmatpush1.msra.mxu0 %v1005
    %2104 = vmatprep.subr.mxu0 %v1010
    %2105 = vmatpush1.msra.mxu0 %v1009
    %2106 = vmatprep.subr.mxu0 %v1014
    %2107 = vmatpush1.msra.mxu0 %v1013
    %2108 = vmatprep.subr.mxu0 %v1018
    %2109 = vmatpush1.msra.mxu0 %v1017
    %2110 = vmatprep.subr.mxu0 %v1022
    %2111 = vmatpush1.msra.mxu0 %v1021
    %2112 = vmatprep.subr.mxu0 %v1026
    %2113 = vmatpush1.msra.mxu0 %v1025
    %2114 = vmatprep.mubr.f32.mxu0 %v376
    %2115 = vmatmul.mubr.f32.gmra.mrb[0].mxu0 %v375
    %v2116 = vpop.f32.mrb[0].mxu0
    %v2117 = vadd.f32 %v2046, %v2116
    %v2118 = vpop.f32.mrb[0].mxu0
    %v2119 = vadd.f32 %v2048, %v2118
    %2120 = vdwg.mxu0
    %2121 = vmatprep.subr.mxu0 %v1030
    %2122 = vmatpush1.msra.mxu0 %v1029
    %2123 = vmatprep.subr.mxu0 %v1034
    %2124 = vmatpush1.msra.mxu0 %v1033
    %2125 = vmatprep.subr.mxu0 %v1038
    %2126 = vmatpush1.msra.mxu0 %v1037
    %2127 = vmatprep.subr.mxu0 %v1042
    %2128 = vmatpush1.msra.mxu0 %v1041
    %2129 = vmatprep.subr.mxu0 %v1046
    %2130 = vmatpush1.msra.mxu0 %v1045
    %2131 = vmatprep.subr.mxu0 %v1050
    %2132 = vmatpush1.msra.mxu0 %v1049
    %2133 = vmatprep.subr.mxu0 %v1054
    %2134 = vmatpush1.msra.mxu0 %v1053
    %2135 = vmatprep.subr.mxu0 %v1058
    %2136 = vmatpush1.msra.mxu0 %v1057
    %2137 = vmatprep.subr.mxu0 %v1062
    %2138 = vmatpush1.msra.mxu0 %v1061
    %2139 = vmatprep.subr.mxu0 %v1066
    %2140 = vmatpush1.msra.mxu0 %v1065
    %2141 = vmatprep.subr.mxu0 %v1070
    %2142 = vmatpush1.msra.mxu0 %v1069
    %2143 = vmatprep.subr.mxu0 %v1074
    %2144 = vmatpush1.msra.mxu0 %v1073
    %2145 = vmatprep.subr.mxu0 %v1078
    %2146 = vmatpush1.msra.mxu0 %v1077
    %2147 = vmatprep.subr.mxu0 %v1082
    %2148 = vmatpush1.msra.mxu0 %v1081
    %2149 = vmatprep.subr.mxu0 %v1086
    %2150 = vmatpush1.msra.mxu0 %v1085
    %2151 = vmatprep.subr.mxu0 %v1090
    %2152 = vmatpush1.msra.mxu0 %v1089
    %2153 = vmatprep.subr.mxu0 %v1094
    %2154 = vmatpush1.msra.mxu0 %v1093
    %2155 = vmatprep.subr.mxu0 %v1098
    %2156 = vmatpush1.msra.mxu0 %v1097
    %2157 = vmatprep.subr.mxu0 %v1102
    %2158 = vmatpush1.msra.mxu0 %v1101
    %2159 = vmatprep.subr.mxu0 %v1106
    %2160 = vmatpush1.msra.mxu0 %v1105
    %2161 = vmatprep.subr.mxu0 %v1110
    %2162 = vmatpush1.msra.mxu0 %v1109
    %2163 = vmatprep.subr.mxu0 %v1114
    %2164 = vmatpush1.msra.mxu0 %v1113
    %2165 = vmatprep.subr.mxu0 %v1118
    %2166 = vmatpush1.msra.mxu0 %v1117
    %2167 = vmatprep.subr.mxu0 %v1122
    %2168 = vmatpush1.msra.mxu0 %v1121
    %2169 = vmatprep.subr.mxu0 %v1126
    %2170 = vmatpush1.msra.mxu0 %v1125
    %2171 = vmatprep.subr.mxu0 %v1130
    %2172 = vmatpush1.msra.mxu0 %v1129
    %2173 = vmatprep.subr.mxu0 %v1134
    %2174 = vmatpush1.msra.mxu0 %v1133
    %2175 = vmatprep.subr.mxu0 %v1138
    %2176 = vmatpush1.msra.mxu0 %v1137
    %2177 = vmatprep.subr.mxu0 %v1142
    %2178 = vmatpush1.msra.mxu0 %v1141
    %2179 = vmatprep.subr.mxu0 %v1146
    %2180 = vmatpush1.msra.mxu0 %v1145
    %2181 = vmatprep.subr.mxu0 %v1150
    %2182 = vmatpush1.msra.mxu0 %v1149
    %2183 = vmatprep.subr.mxu0 %v1154
    %2184 = vmatpush1.msra.mxu0 %v1153
    %2185 = vmatprep.mubr.f32.mxu0 %v378
    %2186 = vmatmul.mubr.f32.gmra.mrb[0].mxu0 %v377
    %v2187 = vpop.f32.mrb[0].mxu0
    %v2188 = vadd.f32 %v2117, %v2187
    %v2189 = vpop.f32.mrb[0].mxu0
    %v2190 = vadd.f32 %v2119, %v2189
    %2191 = vdwg.mxu0
    %v2192 = vtanh.pop %v1975
    %v2193 = vtanh.pop %v1977
    %v2194 = vxor.u32 %v2188, 2147483648
    %v2195 = vxor.u32 %v2190, 2147483648
    %v2196 = vmul.f32 %v2194, 1.442695
    %v2197 = vpow.pop %v2196
    %v2198 = vmul.f32 %v2195, 1.442695
    %v2199 = vpow.pop %v2198
    %v2200 = vadd.f32 %v2197, 1.0
    %v2201 = vadd.f32 %v2199, 1.0
    %v2202 = vrcp.pop %v2200
    %v2203 = vmul.f32 1.0, %v2202
    %v2204 = vrcp.pop %v2201
    %v2205 = vmul.f32 1.0, %v2204
    %v2206 = vmul.f32 %v2192, %v2203
    %v2207 = vmul.f32 %v2193, %v2205
    %2208 = vmatprep.subr.mxu0 %v1620
    %2209 = vmatpush1.msra.mxu0 %v1619
    %2210 = vmatprep.subr.mxu0 %v1622
    %2211 = vmatpush1.msra.mxu0 %v1621
    %2212 = vmatprep.subr.mxu0 %v1624
    %2213 = vmatpush1.msra.mxu0 %v1623
    %2214 = vmatprep.subr.mxu0 %v1626
    %2215 = vmatpush1.msra.mxu0 %v1625
    %2216 = vmatprep.subr.mxu0 %v1628
    %2217 = vmatpush1.msra.mxu0 %v1627
    %2218 = vmatprep.subr.mxu0 %v1630
    %2219 = vmatpush1.msra.mxu0 %v1629
    %2220 = vmatprep.subr.mxu0 %v1632
    %2221 = vmatpush1.msra.mxu0 %v1631
    %2222 = vmatprep.subr.mxu0 %v1634
    %2223 = vmatpush1.msra.mxu0 %v1633
    %2224 = vmatprep.subr.mxu0 %v1636
    %2225 = vmatpush1.msra.mxu0 %v1635
    %2226 = vmatprep.subr.mxu0 %v1638
    %2227 = vmatpush1.msra.mxu0 %v1637
    %2228 = vmatprep.subr.mxu0 %v1640
    %2229 = vmatpush1.msra.mxu0 %v1639
    %2230 = vmatprep.subr.mxu0 %v1642
    %2231 = vmatpush1.msra.mxu0 %v1641
    %2232 = vmatprep.subr.mxu0 %v1644
    %2233 = vmatpush1.msra.mxu0 %v1643
    %2234 = vmatprep.subr.mxu0 %v1646
    %2235 = vmatpush1.msra.mxu0 %v1645
    %2236 = vmatprep.subr.mxu0 %v1648
    %2237 = vmatpush1.msra.mxu0 %v1647
    %2238 = vmatprep.subr.mxu0 %v1650
    %2239 = vmatpush1.msra.mxu0 %v1649
    %2240 = vmatprep.subr.mxu0 %v1652
    %2241 = vmatpush1.msra.mxu0 %v1651
    %2242 = vmatprep.subr.mxu0 %v1654
    %2243 = vmatpush1.msra.mxu0 %v1653
    %2244 = vmatprep.subr.mxu0 %v1656
    %2245 = vmatpush1.msra.mxu0 %v1655
    %2246 = vmatprep.subr.mxu0 %v1658
    %2247 = vmatpush1.msra.mxu0 %v1657
    %2248 = vmatprep.subr.mxu0 %v1660
    %2249 = vmatpush1.msra.mxu0 %v1659
    %2250 = vmatprep.subr.mxu0 %v1662
    %2251 = vmatpush1.msra.mxu0 %v1661
    %2252 = vmatprep.subr.mxu0 %v1664
    %2253 = vmatpush1.msra.mxu0 %v1663
    %2254 = vmatprep.subr.mxu0 %v1666
    %2255 = vmatpush1.msra.mxu0 %v1665
    %2256 = vmatprep.subr.mxu0 %v1668
    %2257 = vmatpush1.msra.mxu0 %v1667
    %2258 = vmatprep.subr.mxu0 %v1670
    %2259 = vmatpush1.msra.mxu0 %v1669
    %2260 = vmatprep.subr.mxu0 %v1672
    %2261 = vmatpush1.msra.mxu0 %v1671
    %2262 = vmatprep.subr.mxu0 %v1674
    %2263 = vmatpush1.msra.mxu0 %v1673
    %2264 = vmatprep.subr.mxu0 %v1676
    %2265 = vmatpush1.msra.mxu0 %v1675
    %2266 = vmatprep.subr.mxu0 %v1678
    %2267 = vmatpush1.msra.mxu0 %v1677
    %2268 = vmatprep.subr.mxu0 %v1680
    %2269 = vmatpush1.msra.mxu0 %v1679
    %2270 = vmatprep.subr.mxu0 %v1682
    %2271 = vmatpush1.msra.mxu0 %v1681
    %2272 = vmatprep.mubr.f32.mxu0 %v2207
    %2273 = vmatmul.mubr.f32.gmra.mrb[0].mxu0 %v2206
    %v2274 = vpop.f32.mrb[0].mxu0
    %v2275 = vadd.f32 %v1688, %v2274
    %v2276 = vpop.f32.mrb[0].mxu0
    %v2277 = vadd.f32 %v1692, %v2276
    %2278 = vdwg.mxu0
    %v2279 = vld [vmem:[#allocation20] sm:$0xff]
    %v2280 = vld [vmem:[#allocation20 + $0x8] sm:$0xff]
    %v2281 = vld [vmem:[#allocation20 + $0x10] sm:$0xff]
    %v2282 = vld [vmem:[#allocation20 + $0x18] sm:$0xff]
    %v2283 = vld [vmem:[#allocation20 + $0x20] sm:$0xff]
    %v2284 = vld [vmem:[#allocation20 + $0x28] sm:$0xff]
    %v2285 = vld [vmem:[#allocation20 + $0x30] sm:$0xff]
    %v2286 = vld [vmem:[#allocation20 + $0x38] sm:$0xff]
    %v2287 = vld [vmem:[#allocation20 + $0x40] sm:$0xff]
    %v2288 = vld [vmem:[#allocation20 + $0x48] sm:$0xff]
    %v2289 = vld [vmem:[#allocation20 + $0x50] sm:$0xff]
    %v2290 = vld [vmem:[#allocation20 + $0x58] sm:$0xff]
    %v2291 = vld [vmem:[#allocation20 + $0x60] sm:$0xff]
    %v2292 = vld [vmem:[#allocation20 + $0x68] sm:$0xff]
    %v2293 = vld [vmem:[#allocation20 + $0x70] sm:$0xff]
    %v2294 = vld [vmem:[#allocation20 + $0x78] sm:$0xff]
    %v2295 = vld [vmem:[#allocation20 + $0x80] sm:$0xff]
    %v2296 = vld [vmem:[#allocation20 + $0x88] sm:$0xff]
    %v2297 = vld [vmem:[#allocation20 + $0x90] sm:$0xff]
    %v2298 = vld [vmem:[#allocation20 + $0x98] sm:$0xff]
    %v2299 = vld [vmem:[#allocation20 + $0xa0] sm:$0xff]
    %v2300 = vld [vmem:[#allocation20 + $0xa8] sm:$0xff]
    %v2301 = vld [vmem:[#allocation20 + $0xb0] sm:$0xff]
    %v2302 = vld [vmem:[#allocation20 + $0xb8] sm:$0xff]
    %v2303 = vld [vmem:[#allocation20 + $0xc0] sm:$0xff]
    %v2304 = vld [vmem:[#allocation20 + $0xc8] sm:$0xff]
    %v2305 = vld [vmem:[#allocation20 + $0xd0] sm:$0xff]
    %v2306 = vld [vmem:[#allocation20 + $0xd8] sm:$0xff]
    %v2307 = vld [vmem:[#allocation20 + $0xe0] sm:$0xff]
    %v2308 = vld [vmem:[#allocation20 + $0xe8] sm:$0xff]
    %v2309 = vld [vmem:[#allocation20 + $0xf0] sm:$0xff]
    %v2310 = vld [vmem:[#allocation20 + $0xf8] sm:$0xff]
    %v2311 = vld [vmem:[#allocation20 + $0x100] sm:$0xff]
    %v2312 = vld [vmem:[#allocation20 + $0x108] sm:$0xff]
    %v2313 = vld [vmem:[#allocation20 + $0x110] sm:$0xff]
    %v2314 = vld [vmem:[#allocation20 + $0x118] sm:$0xff]
    %v2315 = vld [vmem:[#allocation20 + $0x120] sm:$0xff]
    %v2316 = vld [vmem:[#allocation20 + $0x128] sm:$0xff]
    %v2317 = vld [vmem:[#allocation20 + $0x130] sm:$0xff]
    %v2318 = vld [vmem:[#allocation20 + $0x138] sm:$0xff]
    %v2319 = vld [vmem:[#allocation20 + $0x140] sm:$0xff]
    %v2320 = vld [vmem:[#allocation20 + $0x148] sm:$0xff]
    %v2321 = vld [vmem:[#allocation20 + $0x150] sm:$0xff]
    %v2322 = vld [vmem:[#allocation20 + $0x158] sm:$0xff]
    %v2323 = vld [vmem:[#allocation20 + $0x160] sm:$0xff]
    %v2324 = vld [vmem:[#allocation20 + $0x168] sm:$0xff]
    %v2325 = vld [vmem:[#allocation20 + $0x170] sm:$0xff]
    %v2326 = vld [vmem:[#allocation20 + $0x178] sm:$0xff]
    %v2327 = vld [vmem:[#allocation20 + $0x180] sm:$0xff]
    %v2328 = vld [vmem:[#allocation20 + $0x188] sm:$0xff]
    %v2329 = vld [vmem:[#allocation20 + $0x190] sm:$0xff]
    %v2330 = vld [vmem:[#allocation20 + $0x198] sm:$0xff]
    %v2331 = vld [vmem:[#allocation20 + $0x1a0] sm:$0xff]
    %v2332 = vld [vmem:[#allocation20 + $0x1a8] sm:$0xff]
    %v2333 = vld [vmem:[#allocation20 + $0x1b0] sm:$0xff]
    %v2334 = vld [vmem:[#allocation20 + $0x1b8] sm:$0xff]
    %v2335 = vld [vmem:[#allocation20 + $0x1c0] sm:$0xff]
    %v2336 = vld [vmem:[#allocation20 + $0x1c8] sm:$0xff]
    %v2337 = vld [vmem:[#allocation20 + $0x1d0] sm:$0xff]
    %v2338 = vld [vmem:[#allocation20 + $0x1d8] sm:$0xff]
    %v2339 = vld [vmem:[#allocation20 + $0x1e0] sm:$0xff]
    %v2340 = vld [vmem:[#allocation20 + $0x1e8] sm:$0xff]
    %v2341 = vld [vmem:[#allocation20 + $0x1f0] sm:$0xff]
    %v2342 = vld [vmem:[#allocation20 + $0x1f8] sm:$0xff]
    %v2343 = vld [vmem:[#allocation22] sm:$0x3]
    %v2345 = vlaneseq
    %v2346 = vshrl.u32 %v2345, 7
    %v2347 = vsub.s32 0, %v2346
    %v2348 = vrot.slane %v2343, %v2347
    %v2349 = vlaneseq
    %v2350 = vshrl.u32 %v2349, 7
    %v2351 = vsub.s32 1, %v2350
    %v2352 = vrot.slane %v2343, %v2351
    %2355 = vmatprep.subr.mxu0 %v2280
    %2356 = vmatpush1.msra.mxu0 %v2279
    %2357 = vmatprep.subr.mxu0 %v2282
    %2358 = vmatpush1.msra.mxu0 %v2281
    %2359 = vmatprep.subr.mxu0 %v2284
    %2360 = vmatpush1.msra.mxu0 %v2283
    %2361 = vmatprep.subr.mxu0 %v2286
    %2362 = vmatpush1.msra.mxu0 %v2285
    %2363 = vmatprep.subr.mxu0 %v2288
    %2364 = vmatpush1.msra.mxu0 %v2287
    %2365 = vmatprep.subr.mxu0 %v2290
    %2366 = vmatpush1.msra.mxu0 %v2289
    %2367 = vmatprep.subr.mxu0 %v2292
    %2368 = vmatpush1.msra.mxu0 %v2291
    %2369 = vmatprep.subr.mxu0 %v2294
    %2370 = vmatpush1.msra.mxu0 %v2293
    %2371 = vmatprep.subr.mxu0 %v2296
    %2372 = vmatpush1.msra.mxu0 %v2295
    %2373 = vmatprep.subr.mxu0 %v2298
    %2374 = vmatpush1.msra.mxu0 %v2297
    %2375 = vmatprep.subr.mxu0 %v2300
    %2376 = vmatpush1.msra.mxu0 %v2299
    %2377 = vmatprep.subr.mxu0 %v2302
    %2378 = vmatpush1.msra.mxu0 %v2301
    %2379 = vmatprep.subr.mxu0 %v2304
    %2380 = vmatpush1.msra.mxu0 %v2303
    %2381 = vmatprep.subr.mxu0 %v2306
    %2382 = vmatpush1.msra.mxu0 %v2305
    %2383 = vmatprep.subr.mxu0 %v2308
    %2384 = vmatpush1.msra.mxu0 %v2307
    %2385 = vmatprep.subr.mxu0 %v2310
    %2386 = vmatpush1.msra.mxu0 %v2309
    %2387 = vmatprep.subr.mxu0 %v2312
    %2388 = vmatpush1.msra.mxu0 %v2311
    %2389 = vmatprep.subr.mxu0 %v2314
    %2390 = vmatpush1.msra.mxu0 %v2313
    %2391 = vmatprep.subr.mxu0 %v2316
    %2392 = vmatpush1.msra.mxu0 %v2315
    %2393 = vmatprep.subr.mxu0 %v2318
    %2394 = vmatpush1.msra.mxu0 %v2317
    %2395 = vmatprep.subr.mxu0 %v2320
    %2396 = vmatpush1.msra.mxu0 %v2319
    %2397 = vmatprep.subr.mxu0 %v2322
    %2398 = vmatpush1.msra.mxu0 %v2321
    %2399 = vmatprep.subr.mxu0 %v2324
    %2400 = vmatpush1.msra.mxu0 %v2323
    %2401 = vmatprep.subr.mxu0 %v2326
    %2402 = vmatpush1.msra.mxu0 %v2325
    %2403 = vmatprep.subr.mxu0 %v2328
    %2404 = vmatpush1.msra.mxu0 %v2327
    %2405 = vmatprep.subr.mxu0 %v2330
    %2406 = vmatpush1.msra.mxu0 %v2329
    %2407 = vmatprep.subr.mxu0 %v2332
    %2408 = vmatpush1.msra.mxu0 %v2331
    %2409 = vmatprep.subr.mxu0 %v2334
    %2410 = vmatpush1.msra.mxu0 %v2333
    %2411 = vmatprep.subr.mxu0 %v2336
    %2412 = vmatpush1.msra.mxu0 %v2335
    %2413 = vmatprep.subr.mxu0 %v2338
    %2414 = vmatpush1.msra.mxu0 %v2337
    %2415 = vmatprep.subr.mxu0 %v2340
    %2416 = vmatpush1.msra.mxu0 %v2339
    %2417 = vmatprep.subr.mxu0 %v2342
    %2418 = vmatpush1.msra.mxu0 %v2341
    %2419 = vmatprep.mubr.f32.mxu0 %v1764
    %2420 = vmatmul.mubr.f32.gmra.mrb[0].mxu0 %v1762
    %v2421 = vpop.f32.mrb[0].mxu0
    %v2422 = vadd.f32 %v2348, %v2421
    %v2423 = vpop.f32.mrb[0].mxu0
    %v2424 = vadd.f32 %v2352, %v2423
    %2425 = vdwg.mxu0
    %v2426 = vxor.u32 %v2422, 2147483648
    %v2427 = vxor.u32 %v2424, 2147483648
    %v2428 = vmul.f32 %v2426, 1.442695
    %v2429 = vpow.pop %v2428
    %v2430 = vmul.f32 %v2427, 1.442695
    %v2431 = vpow.pop %v2430
    %v2432 = vadd.f32 %v2429, 1.0
    %v2433 = vadd.f32 %v2431, 1.0
    %v2434 = vrcp.pop %v2432
    %v2435 = vmul.f32 1.0, %v2434
    %v2436 = vrcp.pop %v2433
    %v2437 = vmul.f32 1.0, %v2436
    %v2438 = vld [vmem:[#allocation23] sm:$0xff]
    %v2439 = vld [vmem:[#allocation23 + $0x8] sm:$0xff]
    %v2440 = vld [vmem:[#allocation23 + $0x10] sm:$0xff]
    %v2441 = vld [vmem:[#allocation23 + $0x18] sm:$0xff]
    %v2442 = vld [vmem:[#allocation23 + $0x20] sm:$0xff]
    %v2443 = vld [vmem:[#allocation23 + $0x28] sm:$0xff]
    %v2444 = vld [vmem:[#allocation23 + $0x30] sm:$0xff]
    %v2445 = vld [vmem:[#allocation23 + $0x38] sm:$0xff]
    %v2446 = vld [vmem:[#allocation23 + $0x40] sm:$0xff]
    %v2447 = vld [vmem:[#allocation23 + $0x48] sm:$0xff]
    %v2448 = vld [vmem:[#allocation23 + $0x50] sm:$0xff]
    %v2449 = vld [vmem:[#allocation23 + $0x58] sm:$0xff]
    %v2450 = vld [vmem:[#allocation23 + $0x60] sm:$0xff]
    %v2451 = vld [vmem:[#allocation23 + $0x68] sm:$0xff]
    %v2452 = vld [vmem:[#allocation23 + $0x70] sm:$0xff]
    %v2453 = vld [vmem:[#allocation23 + $0x78] sm:$0xff]
    %v2454 = vld [vmem:[#allocation23 + $0x80] sm:$0xff]
    %v2455 = vld [vmem:[#allocation23 + $0x88] sm:$0xff]
    %v2456 = vld [vmem:[#allocation23 + $0x90] sm:$0xff]
    %v2457 = vld [vmem:[#allocation23 + $0x98] sm:$0xff]
    %v2458 = vld [vmem:[#allocation23 + $0xa0] sm:$0xff]
    %v2459 = vld [vmem:[#allocation23 + $0xa8] sm:$0xff]
    %v2460 = vld [vmem:[#allocation23 + $0xb0] sm:$0xff]
    %v2461 = vld [vmem:[#allocation23 + $0xb8] sm:$0xff]
    %v2462 = vld [vmem:[#allocation23 + $0xc0] sm:$0xff]
    %v2463 = vld [vmem:[#allocation23 + $0xc8] sm:$0xff]
    %v2464 = vld [vmem:[#allocation23 + $0xd0] sm:$0xff]
    %v2465 = vld [vmem:[#allocation23 + $0xd8] sm:$0xff]
    %v2466 = vld [vmem:[#allocation23 + $0xe0] sm:$0xff]
    %v2467 = vld [vmem:[#allocation23 + $0xe8] sm:$0xff]
    %v2468 = vld [vmem:[#allocation23 + $0xf0] sm:$0xff]
    %v2469 = vld [vmem:[#allocation23 + $0xf8] sm:$0xff]
    %v2470 = vld [vmem:[#allocation23 + $0x100] sm:$0xff]
    %v2471 = vld [vmem:[#allocation23 + $0x108] sm:$0xff]
    %v2472 = vld [vmem:[#allocation23 + $0x110] sm:$0xff]
    %v2473 = vld [vmem:[#allocation23 + $0x118] sm:$0xff]
    %v2474 = vld [vmem:[#allocation23 + $0x120] sm:$0xff]
    %v2475 = vld [vmem:[#allocation23 + $0x128] sm:$0xff]
    %v2476 = vld [vmem:[#allocation23 + $0x130] sm:$0xff]
    %v2477 = vld [vmem:[#allocation23 + $0x138] sm:$0xff]
    %v2478 = vld [vmem:[#allocation23 + $0x140] sm:$0xff]
    %v2479 = vld [vmem:[#allocation23 + $0x148] sm:$0xff]
    %v2480 = vld [vmem:[#allocation23 + $0x150] sm:$0xff]
    %v2481 = vld [vmem:[#allocation23 + $0x158] sm:$0xff]
    %v2482 = vld [vmem:[#allocation23 + $0x160] sm:$0xff]
    %v2483 = vld [vmem:[#allocation23 + $0x168] sm:$0xff]
    %v2484 = vld [vmem:[#allocation23 + $0x170] sm:$0xff]
    %v2485 = vld [vmem:[#allocation23 + $0x178] sm:$0xff]
    %v2486 = vld [vmem:[#allocation23 + $0x180] sm:$0xff]
    %v2487 = vld [vmem:[#allocation23 + $0x188] sm:$0xff]
    %v2488 = vld [vmem:[#allocation23 + $0x190] sm:$0xff]
    %v2489 = vld [vmem:[#allocation23 + $0x198] sm:$0xff]
    %v2490 = vld [vmem:[#allocation23 + $0x1a0] sm:$0xff]
    %v2491 = vld [vmem:[#allocation23 + $0x1a8] sm:$0xff]
    %v2492 = vld [vmem:[#allocation23 + $0x1b0] sm:$0xff]
    %v2493 = vld [vmem:[#allocation23 + $0x1b8] sm:$0xff]
    %v2494 = vld [vmem:[#allocation23 + $0x1c0] sm:$0xff]
    %v2495 = vld [vmem:[#allocation23 + $0x1c8] sm:$0xff]
    %v2496 = vld [vmem:[#allocation23 + $0x1d0] sm:$0xff]
    %v2497 = vld [vmem:[#allocation23 + $0x1d8] sm:$0xff]
    %v2498 = vld [vmem:[#allocation23 + $0x1e0] sm:$0xff]
    %v2499 = vld [vmem:[#allocation23 + $0x1e8] sm:$0xff]
    %v2500 = vld [vmem:[#allocation23 + $0x1f0] sm:$0xff]
    %v2501 = vld [vmem:[#allocation23 + $0x1f8] sm:$0xff]
    %v2502 = vld [vmem:[#allocation25] sm:$0x3]
    %v2504 = vlaneseq
    %v2505 = vshrl.u32 %v2504, 7
    %v2506 = vsub.s32 0, %v2505
    %v2507 = vrot.slane %v2502, %v2506
    %v2508 = vlaneseq
    %v2509 = vshrl.u32 %v2508, 7
    %v2510 = vsub.s32 1, %v2509
    %v2511 = vrot.slane %v2502, %v2510
    %2514 = vmatprep.subr.mxu0 %v2439
    %2515 = vmatpush1.msra.mxu0 %v2438
    %2516 = vmatprep.subr.mxu0 %v2441
    %2517 = vmatpush1.msra.mxu0 %v2440
    %2518 = vmatprep.subr.mxu0 %v2443
    %2519 = vmatpush1.msra.mxu0 %v2442
    %2520 = vmatprep.subr.mxu0 %v2445
    %2521 = vmatpush1.msra.mxu0 %v2444
    %2522 = vmatprep.subr.mxu0 %v2447
    %2523 = vmatpush1.msra.mxu0 %v2446
    %2524 = vmatprep.subr.mxu0 %v2449
    %2525 = vmatpush1.msra.mxu0 %v2448
    %2526 = vmatprep.subr.mxu0 %v2451
    %2527 = vmatpush1.msra.mxu0 %v2450
    %2528 = vmatprep.subr.mxu0 %v2453
    %2529 = vmatpush1.msra.mxu0 %v2452
    %2530 = vmatprep.subr.mxu0 %v2455
    %2531 = vmatpush1.msra.mxu0 %v2454
    %2532 = vmatprep.subr.mxu0 %v2457
    %2533 = vmatpush1.msra.mxu0 %v2456
    %2534 = vmatprep.subr.mxu0 %v2459
    %2535 = vmatpush1.msra.mxu0 %v2458
    %2536 = vmatprep.subr.mxu0 %v2461
    %2537 = vmatpush1.msra.mxu0 %v2460
    %2538 = vmatprep.subr.mxu0 %v2463
    %2539 = vmatpush1.msra.mxu0 %v2462
    %2540 = vmatprep.subr.mxu0 %v2465
    %2541 = vmatpush1.msra.mxu0 %v2464
    %2542 = vmatprep.subr.mxu0 %v2467
    %2543 = vmatpush1.msra.mxu0 %v2466
    %2544 = vmatprep.subr.mxu0 %v2469
    %2545 = vmatpush1.msra.mxu0 %v2468
    %2546 = vmatprep.subr.mxu0 %v2471
    %2547 = vmatpush1.msra.mxu0 %v2470
    %2548 = vmatprep.subr.mxu0 %v2473
    %2549 = vmatpush1.msra.mxu0 %v2472
    %2550 = vmatprep.subr.mxu0 %v2475
    %2551 = vmatpush1.msra.mxu0 %v2474
    %2552 = vmatprep.subr.mxu0 %v2477
    %2553 = vmatpush1.msra.mxu0 %v2476
    %2554 = vmatprep.subr.mxu0 %v2479
    %2555 = vmatpush1.msra.mxu0 %v2478
    %2556 = vmatprep.subr.mxu0 %v2481
    %2557 = vmatpush1.msra.mxu0 %v2480
    %2558 = vmatprep.subr.mxu0 %v2483
    %2559 = vmatpush1.msra.mxu0 %v2482
    %2560 = vmatprep.subr.mxu0 %v2485
    %2561 = vmatpush1.msra.mxu0 %v2484
    %2562 = vmatprep.subr.mxu0 %v2487
    %2563 = vmatpush1.msra.mxu0 %v2486
    %2564 = vmatprep.subr.mxu0 %v2489
    %2565 = vmatpush1.msra.mxu0 %v2488
    %2566 = vmatprep.subr.mxu0 %v2491
    %2567 = vmatpush1.msra.mxu0 %v2490
    %2568 = vmatprep.subr.mxu0 %v2493
    %2569 = vmatpush1.msra.mxu0 %v2492
    %2570 = vmatprep.subr.mxu0 %v2495
    %2571 = vmatpush1.msra.mxu0 %v2494
    %2572 = vmatprep.subr.mxu0 %v2497
    %2573 = vmatpush1.msra.mxu0 %v2496
    %2574 = vmatprep.subr.mxu0 %v2499
    %2575 = vmatpush1.msra.mxu0 %v2498
    %2576 = vmatprep.subr.mxu0 %v2501
    %2577 = vmatpush1.msra.mxu0 %v2500
    %2578 = vmatprep.mubr.f32.mxu0 %v769
    %2579 = vmatmul.mubr.f32.gmra.mrb[0].mxu0 %v767
    %v2580 = vpop.f32.mrb[0].mxu0
    %v2581 = vadd.f32 %v2507, %v2580
    %v2582 = vpop.f32.mrb[0].mxu0
    %v2583 = vadd.f32 %v2511, %v2582
    %2584 = vdwg.mxu0
    %v2585 = vxor.u32 %v2581, 2147483648
    %v2586 = vxor.u32 %v2583, 2147483648
    %v2587 = vmul.f32 %v2585, 1.442695
    %v2588 = vpow.pop %v2587
    %v2589 = vmul.f32 %v2586, 1.442695
    %v2590 = vpow.pop %v2589
    %v2591 = vadd.f32 %v2588, 1.0
    %v2592 = vadd.f32 %v2590, 1.0
    %v2593 = vrcp.pop %v2591
    %v2594 = vmul.f32 1.0, %v2593
    %v2595 = vrcp.pop %v2592
    %v2596 = vmul.f32 1.0, %v2595
    %v2597 = vadd.f32 %v2594, 1.0
    %v2598 = vadd.f32 %v2596, 1.0
    %v2599 = vmul.f32 %v1762, %v2597
    %v2600 = vmul.f32 %v1764, %v2598
    %v2601 = vadd.f32 %v2435, 1.0
    %v2602 = vadd.f32 %v2437, 1.0
    %v2603 = vmul.f32 %v767, %v2601
    %v2604 = vmul.f32 %v769, %v2602
    %v2605 = vld [vmem:[#allocation26] sm:$0xff]
    %v2606 = vld [vmem:[#allocation26 + $0x8] sm:$0xff]
    %v2607 = vld [vmem:[#allocation26 + $0x10] sm:$0xff]
    %v2608 = vld [vmem:[#allocation26 + $0x18] sm:$0xff]
    %v2609 = vld [vmem:[#allocation26 + $0x20] sm:$0xff]
    %v2610 = vld [vmem:[#allocation26 + $0x28] sm:$0xff]
    %v2611 = vld [vmem:[#allocation26 + $0x30] sm:$0xff]
    %v2612 = vld [vmem:[#allocation26 + $0x38] sm:$0xff]
    %v2613 = vld [vmem:[#allocation26 + $0x40] sm:$0xff]
    %v2614 = vld [vmem:[#allocation26 + $0x48] sm:$0xff]
    %v2615 = vld [vmem:[#allocation26 + $0x50] sm:$0xff]
    %v2616 = vld [vmem:[#allocation26 + $0x58] sm:$0xff]
    %v2617 = vld [vmem:[#allocation26 + $0x60] sm:$0xff]
    %v2618 = vld [vmem:[#allocation26 + $0x68] sm:$0xff]
    %v2619 = vld [vmem:[#allocation26 + $0x70] sm:$0xff]
    %v2620 = vld [vmem:[#allocation26 + $0x78] sm:$0xff]
    %v2621 = vld [vmem:[#allocation26 + $0x80] sm:$0xff]
    %v2622 = vld [vmem:[#allocation26 + $0x88] sm:$0xff]
    %v2623 = vld [vmem:[#allocation26 + $0x90] sm:$0xff]
    %v2624 = vld [vmem:[#allocation26 + $0x98] sm:$0xff]
    %v2625 = vld [vmem:[#allocation26 + $0xa0] sm:$0xff]
    %v2626 = vld [vmem:[#allocation26 + $0xa8] sm:$0xff]
    %v2627 = vld [vmem:[#allocation26 + $0xb0] sm:$0xff]
    %v2628 = vld [vmem:[#allocation26 + $0xb8] sm:$0xff]
    %v2629 = vld [vmem:[#allocation26 + $0xc0] sm:$0xff]
    %v2630 = vld [vmem:[#allocation26 + $0xc8] sm:$0xff]
    %v2631 = vld [vmem:[#allocation26 + $0xd0] sm:$0xff]
    %v2632 = vld [vmem:[#allocation26 + $0xd8] sm:$0xff]
    %v2633 = vld [vmem:[#allocation26 + $0xe0] sm:$0xff]
    %v2634 = vld [vmem:[#allocation26 + $0xe8] sm:$0xff]
    %v2635 = vld [vmem:[#allocation26 + $0xf0] sm:$0xff]
    %v2636 = vld [vmem:[#allocation26 + $0xf8] sm:$0xff]
    %v2637 = vld [vmem:[#allocation26 + $0x100] sm:$0xff]
    %v2638 = vld [vmem:[#allocation26 + $0x108] sm:$0xff]
    %v2639 = vld [vmem:[#allocation26 + $0x110] sm:$0xff]
    %v2640 = vld [vmem:[#allocation26 + $0x118] sm:$0xff]
    %v2641 = vld [vmem:[#allocation26 + $0x120] sm:$0xff]
    %v2642 = vld [vmem:[#allocation26 + $0x128] sm:$0xff]
    %v2643 = vld [vmem:[#allocation26 + $0x130] sm:$0xff]
    %v2644 = vld [vmem:[#allocation26 + $0x138] sm:$0xff]
    %v2645 = vld [vmem:[#allocation26 + $0x140] sm:$0xff]
    %v2646 = vld [vmem:[#allocation26 + $0x148] sm:$0xff]
    %v2647 = vld [vmem:[#allocation26 + $0x150] sm:$0xff]
    %v2648 = vld [vmem:[#allocation26 + $0x158] sm:$0xff]
    %v2649 = vld [vmem:[#allocation26 + $0x160] sm:$0xff]
    %v2650 = vld [vmem:[#allocation26 + $0x168] sm:$0xff]
    %v2651 = vld [vmem:[#allocation26 + $0x170] sm:$0xff]
    %v2652 = vld [vmem:[#allocation26 + $0x178] sm:$0xff]
    %v2653 = vld [vmem:[#allocation26 + $0x180] sm:$0xff]
    %v2654 = vld [vmem:[#allocation26 + $0x188] sm:$0xff]
    %v2655 = vld [vmem:[#allocation26 + $0x190] sm:$0xff]
    %v2656 = vld [vmem:[#allocation26 + $0x198] sm:$0xff]
    %v2657 = vld [vmem:[#allocation26 + $0x1a0] sm:$0xff]
    %v2658 = vld [vmem:[#allocation26 + $0x1a8] sm:$0xff]
    %v2659 = vld [vmem:[#allocation26 + $0x1b0] sm:$0xff]
    %v2660 = vld [vmem:[#allocation26 + $0x1b8] sm:$0xff]
    %v2661 = vld [vmem:[#allocation26 + $0x1c0] sm:$0xff]
    %v2662 = vld [vmem:[#allocation26 + $0x1c8] sm:$0xff]
    %v2663 = vld [vmem:[#allocation26 + $0x1d0] sm:$0xff]
    %v2664 = vld [vmem:[#allocation26 + $0x1d8] sm:$0xff]
    %v2665 = vld [vmem:[#allocation26 + $0x1e0] sm:$0xff]
    %v2666 = vld [vmem:[#allocation26 + $0x1e8] sm:$0xff]
    %v2667 = vld [vmem:[#allocation26 + $0x1f0] sm:$0xff]
    %v2668 = vld [vmem:[#allocation26 + $0x1f8] sm:$0xff]
    %v2669 = vld [vmem:[#allocation26 + $0x200] sm:$0xff]
    %v2670 = vld [vmem:[#allocation26 + $0x208] sm:$0xff]
    %v2671 = vld [vmem:[#allocation26 + $0x210] sm:$0xff]
    %v2672 = vld [vmem:[#allocation26 + $0x218] sm:$0xff]
    %v2673 = vld [vmem:[#allocation26 + $0x220] sm:$0xff]
    %v2674 = vld [vmem:[#allocation26 + $0x228] sm:$0xff]
    %v2675 = vld [vmem:[#allocation26 + $0x230] sm:$0xff]
    %v2676 = vld [vmem:[#allocation26 + $0x238] sm:$0xff]
    %v2677 = vld [vmem:[#allocation26 + $0x240] sm:$0xff]
    %v2678 = vld [vmem:[#allocation26 + $0x248] sm:$0xff]
    %v2679 = vld [vmem:[#allocation26 + $0x250] sm:$0xff]
    %v2680 = vld [vmem:[#allocation26 + $0x258] sm:$0xff]
    %v2681 = vld [vmem:[#allocation26 + $0x260] sm:$0xff]
    %v2682 = vld [vmem:[#allocation26 + $0x268] sm:$0xff]
    %v2683 = vld [vmem:[#allocation26 + $0x270] sm:$0xff]
    %v2684 = vld [vmem:[#allocation26 + $0x278] sm:$0xff]
    %v2685 = vld [vmem:[#allocation26 + $0x280] sm:$0xff]
    %v2686 = vld [vmem:[#allocation26 + $0x288] sm:$0xff]
    %v2687 = vld [vmem:[#allocation26 + $0x290] sm:$0xff]
    %v2688 = vld [vmem:[#allocation26 + $0x298] sm:$0xff]
    %v2689 = vld [vmem:[#allocation26 + $0x2a0] sm:$0xff]
    %v2690 = vld [vmem:[#allocation26 + $0x2a8] sm:$0xff]
    %v2691 = vld [vmem:[#allocation26 + $0x2b0] sm:$0xff]
    %v2692 = vld [vmem:[#allocation26 + $0x2b8] sm:$0xff]
    %v2693 = vld [vmem:[#allocation26 + $0x2c0] sm:$0xff]
    %v2694 = vld [vmem:[#allocation26 + $0x2c8] sm:$0xff]
    %v2695 = vld [vmem:[#allocation26 + $0x2d0] sm:$0xff]
    %v2696 = vld [vmem:[#allocation26 + $0x2d8] sm:$0xff]
    %v2697 = vld [vmem:[#allocation26 + $0x2e0] sm:$0xff]
    %v2698 = vld [vmem:[#allocation26 + $0x2e8] sm:$0xff]
    %v2699 = vld [vmem:[#allocation26 + $0x2f0] sm:$0xff]
    %v2700 = vld [vmem:[#allocation26 + $0x2f8] sm:$0xff]
    %v2701 = vld [vmem:[#allocation26 + $0x300] sm:$0xff]
    %v2702 = vld [vmem:[#allocation26 + $0x308] sm:$0xff]
    %v2703 = vld [vmem:[#allocation26 + $0x310] sm:$0xff]
    %v2704 = vld [vmem:[#allocation26 + $0x318] sm:$0xff]
    %v2705 = vld [vmem:[#allocation26 + $0x320] sm:$0xff]
    %v2706 = vld [vmem:[#allocation26 + $0x328] sm:$0xff]
    %v2707 = vld [vmem:[#allocation26 + $0x330] sm:$0xff]
    %v2708 = vld [vmem:[#allocation26 + $0x338] sm:$0xff]
    %v2709 = vld [vmem:[#allocation26 + $0x340] sm:$0xff]
    %v2710 = vld [vmem:[#allocation26 + $0x348] sm:$0xff]
    %v2711 = vld [vmem:[#allocation26 + $0x350] sm:$0xff]
    %v2712 = vld [vmem:[#allocation26 + $0x358] sm:$0xff]
    %v2713 = vld [vmem:[#allocation26 + $0x360] sm:$0xff]
    %v2714 = vld [vmem:[#allocation26 + $0x368] sm:$0xff]
    %v2715 = vld [vmem:[#allocation26 + $0x370] sm:$0xff]
    %v2716 = vld [vmem:[#allocation26 + $0x378] sm:$0xff]
    %v2717 = vld [vmem:[#allocation26 + $0x380] sm:$0xff]
    %v2718 = vld [vmem:[#allocation26 + $0x388] sm:$0xff]
    %v2719 = vld [vmem:[#allocation26 + $0x390] sm:$0xff]
    %v2720 = vld [vmem:[#allocation26 + $0x398] sm:$0xff]
    %v2721 = vld [vmem:[#allocation26 + $0x3a0] sm:$0xff]
    %v2722 = vld [vmem:[#allocation26 + $0x3a8] sm:$0xff]
    %v2723 = vld [vmem:[#allocation26 + $0x3b0] sm:$0xff]
    %v2724 = vld [vmem:[#allocation26 + $0x3b8] sm:$0xff]
    %v2725 = vld [vmem:[#allocation26 + $0x3c0] sm:$0xff]
    %v2726 = vld [vmem:[#allocation26 + $0x3c8] sm:$0xff]
    %v2727 = vld [vmem:[#allocation26 + $0x3d0] sm:$0xff]
    %v2728 = vld [vmem:[#allocation26 + $0x3d8] sm:$0xff]
    %v2729 = vld [vmem:[#allocation26 + $0x3e0] sm:$0xff]
    %v2730 = vld [vmem:[#allocation26 + $0x3e8] sm:$0xff]
    %v2731 = vld [vmem:[#allocation26 + $0x3f0] sm:$0xff]
    %v2732 = vld [vmem:[#allocation26 + $0x3f8] sm:$0xff]
    %2733 = vmatprep.subr.mxu0 %v2670
    %2734 = vmatpush1.msra.mxu0 %v2669
    %2735 = vmatprep.subr.mxu0 %v2672
    %2736 = vmatpush1.msra.mxu0 %v2671
    %2737 = vmatprep.subr.mxu0 %v2674
    %2738 = vmatpush1.msra.mxu0 %v2673
    %2739 = vmatprep.subr.mxu0 %v2676
    %2740 = vmatpush1.msra.mxu0 %v2675
    %2741 = vmatprep.subr.mxu0 %v2678
    %2742 = vmatpush1.msra.mxu0 %v2677
    %2743 = vmatprep.subr.mxu0 %v2680
    %2744 = vmatpush1.msra.mxu0 %v2679
    %2745 = vmatprep.subr.mxu0 %v2682
    %2746 = vmatpush1.msra.mxu0 %v2681
    %2747 = vmatprep.subr.mxu0 %v2684
    %2748 = vmatpush1.msra.mxu0 %v2683
    %2749 = vmatprep.subr.mxu0 %v2686
    %2750 = vmatpush1.msra.mxu0 %v2685
    %2751 = vmatprep.subr.mxu0 %v2688
    %2752 = vmatpush1.msra.mxu0 %v2687
    %2753 = vmatprep.subr.mxu0 %v2690
    %2754 = vmatpush1.msra.mxu0 %v2689
    %2755 = vmatprep.subr.mxu0 %v2692
    %2756 = vmatpush1.msra.mxu0 %v2691
    %2757 = vmatprep.subr.mxu0 %v2694
    %2758 = vmatpush1.msra.mxu0 %v2693
    %2759 = vmatprep.subr.mxu0 %v2696
    %2760 = vmatpush1.msra.mxu0 %v2695
    %2761 = vmatprep.subr.mxu0 %v2698
    %2762 = vmatpush1.msra.mxu0 %v2697
    %2763 = vmatprep.subr.mxu0 %v2700
    %2764 = vmatpush1.msra.mxu0 %v2699
    %2765 = vmatprep.subr.mxu0 %v2702
    %2766 = vmatpush1.msra.mxu0 %v2701
    %2767 = vmatprep.subr.mxu0 %v2704
    %2768 = vmatpush1.msra.mxu0 %v2703
    %2769 = vmatprep.subr.mxu0 %v2706
    %2770 = vmatpush1.msra.mxu0 %v2705
    %2771 = vmatprep.subr.mxu0 %v2708
    %2772 = vmatpush1.msra.mxu0 %v2707
    %2773 = vmatprep.subr.mxu0 %v2710
    %2774 = vmatpush1.msra.mxu0 %v2709
    %2775 = vmatprep.subr.mxu0 %v2712
    %2776 = vmatpush1.msra.mxu0 %v2711
    %2777 = vmatprep.subr.mxu0 %v2714
    %2778 = vmatpush1.msra.mxu0 %v2713
    %2779 = vmatprep.subr.mxu0 %v2716
    %2780 = vmatpush1.msra.mxu0 %v2715
    %2781 = vmatprep.subr.mxu0 %v2718
    %2782 = vmatpush1.msra.mxu0 %v2717
    %2783 = vmatprep.subr.mxu0 %v2720
    %2784 = vmatpush1.msra.mxu0 %v2719
    %2785 = vmatprep.subr.mxu0 %v2722
    %2786 = vmatpush1.msra.mxu0 %v2721
    %2787 = vmatprep.subr.mxu0 %v2724
    %2788 = vmatpush1.msra.mxu0 %v2723
    %2789 = vmatprep.subr.mxu0 %v2726
    %2790 = vmatpush1.msra.mxu0 %v2725
    %2791 = vmatprep.subr.mxu0 %v2728
    %2792 = vmatpush1.msra.mxu0 %v2727
    %2793 = vmatprep.subr.mxu0 %v2730
    %2794 = vmatpush1.msra.mxu0 %v2729
    %2795 = vmatprep.subr.mxu0 %v2732
    %2796 = vmatpush1.msra.mxu0 %v2731
    %2797 = vmatprep.mubr.f32.mxu0 %v2604
    %2798 = vmatmul.mubr.f32.gmra.mrb[0].mxu0 %v2603
    %v2799 = vpop.f32.mrb[0].mxu0
    %v2800 = vadd.f32 0.0, %v2799
    %v2801 = vpop.f32.mrb[0].mxu0
    %v2802 = vadd.f32 0.0, %v2801
    %2803 = vdwg.mxu0
    %2804 = vmatprep.subr.mxu0 %v2606
    %2805 = vmatpush1.msra.mxu0 %v2605
    %2806 = vmatprep.subr.mxu0 %v2608
    %2807 = vmatpush1.msra.mxu0 %v2607
    %2808 = vmatprep.subr.mxu0 %v2610
    %2809 = vmatpush1.msra.mxu0 %v2609
    %2810 = vmatprep.subr.mxu0 %v2612
    %2811 = vmatpush1.msra.mxu0 %v2611
    %2812 = vmatprep.subr.mxu0 %v2614
    %2813 = vmatpush1.msra.mxu0 %v2613
    %2814 = vmatprep.subr.mxu0 %v2616
    %2815 = vmatpush1.msra.mxu0 %v2615
    %2816 = vmatprep.subr.mxu0 %v2618
    %2817 = vmatpush1.msra.mxu0 %v2617
    %2818 = vmatprep.subr.mxu0 %v2620
    %2819 = vmatpush1.msra.mxu0 %v2619
    %2820 = vmatprep.subr.mxu0 %v2622
    %2821 = vmatpush1.msra.mxu0 %v2621
    %2822 = vmatprep.subr.mxu0 %v2624
    %2823 = vmatpush1.msra.mxu0 %v2623
    %2824 = vmatprep.subr.mxu0 %v2626
    %2825 = vmatpush1.msra.mxu0 %v2625
    %2826 = vmatprep.subr.mxu0 %v2628
    %2827 = vmatpush1.msra.mxu0 %v2627
    %2828 = vmatprep.subr.mxu0 %v2630
    %2829 = vmatpush1.msra.mxu0 %v2629
    %2830 = vmatprep.subr.mxu0 %v2632
    %2831 = vmatpush1.msra.mxu0 %v2631
    %2832 = vmatprep.subr.mxu0 %v2634
    %2833 = vmatpush1.msra.mxu0 %v2633
    %2834 = vmatprep.subr.mxu0 %v2636
    %2835 = vmatpush1.msra.mxu0 %v2635
    %2836 = vmatprep.subr.mxu0 %v2638
    %2837 = vmatpush1.msra.mxu0 %v2637
    %2838 = vmatprep.subr.mxu0 %v2640
    %2839 = vmatpush1.msra.mxu0 %v2639
    %2840 = vmatprep.subr.mxu0 %v2642
    %2841 = vmatpush1.msra.mxu0 %v2641
    %2842 = vmatprep.subr.mxu0 %v2644
    %2843 = vmatpush1.msra.mxu0 %v2643
    %2844 = vmatprep.subr.mxu0 %v2646
    %2845 = vmatpush1.msra.mxu0 %v2645
    %2846 = vmatprep.subr.mxu0 %v2648
    %2847 = vmatpush1.msra.mxu0 %v2647
    %2848 = vmatprep.subr.mxu0 %v2650
    %2849 = vmatpush1.msra.mxu0 %v2649
    %2850 = vmatprep.subr.mxu0 %v2652
    %2851 = vmatpush1.msra.mxu0 %v2651
    %2852 = vmatprep.subr.mxu0 %v2654
    %2853 = vmatpush1.msra.mxu0 %v2653
    %2854 = vmatprep.subr.mxu0 %v2656
    %2855 = vmatpush1.msra.mxu0 %v2655
    %2856 = vmatprep.subr.mxu0 %v2658
    %2857 = vmatpush1.msra.mxu0 %v2657
    %2858 = vmatprep.subr.mxu0 %v2660
    %2859 = vmatpush1.msra.mxu0 %v2659
    %2860 = vmatprep.subr.mxu0 %v2662
    %2861 = vmatpush1.msra.mxu0 %v2661
    %2862 = vmatprep.subr.mxu0 %v2664
    %2863 = vmatpush1.msra.mxu0 %v2663
    %2864 = vmatprep.subr.mxu0 %v2666
    %2865 = vmatpush1.msra.mxu0 %v2665
    %2866 = vmatprep.subr.mxu0 %v2668
    %2867 = vmatpush1.msra.mxu0 %v2667
    %2868 = vmatprep.mubr.f32.mxu0 %v2600
    %2869 = vmatmul.mubr.f32.gmra.mrb[0].mxu0 %v2599
    %v2870 = vpop.f32.mrb[0].mxu0
    %v2871 = vadd.f32 %v2800, %v2870
    %v2872 = vpop.f32.mrb[0].mxu0
    %v2873 = vadd.f32 %v2802, %v2872
    %2874 = vdwg.mxu0
    %v2875 = vld [vmem:[#allocation28] sm:$0x3]
    %v2877 = vlaneseq
    %v2878 = vshrl.u32 %v2877, 7
    %v2879 = vsub.s32 0, %v2878
    %v2880 = vrot.slane %v2875, %v2879
    %v2881 = vlaneseq
    %v2882 = vshrl.u32 %v2881, 7
    %v2883 = vsub.s32 1, %v2882
    %v2884 = vrot.slane %v2875, %v2883
    %v2887 = vadd.f32 %v2871, %v2880
    %v2888 = vadd.f32 %v2873, %v2884
    %v2889 = vmax.f32 %v2887, 0.0
    %v2890 = vmax.f32 %v2888, 0.0
    %2891 = vmatprep.subr.mxu0 %v2280
    %2892 = vmatpush1.msra.mxu0 %v2279
    %2893 = vmatprep.subr.mxu0 %v2282
    %2894 = vmatpush1.msra.mxu0 %v2281
    %2895 = vmatprep.subr.mxu0 %v2284
    %2896 = vmatpush1.msra.mxu0 %v2283
    %2897 = vmatprep.subr.mxu0 %v2286
    %2898 = vmatpush1.msra.mxu0 %v2285
    %2899 = vmatprep.subr.mxu0 %v2288
    %2900 = vmatpush1.msra.mxu0 %v2287
    %2901 = vmatprep.subr.mxu0 %v2290
    %2902 = vmatpush1.msra.mxu0 %v2289
    %2903 = vmatprep.subr.mxu0 %v2292
    %2904 = vmatpush1.msra.mxu0 %v2291
    %2905 = vmatprep.subr.mxu0 %v2294
    %2906 = vmatpush1.msra.mxu0 %v2293
    %2907 = vmatprep.subr.mxu0 %v2296
    %2908 = vmatpush1.msra.mxu0 %v2295
    %2909 = vmatprep.subr.mxu0 %v2298
    %2910 = vmatpush1.msra.mxu0 %v2297
    %2911 = vmatprep.subr.mxu0 %v2300
    %2912 = vmatpush1.msra.mxu0 %v2299
    %2913 = vmatprep.subr.mxu0 %v2302
    %2914 = vmatpush1.msra.mxu0 %v2301
    %2915 = vmatprep.subr.mxu0 %v2304
    %2916 = vmatpush1.msra.mxu0 %v2303
    %2917 = vmatprep.subr.mxu0 %v2306
    %2918 = vmatpush1.msra.mxu0 %v2305
    %2919 = vmatprep.subr.mxu0 %v2308
    %2920 = vmatpush1.msra.mxu0 %v2307
    %2921 = vmatprep.subr.mxu0 %v2310
    %2922 = vmatpush1.msra.mxu0 %v2309
    %2923 = vmatprep.subr.mxu0 %v2312
    %2924 = vmatpush1.msra.mxu0 %v2311
    %2925 = vmatprep.subr.mxu0 %v2314
    %2926 = vmatpush1.msra.mxu0 %v2313
    %2927 = vmatprep.subr.mxu0 %v2316
    %2928 = vmatpush1.msra.mxu0 %v2315
    %2929 = vmatprep.subr.mxu0 %v2318
    %2930 = vmatpush1.msra.mxu0 %v2317
    %2931 = vmatprep.subr.mxu0 %v2320
    %2932 = vmatpush1.msra.mxu0 %v2319
    %2933 = vmatprep.subr.mxu0 %v2322
    %2934 = vmatpush1.msra.mxu0 %v2321
    %2935 = vmatprep.subr.mxu0 %v2324
    %2936 = vmatpush1.msra.mxu0 %v2323
    %2937 = vmatprep.subr.mxu0 %v2326
    %2938 = vmatpush1.msra.mxu0 %v2325
    %2939 = vmatprep.subr.mxu0 %v2328
    %2940 = vmatpush1.msra.mxu0 %v2327
    %2941 = vmatprep.subr.mxu0 %v2330
    %2942 = vmatpush1.msra.mxu0 %v2329
    %2943 = vmatprep.subr.mxu0 %v2332
    %2944 = vmatpush1.msra.mxu0 %v2331
    %2945 = vmatprep.subr.mxu0 %v2334
    %2946 = vmatpush1.msra.mxu0 %v2333
    %2947 = vmatprep.subr.mxu0 %v2336
    %2948 = vmatpush1.msra.mxu0 %v2335
    %2949 = vmatprep.subr.mxu0 %v2338
    %2950 = vmatpush1.msra.mxu0 %v2337
    %2951 = vmatprep.subr.mxu0 %v2340
    %2952 = vmatpush1.msra.mxu0 %v2339
    %2953 = vmatprep.subr.mxu0 %v2342
    %2954 = vmatpush1.msra.mxu0 %v2341
    %2955 = vmatprep.mubr.f32.mxu0 %v2277
    %2956 = vmatmul.mubr.f32.gmra.mrb[0].mxu0 %v2275
    %v2957 = vpop.f32.mrb[0].mxu0
    %v2958 = vadd.f32 %v2348, %v2957
    %v2959 = vpop.f32.mrb[0].mxu0
    %v2960 = vadd.f32 %v2352, %v2959
    %2961 = vdwg.mxu0
    %v2962 = vxor.u32 %v2958, 2147483648
    %v2963 = vxor.u32 %v2960, 2147483648
    %v2964 = vmul.f32 %v2962, 1.442695
    %v2965 = vpow.pop %v2964
    %v2966 = vmul.f32 %v2963, 1.442695
    %v2967 = vpow.pop %v2966
    %v2968 = vadd.f32 %v2965, 1.0
    %v2969 = vadd.f32 %v2967, 1.0
    %v2970 = vrcp.pop %v2968
    %v2971 = vmul.f32 1.0, %v2970
    %v2972 = vrcp.pop %v2969
    %v2973 = vmul.f32 1.0, %v2972
    %v2974 = vmul.f32 %v2275, %v2597
    %v2975 = vmul.f32 %v2277, %v2598
    %v2976 = vadd.f32 %v2971, 1.0
    %v2977 = vadd.f32 %v2973, 1.0
    %v2978 = vmul.f32 %v767, %v2976
    %v2979 = vmul.f32 %v769, %v2977
    %2980 = vmatprep.subr.mxu0 %v2670
    %2981 = vmatpush1.msra.mxu0 %v2669
    %2982 = vmatprep.subr.mxu0 %v2672
    %2983 = vmatpush1.msra.mxu0 %v2671
    %2984 = vmatprep.subr.mxu0 %v2674
    %2985 = vmatpush1.msra.mxu0 %v2673
    %2986 = vmatprep.subr.mxu0 %v2676
    %2987 = vmatpush1.msra.mxu0 %v2675
    %2988 = vmatprep.subr.mxu0 %v2678
    %2989 = vmatpush1.msra.mxu0 %v2677
    %2990 = vmatprep.subr.mxu0 %v2680
    %2991 = vmatpush1.msra.mxu0 %v2679
    %2992 = vmatprep.subr.mxu0 %v2682
    %2993 = vmatpush1.msra.mxu0 %v2681
    %2994 = vmatprep.subr.mxu0 %v2684
    %2995 = vmatpush1.msra.mxu0 %v2683
    %2996 = vmatprep.subr.mxu0 %v2686
    %2997 = vmatpush1.msra.mxu0 %v2685
    %2998 = vmatprep.subr.mxu0 %v2688
    %2999 = vmatpush1.msra.mxu0 %v2687
    %3000 = vmatprep.subr.mxu0 %v2690
    %3001 = vmatpush1.msra.mxu0 %v2689
    %3002 = vmatprep.subr.mxu0 %v2692
    %3003 = vmatpush1.msra.mxu0 %v2691
    %3004 = vmatprep.subr.mxu0 %v2694
    %3005 = vmatpush1.msra.mxu0 %v2693
    %3006 = vmatprep.subr.mxu0 %v2696
    %3007 = vmatpush1.msra.mxu0 %v2695
    %3008 = vmatprep.subr.mxu0 %v2698
    %3009 = vmatpush1.msra.mxu0 %v2697
    %3010 = vmatprep.subr.mxu0 %v2700
    %3011 = vmatpush1.msra.mxu0 %v2699
    %3012 = vmatprep.subr.mxu0 %v2702
    %3013 = vmatpush1.msra.mxu0 %v2701
    %3014 = vmatprep.subr.mxu0 %v2704
    %3015 = vmatpush1.msra.mxu0 %v2703
    %3016 = vmatprep.subr.mxu0 %v2706
    %3017 = vmatpush1.msra.mxu0 %v2705
    %3018 = vmatprep.subr.mxu0 %v2708
    %3019 = vmatpush1.msra.mxu0 %v2707
    %3020 = vmatprep.subr.mxu0 %v2710
    %3021 = vmatpush1.msra.mxu0 %v2709
    %3022 = vmatprep.subr.mxu0 %v2712
    %3023 = vmatpush1.msra.mxu0 %v2711
    %3024 = vmatprep.subr.mxu0 %v2714
    %3025 = vmatpush1.msra.mxu0 %v2713
    %3026 = vmatprep.subr.mxu0 %v2716
    %3027 = vmatpush1.msra.mxu0 %v2715
    %3028 = vmatprep.subr.mxu0 %v2718
    %3029 = vmatpush1.msra.mxu0 %v2717
    %3030 = vmatprep.subr.mxu0 %v2720
    %3031 = vmatpush1.msra.mxu0 %v2719
    %3032 = vmatprep.subr.mxu0 %v2722
    %3033 = vmatpush1.msra.mxu0 %v2721
    %3034 = vmatprep.subr.mxu0 %v2724
    %3035 = vmatpush1.msra.mxu0 %v2723
    %3036 = vmatprep.subr.mxu0 %v2726
    %3037 = vmatpush1.msra.mxu0 %v2725
    %3038 = vmatprep.subr.mxu0 %v2728
    %3039 = vmatpush1.msra.mxu0 %v2727
    %3040 = vmatprep.subr.mxu0 %v2730
    %3041 = vmatpush1.msra.mxu0 %v2729
    %3042 = vmatprep.subr.mxu0 %v2732
    %3043 = vmatpush1.msra.mxu0 %v2731
    %3044 = vmatprep.mubr.f32.mxu0 %v2979
    %3045 = vmatmul.mubr.f32.gmra.mrb[0].mxu0 %v2978
    %v3046 = vpop.f32.mrb[0].mxu0
    %v3047 = vadd.f32 0.0, %v3046
    %v3048 = vpop.f32.mrb[0].mxu0
    %v3049 = vadd.f32 0.0, %v3048
    %3050 = vdwg.mxu0
    %3051 = vmatprep.subr.mxu0 %v2606
    %3052 = vmatpush1.msra.mxu0 %v2605
    %3053 = vmatprep.subr.mxu0 %v2608
    %3054 = vmatpush1.msra.mxu0 %v2607
    %3055 = vmatprep.subr.mxu0 %v2610
    %3056 = vmatpush1.msra.mxu0 %v2609
    %3057 = vmatprep.subr.mxu0 %v2612
    %3058 = vmatpush1.msra.mxu0 %v2611
    %3059 = vmatprep.subr.mxu0 %v2614
    %3060 = vmatpush1.msra.mxu0 %v2613
    %3061 = vmatprep.subr.mxu0 %v2616
    %3062 = vmatpush1.msra.mxu0 %v2615
    %3063 = vmatprep.subr.mxu0 %v2618
    %3064 = vmatpush1.msra.mxu0 %v2617
    %3065 = vmatprep.subr.mxu0 %v2620
    %3066 = vmatpush1.msra.mxu0 %v2619
    %3067 = vmatprep.subr.mxu0 %v2622
    %3068 = vmatpush1.msra.mxu0 %v2621
    %3069 = vmatprep.subr.mxu0 %v2624
    %3070 = vmatpush1.msra.mxu0 %v2623
    %3071 = vmatprep.subr.mxu0 %v2626
    %3072 = vmatpush1.msra.mxu0 %v2625
    %3073 = vmatprep.subr.mxu0 %v2628
    %3074 = vmatpush1.msra.mxu0 %v2627
    %3075 = vmatprep.subr.mxu0 %v2630
    %3076 = vmatpush1.msra.mxu0 %v2629
    %3077 = vmatprep.subr.mxu0 %v2632
    %3078 = vmatpush1.msra.mxu0 %v2631
    %3079 = vmatprep.subr.mxu0 %v2634
    %3080 = vmatpush1.msra.mxu0 %v2633
    %3081 = vmatprep.subr.mxu0 %v2636
    %3082 = vmatpush1.msra.mxu0 %v2635
    %3083 = vmatprep.subr.mxu0 %v2638
    %3084 = vmatpush1.msra.mxu0 %v2637
    %3085 = vmatprep.subr.mxu0 %v2640
    %3086 = vmatpush1.msra.mxu0 %v2639
    %3087 = vmatprep.subr.mxu0 %v2642
    %3088 = vmatpush1.msra.mxu0 %v2641
    %3089 = vmatprep.subr.mxu0 %v2644
    %3090 = vmatpush1.msra.mxu0 %v2643
    %3091 = vmatprep.subr.mxu0 %v2646
    %3092 = vmatpush1.msra.mxu0 %v2645
    %3093 = vmatprep.subr.mxu0 %v2648
    %3094 = vmatpush1.msra.mxu0 %v2647
    %3095 = vmatprep.subr.mxu0 %v2650
    %3096 = vmatpush1.msra.mxu0 %v2649
    %3097 = vmatprep.subr.mxu0 %v2652
    %3098 = vmatpush1.msra.mxu0 %v2651
    %3099 = vmatprep.subr.mxu0 %v2654
    %3100 = vmatpush1.msra.mxu0 %v2653
    %3101 = vmatprep.subr.mxu0 %v2656
    %3102 = vmatpush1.msra.mxu0 %v2655
    %3103 = vmatprep.subr.mxu0 %v2658
    %3104 = vmatpush1.msra.mxu0 %v2657
    %3105 = vmatprep.subr.mxu0 %v2660
    %3106 = vmatpush1.msra.mxu0 %v2659
    %3107 = vmatprep.subr.mxu0 %v2662
    %3108 = vmatpush1.msra.mxu0 %v2661
    %3109 = vmatprep.subr.mxu0 %v2664
    %3110 = vmatpush1.msra.mxu0 %v2663
    %3111 = vmatprep.subr.mxu0 %v2666
    %3112 = vmatpush1.msra.mxu0 %v2665
    %3113 = vmatprep.subr.mxu0 %v2668
    %3114 = vmatpush1.msra.mxu0 %v2667
    %3115 = vmatprep.mubr.f32.mxu0 %v2975
    %3116 = vmatmul.mubr.f32.gmra.mrb[0].mxu0 %v2974
    %v3117 = vpop.f32.mrb[0].mxu0
    %v3118 = vadd.f32 %v3047, %v3117
    %v3119 = vpop.f32.mrb[0].mxu0
    %v3120 = vadd.f32 %v3049, %v3119
    %3121 = vdwg.mxu0
    %v3122 = vadd.f32 %v3118, %v2880
    %v3123 = vadd.f32 %v3120, %v2884
    %v3124 = vmax.f32 %v3122, 0.0
    %v3125 = vmax.f32 %v3123, 0.0
    %v3126 = vld [vmem:[#allocation29] sm:$0xff]
    %v3127 = vld [vmem:[#allocation29 + $0x8] sm:$0xff]
    %v3128 = vld [vmem:[#allocation29 + $0x10] sm:$0xff]
    %v3129 = vld [vmem:[#allocation29 + $0x18] sm:$0xff]
    %v3130 = vld [vmem:[#allocation29 + $0x20] sm:$0xff]
    %v3131 = vld [vmem:[#allocation29 + $0x28] sm:$0xff]
    %v3132 = vld [vmem:[#allocation29 + $0x30] sm:$0xff]
    %v3133 = vld [vmem:[#allocation29 + $0x38] sm:$0xff]
    %v3134 = vld [vmem:[#allocation29 + $0x40] sm:$0xff]
    %v3135 = vld [vmem:[#allocation29 + $0x48] sm:$0xff]
    %v3136 = vld [vmem:[#allocation29 + $0x50] sm:$0xff]
    %v3137 = vld [vmem:[#allocation29 + $0x58] sm:$0xff]
    %v3138 = vld [vmem:[#allocation29 + $0x60] sm:$0xff]
    %v3139 = vld [vmem:[#allocation29 + $0x68] sm:$0xff]
    %v3140 = vld [vmem:[#allocation29 + $0x70] sm:$0xff]
    %v3141 = vld [vmem:[#allocation29 + $0x78] sm:$0xff]
    %v3142 = vld [vmem:[#allocation29 + $0x80] sm:$0xff]
    %v3143 = vld [vmem:[#allocation29 + $0x88] sm:$0xff]
    %v3144 = vld [vmem:[#allocation29 + $0x90] sm:$0xff]
    %v3145 = vld [vmem:[#allocation29 + $0x98] sm:$0xff]
    %v3146 = vld [vmem:[#allocation29 + $0xa0] sm:$0xff]
    %v3147 = vld [vmem:[#allocation29 + $0xa8] sm:$0xff]
    %v3148 = vld [vmem:[#allocation29 + $0xb0] sm:$0xff]
    %v3149 = vld [vmem:[#allocation29 + $0xb8] sm:$0xff]
    %v3150 = vld [vmem:[#allocation29 + $0xc0] sm:$0xff]
    %v3151 = vld [vmem:[#allocation29 + $0xc8] sm:$0xff]
    %v3152 = vld [vmem:[#allocation29 + $0xd0] sm:$0xff]
    %v3153 = vld [vmem:[#allocation29 + $0xd8] sm:$0xff]
    %v3154 = vld [vmem:[#allocation29 + $0xe0] sm:$0xff]
    %v3155 = vld [vmem:[#allocation29 + $0xe8] sm:$0xff]
    %v3156 = vld [vmem:[#allocation29 + $0xf0] sm:$0xff]
    %v3157 = vld [vmem:[#allocation29 + $0xf8] sm:$0xff]
    %v3158 = vld [vmem:[#allocation29 + $0x100] sm:$0xff]
    %v3159 = vld [vmem:[#allocation29 + $0x108] sm:$0xff]
    %v3160 = vld [vmem:[#allocation29 + $0x110] sm:$0xff]
    %v3161 = vld [vmem:[#allocation29 + $0x118] sm:$0xff]
    %v3162 = vld [vmem:[#allocation29 + $0x120] sm:$0xff]
    %v3163 = vld [vmem:[#allocation29 + $0x128] sm:$0xff]
    %v3164 = vld [vmem:[#allocation29 + $0x130] sm:$0xff]
    %v3165 = vld [vmem:[#allocation29 + $0x138] sm:$0xff]
    %v3166 = vld [vmem:[#allocation29 + $0x140] sm:$0xff]
    %v3167 = vld [vmem:[#allocation29 + $0x148] sm:$0xff]
    %v3168 = vld [vmem:[#allocation29 + $0x150] sm:$0xff]
    %v3169 = vld [vmem:[#allocation29 + $0x158] sm:$0xff]
    %v3170 = vld [vmem:[#allocation29 + $0x160] sm:$0xff]
    %v3171 = vld [vmem:[#allocation29 + $0x168] sm:$0xff]
    %v3172 = vld [vmem:[#allocation29 + $0x170] sm:$0xff]
    %v3173 = vld [vmem:[#allocation29 + $0x178] sm:$0xff]
    %v3174 = vld [vmem:[#allocation29 + $0x180] sm:$0xff]
    %v3175 = vld [vmem:[#allocation29 + $0x188] sm:$0xff]
    %v3176 = vld [vmem:[#allocation29 + $0x190] sm:$0xff]
    %v3177 = vld [vmem:[#allocation29 + $0x198] sm:$0xff]
    %v3178 = vld [vmem:[#allocation29 + $0x1a0] sm:$0xff]
    %v3179 = vld [vmem:[#allocation29 + $0x1a8] sm:$0xff]
    %v3180 = vld [vmem:[#allocation29 + $0x1b0] sm:$0xff]
    %v3181 = vld [vmem:[#allocation29 + $0x1b8] sm:$0xff]
    %v3182 = vld [vmem:[#allocation29 + $0x1c0] sm:$0xff]
    %v3183 = vld [vmem:[#allocation29 + $0x1c8] sm:$0xff]
    %v3184 = vld [vmem:[#allocation29 + $0x1d0] sm:$0xff]
    %v3185 = vld [vmem:[#allocation29 + $0x1d8] sm:$0xff]
    %v3186 = vld [vmem:[#allocation29 + $0x1e0] sm:$0xff]
    %v3187 = vld [vmem:[#allocation29 + $0x1e8] sm:$0xff]
    %v3188 = vld [vmem:[#allocation29 + $0x1f0] sm:$0xff]
    %v3189 = vld [vmem:[#allocation29 + $0x1f8] sm:$0xff]
    %v3190 = vld [vmem:[#allocation31] sm:$0x3]
    %v3192 = vlaneseq
    %v3193 = vshrl.u32 %v3192, 7
    %v3194 = vsub.s32 0, %v3193
    %v3195 = vrot.slane %v3190, %v3194
    %v3196 = vlaneseq
    %v3197 = vshrl.u32 %v3196, 7
    %v3198 = vsub.s32 1, %v3197
    %v3199 = vrot.slane %v3190, %v3198
    %3202 = vmatprep.subr.mxu0 %v3127
    %3203 = vmatpush1.msra.mxu0 %v3126
    %3204 = vmatprep.subr.mxu0 %v3129
    %3205 = vmatpush1.msra.mxu0 %v3128
    %3206 = vmatprep.subr.mxu0 %v3131
    %3207 = vmatpush1.msra.mxu0 %v3130
    %3208 = vmatprep.subr.mxu0 %v3133
    %3209 = vmatpush1.msra.mxu0 %v3132
    %3210 = vmatprep.subr.mxu0 %v3135
    %3211 = vmatpush1.msra.mxu0 %v3134
    %3212 = vmatprep.subr.mxu0 %v3137
    %3213 = vmatpush1.msra.mxu0 %v3136
    %3214 = vmatprep.subr.mxu0 %v3139
    %3215 = vmatpush1.msra.mxu0 %v3138
    %3216 = vmatprep.subr.mxu0 %v3141
    %3217 = vmatpush1.msra.mxu0 %v3140
    %3218 = vmatprep.subr.mxu0 %v3143
    %3219 = vmatpush1.msra.mxu0 %v3142
    %3220 = vmatprep.subr.mxu0 %v3145
    %3221 = vmatpush1.msra.mxu0 %v3144
    %3222 = vmatprep.subr.mxu0 %v3147
    %3223 = vmatpush1.msra.mxu0 %v3146
    %3224 = vmatprep.subr.mxu0 %v3149
    %3225 = vmatpush1.msra.mxu0 %v3148
    %3226 = vmatprep.subr.mxu0 %v3151
    %3227 = vmatpush1.msra.mxu0 %v3150
    %3228 = vmatprep.subr.mxu0 %v3153
    %3229 = vmatpush1.msra.mxu0 %v3152
    %3230 = vmatprep.subr.mxu0 %v3155
    %3231 = vmatpush1.msra.mxu0 %v3154
    %3232 = vmatprep.subr.mxu0 %v3157
    %3233 = vmatpush1.msra.mxu0 %v3156
    %3234 = vmatprep.subr.mxu0 %v3159
    %3235 = vmatpush1.msra.mxu0 %v3158
    %3236 = vmatprep.subr.mxu0 %v3161
    %3237 = vmatpush1.msra.mxu0 %v3160
    %3238 = vmatprep.subr.mxu0 %v3163
    %3239 = vmatpush1.msra.mxu0 %v3162
    %3240 = vmatprep.subr.mxu0 %v3165
    %3241 = vmatpush1.msra.mxu0 %v3164
    %3242 = vmatprep.subr.mxu0 %v3167
    %3243 = vmatpush1.msra.mxu0 %v3166
    %3244 = vmatprep.subr.mxu0 %v3169
    %3245 = vmatpush1.msra.mxu0 %v3168
    %3246 = vmatprep.subr.mxu0 %v3171
    %3247 = vmatpush1.msra.mxu0 %v3170
    %3248 = vmatprep.subr.mxu0 %v3173
    %3249 = vmatpush1.msra.mxu0 %v3172
    %3250 = vmatprep.subr.mxu0 %v3175
    %3251 = vmatpush1.msra.mxu0 %v3174
    %3252 = vmatprep.subr.mxu0 %v3177
    %3253 = vmatpush1.msra.mxu0 %v3176
    %3254 = vmatprep.subr.mxu0 %v3179
    %3255 = vmatpush1.msra.mxu0 %v3178
    %3256 = vmatprep.subr.mxu0 %v3181
    %3257 = vmatpush1.msra.mxu0 %v3180
    %3258 = vmatprep.subr.mxu0 %v3183
    %3259 = vmatpush1.msra.mxu0 %v3182
    %3260 = vmatprep.subr.mxu0 %v3185
    %3261 = vmatpush1.msra.mxu0 %v3184
    %3262 = vmatprep.subr.mxu0 %v3187
    %3263 = vmatpush1.msra.mxu0 %v3186
    %3264 = vmatprep.subr.mxu0 %v3189
    %3265 = vmatpush1.msra.mxu0 %v3188
    %3266 = vmatprep.mubr.f32.mxu0 %v2277
    %3267 = vmatmul.mubr.f32.gmra.mrb[0].mxu0 %v2275
    %v3268 = vpop.f32.mrb[0].mxu0
    %v3269 = vadd.f32 %v3195, %v3268
    %v3270 = vpop.f32.mrb[0].mxu0
    %v3271 = vadd.f32 %v3199, %v3270
    %3272 = vdwg.mxu0
    %v3273 = vxor.u32 %v3269, 2147483648
    %v3274 = vxor.u32 %v3271, 2147483648
    %v3275 = vmul.f32 %v3273, 1.442695
    %v3276 = vpow.pop %v3275
    %v3277 = vmul.f32 %v3274, 1.442695
    %v3278 = vpow.pop %v3277
    %v3279 = vadd.f32 %v3276, 1.0
    %v3280 = vadd.f32 %v3278, 1.0
    %v3281 = vrcp.pop %v3279
    %v3282 = vmul.f32 1.0, %v3281
    %v3283 = vrcp.pop %v3280
    %v3284 = vmul.f32 1.0, %v3283
    %v3285 = vld [vmem:[#allocation32] sm:$0xff]
    %v3286 = vld [vmem:[#allocation32 + $0x8] sm:$0xff]
    %v3287 = vld [vmem:[#allocation32 + $0x10] sm:$0xff]
    %v3288 = vld [vmem:[#allocation32 + $0x18] sm:$0xff]
    %v3289 = vld [vmem:[#allocation32 + $0x20] sm:$0xff]
    %v3290 = vld [vmem:[#allocation32 + $0x28] sm:$0xff]
    %v3291 = vld [vmem:[#allocation32 + $0x30] sm:$0xff]
    %v3292 = vld [vmem:[#allocation32 + $0x38] sm:$0xff]
    %v3293 = vld [vmem:[#allocation32 + $0x40] sm:$0xff]
    %v3294 = vld [vmem:[#allocation32 + $0x48] sm:$0xff]
    %v3295 = vld [vmem:[#allocation32 + $0x50] sm:$0xff]
    %v3296 = vld [vmem:[#allocation32 + $0x58] sm:$0xff]
    %v3297 = vld [vmem:[#allocation32 + $0x60] sm:$0xff]
    %v3298 = vld [vmem:[#allocation32 + $0x68] sm:$0xff]
    %v3299 = vld [vmem:[#allocation32 + $0x70] sm:$0xff]
    %v3300 = vld [vmem:[#allocation32 + $0x78] sm:$0xff]
    %v3301 = vld [vmem:[#allocation32 + $0x80] sm:$0xff]
    %v3302 = vld [vmem:[#allocation32 + $0x88] sm:$0xff]
    %v3303 = vld [vmem:[#allocation32 + $0x90] sm:$0xff]
    %v3304 = vld [vmem:[#allocation32 + $0x98] sm:$0xff]
    %v3305 = vld [vmem:[#allocation32 + $0xa0] sm:$0xff]
    %v3306 = vld [vmem:[#allocation32 + $0xa8] sm:$0xff]
    %v3307 = vld [vmem:[#allocation32 + $0xb0] sm:$0xff]
    %v3308 = vld [vmem:[#allocation32 + $0xb8] sm:$0xff]
    %v3309 = vld [vmem:[#allocation32 + $0xc0] sm:$0xff]
    %v3310 = vld [vmem:[#allocation32 + $0xc8] sm:$0xff]
    %v3311 = vld [vmem:[#allocation32 + $0xd0] sm:$0xff]
    %v3312 = vld [vmem:[#allocation32 + $0xd8] sm:$0xff]
    %v3313 = vld [vmem:[#allocation32 + $0xe0] sm:$0xff]
    %v3314 = vld [vmem:[#allocation32 + $0xe8] sm:$0xff]
    %v3315 = vld [vmem:[#allocation32 + $0xf0] sm:$0xff]
    %v3316 = vld [vmem:[#allocation32 + $0xf8] sm:$0xff]
    %v3317 = vld [vmem:[#allocation32 + $0x100] sm:$0xff]
    %v3318 = vld [vmem:[#allocation32 + $0x108] sm:$0xff]
    %v3319 = vld [vmem:[#allocation32 + $0x110] sm:$0xff]
    %v3320 = vld [vmem:[#allocation32 + $0x118] sm:$0xff]
    %v3321 = vld [vmem:[#allocation32 + $0x120] sm:$0xff]
    %v3322 = vld [vmem:[#allocation32 + $0x128] sm:$0xff]
    %v3323 = vld [vmem:[#allocation32 + $0x130] sm:$0xff]
    %v3324 = vld [vmem:[#allocation32 + $0x138] sm:$0xff]
    %v3325 = vld [vmem:[#allocation32 + $0x140] sm:$0xff]
    %v3326 = vld [vmem:[#allocation32 + $0x148] sm:$0xff]
    %v3327 = vld [vmem:[#allocation32 + $0x150] sm:$0xff]
    %v3328 = vld [vmem:[#allocation32 + $0x158] sm:$0xff]
    %v3329 = vld [vmem:[#allocation32 + $0x160] sm:$0xff]
    %v3330 = vld [vmem:[#allocation32 + $0x168] sm:$0xff]
    %v3331 = vld [vmem:[#allocation32 + $0x170] sm:$0xff]
    %v3332 = vld [vmem:[#allocation32 + $0x178] sm:$0xff]
    %v3333 = vld [vmem:[#allocation32 + $0x180] sm:$0xff]
    %v3334 = vld [vmem:[#allocation32 + $0x188] sm:$0xff]
    %v3335 = vld [vmem:[#allocation32 + $0x190] sm:$0xff]
    %v3336 = vld [vmem:[#allocation32 + $0x198] sm:$0xff]
    %v3337 = vld [vmem:[#allocation32 + $0x1a0] sm:$0xff]
    %v3338 = vld [vmem:[#allocation32 + $0x1a8] sm:$0xff]
    %v3339 = vld [vmem:[#allocation32 + $0x1b0] sm:$0xff]
    %v3340 = vld [vmem:[#allocation32 + $0x1b8] sm:$0xff]
    %v3341 = vld [vmem:[#allocation32 + $0x1c0] sm:$0xff]
    %v3342 = vld [vmem:[#allocation32 + $0x1c8] sm:$0xff]
    %v3343 = vld [vmem:[#allocation32 + $0x1d0] sm:$0xff]
    %v3344 = vld [vmem:[#allocation32 + $0x1d8] sm:$0xff]
    %v3345 = vld [vmem:[#allocation32 + $0x1e0] sm:$0xff]
    %v3346 = vld [vmem:[#allocation32 + $0x1e8] sm:$0xff]
    %v3347 = vld [vmem:[#allocation32 + $0x1f0] sm:$0xff]
    %v3348 = vld [vmem:[#allocation32 + $0x1f8] sm:$0xff]
    %v3349 = vld [vmem:[#allocation34] sm:$0x3]
    %v3351 = vlaneseq
    %v3352 = vshrl.u32 %v3351, 7
    %v3353 = vsub.s32 0, %v3352
    %v3354 = vrot.slane %v3349, %v3353
    %v3355 = vlaneseq
    %v3356 = vshrl.u32 %v3355, 7
    %v3357 = vsub.s32 1, %v3356
    %v3358 = vrot.slane %v3349, %v3357
    %3361 = vmatprep.subr.mxu0 %v3286
    %3362 = vmatpush1.msra.mxu0 %v3285
    %3363 = vmatprep.subr.mxu0 %v3288
    %3364 = vmatpush1.msra.mxu0 %v3287
    %3365 = vmatprep.subr.mxu0 %v3290
    %3366 = vmatpush1.msra.mxu0 %v3289
    %3367 = vmatprep.subr.mxu0 %v3292
    %3368 = vmatpush1.msra.mxu0 %v3291
    %3369 = vmatprep.subr.mxu0 %v3294
    %3370 = vmatpush1.msra.mxu0 %v3293
    %3371 = vmatprep.subr.mxu0 %v3296
    %3372 = vmatpush1.msra.mxu0 %v3295
    %3373 = vmatprep.subr.mxu0 %v3298
    %3374 = vmatpush1.msra.mxu0 %v3297
    %3375 = vmatprep.subr.mxu0 %v3300
    %3376 = vmatpush1.msra.mxu0 %v3299
    %3377 = vmatprep.subr.mxu0 %v3302
    %3378 = vmatpush1.msra.mxu0 %v3301
    %3379 = vmatprep.subr.mxu0 %v3304
    %3380 = vmatpush1.msra.mxu0 %v3303
    %3381 = vmatprep.subr.mxu0 %v3306
    %3382 = vmatpush1.msra.mxu0 %v3305
    %3383 = vmatprep.subr.mxu0 %v3308
    %3384 = vmatpush1.msra.mxu0 %v3307
    %3385 = vmatprep.subr.mxu0 %v3310
    %3386 = vmatpush1.msra.mxu0 %v3309
    %3387 = vmatprep.subr.mxu0 %v3312
    %3388 = vmatpush1.msra.mxu0 %v3311
    %3389 = vmatprep.subr.mxu0 %v3314
    %3390 = vmatpush1.msra.mxu0 %v3313
    %3391 = vmatprep.subr.mxu0 %v3316
    %3392 = vmatpush1.msra.mxu0 %v3315
    %3393 = vmatprep.subr.mxu0 %v3318
    %3394 = vmatpush1.msra.mxu0 %v3317
    %3395 = vmatprep.subr.mxu0 %v3320
    %3396 = vmatpush1.msra.mxu0 %v3319
    %3397 = vmatprep.subr.mxu0 %v3322
    %3398 = vmatpush1.msra.mxu0 %v3321
    %3399 = vmatprep.subr.mxu0 %v3324
    %3400 = vmatpush1.msra.mxu0 %v3323
    %3401 = vmatprep.subr.mxu0 %v3326
    %3402 = vmatpush1.msra.mxu0 %v3325
    %3403 = vmatprep.subr.mxu0 %v3328
    %3404 = vmatpush1.msra.mxu0 %v3327
    %3405 = vmatprep.subr.mxu0 %v3330
    %3406 = vmatpush1.msra.mxu0 %v3329
    %3407 = vmatprep.subr.mxu0 %v3332
    %3408 = vmatpush1.msra.mxu0 %v3331
    %3409 = vmatprep.subr.mxu0 %v3334
    %3410 = vmatpush1.msra.mxu0 %v3333
    %3411 = vmatprep.subr.mxu0 %v3336
    %3412 = vmatpush1.msra.mxu0 %v3335
    %3413 = vmatprep.subr.mxu0 %v3338
    %3414 = vmatpush1.msra.mxu0 %v3337
    %3415 = vmatprep.subr.mxu0 %v3340
    %3416 = vmatpush1.msra.mxu0 %v3339
    %3417 = vmatprep.subr.mxu0 %v3342
    %3418 = vmatpush1.msra.mxu0 %v3341
    %3419 = vmatprep.subr.mxu0 %v3344
    %3420 = vmatpush1.msra.mxu0 %v3343
    %3421 = vmatprep.subr.mxu0 %v3346
    %3422 = vmatpush1.msra.mxu0 %v3345
    %3423 = vmatprep.subr.mxu0 %v3348
    %3424 = vmatpush1.msra.mxu0 %v3347
    %3425 = vmatprep.mubr.f32.mxu0 %v1764
    %3426 = vmatmul.mubr.f32.gmra.mrb[0].mxu0 %v1762
    %v3427 = vpop.f32.mrb[0].mxu0
    %v3428 = vadd.f32 %v3354, %v3427
    %v3429 = vpop.f32.mrb[0].mxu0
    %v3430 = vadd.f32 %v3358, %v3429
    %3431 = vdwg.mxu0
    %v3432 = vxor.u32 %v3428, 2147483648
    %v3433 = vxor.u32 %v3430, 2147483648
    %v3434 = vmul.f32 %v3432, 1.442695
    %v3435 = vpow.pop %v3434
    %v3436 = vmul.f32 %v3433, 1.442695
    %v3437 = vpow.pop %v3436
    %v3438 = vadd.f32 %v3435, 1.0
    %v3439 = vadd.f32 %v3437, 1.0
    %v3440 = vrcp.pop %v3438
    %v3441 = vmul.f32 1.0, %v3440
    %v3442 = vrcp.pop %v3439
    %v3443 = vmul.f32 1.0, %v3442
    %v3444 = vadd.f32 %v3441, 1.0
    %v3445 = vadd.f32 %v3443, 1.0
    %v3446 = vmul.f32 %v2275, %v3444
    %v3447 = vmul.f32 %v2277, %v3445
    %v3448 = vadd.f32 %v3282, 1.0
    %v3449 = vadd.f32 %v3284, 1.0
    %v3450 = vmul.f32 %v1762, %v3448
    %v3451 = vmul.f32 %v1764, %v3449
    %v3452 = vld [vmem:[#allocation35] sm:$0xff]
    %v3453 = vld [vmem:[#allocation35 + $0x8] sm:$0xff]
    %v3454 = vld [vmem:[#allocation35 + $0x10] sm:$0xff]
    %v3455 = vld [vmem:[#allocation35 + $0x18] sm:$0xff]
    %v3456 = vld [vmem:[#allocation35 + $0x20] sm:$0xff]
    %v3457 = vld [vmem:[#allocation35 + $0x28] sm:$0xff]
    %v3458 = vld [vmem:[#allocation35 + $0x30] sm:$0xff]
    %v3459 = vld [vmem:[#allocation35 + $0x38] sm:$0xff]
    %v3460 = vld [vmem:[#allocation35 + $0x40] sm:$0xff]
    %v3461 = vld [vmem:[#allocation35 + $0x48] sm:$0xff]
    %v3462 = vld [vmem:[#allocation35 + $0x50] sm:$0xff]
    %v3463 = vld [vmem:[#allocation35 + $0x58] sm:$0xff]
    %v3464 = vld [vmem:[#allocation35 + $0x60] sm:$0xff]
    %v3465 = vld [vmem:[#allocation35 + $0x68] sm:$0xff]
    %v3466 = vld [vmem:[#allocation35 + $0x70] sm:$0xff]
    %v3467 = vld [vmem:[#allocation35 + $0x78] sm:$0xff]
    %v3468 = vld [vmem:[#allocation35 + $0x80] sm:$0xff]
    %v3469 = vld [vmem:[#allocation35 + $0x88] sm:$0xff]
    %v3470 = vld [vmem:[#allocation35 + $0x90] sm:$0xff]
    %v3471 = vld [vmem:[#allocation35 + $0x98] sm:$0xff]
    %v3472 = vld [vmem:[#allocation35 + $0xa0] sm:$0xff]
    %v3473 = vld [vmem:[#allocation35 + $0xa8] sm:$0xff]
    %v3474 = vld [vmem:[#allocation35 + $0xb0] sm:$0xff]
    %v3475 = vld [vmem:[#allocation35 + $0xb8] sm:$0xff]
    %v3476 = vld [vmem:[#allocation35 + $0xc0] sm:$0xff]
    %v3477 = vld [vmem:[#allocation35 + $0xc8] sm:$0xff]
    %v3478 = vld [vmem:[#allocation35 + $0xd0] sm:$0xff]
    %v3479 = vld [vmem:[#allocation35 + $0xd8] sm:$0xff]
    %v3480 = vld [vmem:[#allocation35 + $0xe0] sm:$0xff]
    %v3481 = vld [vmem:[#allocation35 + $0xe8] sm:$0xff]
    %v3482 = vld [vmem:[#allocation35 + $0xf0] sm:$0xff]
    %v3483 = vld [vmem:[#allocation35 + $0xf8] sm:$0xff]
    %v3484 = vld [vmem:[#allocation35 + $0x100] sm:$0xff]
    %v3485 = vld [vmem:[#allocation35 + $0x108] sm:$0xff]
    %v3486 = vld [vmem:[#allocation35 + $0x110] sm:$0xff]
    %v3487 = vld [vmem:[#allocation35 + $0x118] sm:$0xff]
    %v3488 = vld [vmem:[#allocation35 + $0x120] sm:$0xff]
    %v3489 = vld [vmem:[#allocation35 + $0x128] sm:$0xff]
    %v3490 = vld [vmem:[#allocation35 + $0x130] sm:$0xff]
    %v3491 = vld [vmem:[#allocation35 + $0x138] sm:$0xff]
    %v3492 = vld [vmem:[#allocation35 + $0x140] sm:$0xff]
    %v3493 = vld [vmem:[#allocation35 + $0x148] sm:$0xff]
    %v3494 = vld [vmem:[#allocation35 + $0x150] sm:$0xff]
    %v3495 = vld [vmem:[#allocation35 + $0x158] sm:$0xff]
    %v3496 = vld [vmem:[#allocation35 + $0x160] sm:$0xff]
    %v3497 = vld [vmem:[#allocation35 + $0x168] sm:$0xff]
    %v3498 = vld [vmem:[#allocation35 + $0x170] sm:$0xff]
    %v3499 = vld [vmem:[#allocation35 + $0x178] sm:$0xff]
    %v3500 = vld [vmem:[#allocation35 + $0x180] sm:$0xff]
    %v3501 = vld [vmem:[#allocation35 + $0x188] sm:$0xff]
    %v3502 = vld [vmem:[#allocation35 + $0x190] sm:$0xff]
    %v3503 = vld [vmem:[#allocation35 + $0x198] sm:$0xff]
    %v3504 = vld [vmem:[#allocation35 + $0x1a0] sm:$0xff]
    %v3505 = vld [vmem:[#allocation35 + $0x1a8] sm:$0xff]
    %v3506 = vld [vmem:[#allocation35 + $0x1b0] sm:$0xff]
    %v3507 = vld [vmem:[#allocation35 + $0x1b8] sm:$0xff]
    %v3508 = vld [vmem:[#allocation35 + $0x1c0] sm:$0xff]
    %v3509 = vld [vmem:[#allocation35 + $0x1c8] sm:$0xff]
    %v3510 = vld [vmem:[#allocation35 + $0x1d0] sm:$0xff]
    %v3511 = vld [vmem:[#allocation35 + $0x1d8] sm:$0xff]
    %v3512 = vld [vmem:[#allocation35 + $0x1e0] sm:$0xff]
    %v3513 = vld [vmem:[#allocation35 + $0x1e8] sm:$0xff]
    %v3514 = vld [vmem:[#allocation35 + $0x1f0] sm:$0xff]
    %v3515 = vld [vmem:[#allocation35 + $0x1f8] sm:$0xff]
    %v3516 = vld [vmem:[#allocation35 + $0x200] sm:$0xff]
    %v3517 = vld [vmem:[#allocation35 + $0x208] sm:$0xff]
    %v3518 = vld [vmem:[#allocation35 + $0x210] sm:$0xff]
    %v3519 = vld [vmem:[#allocation35 + $0x218] sm:$0xff]
    %v3520 = vld [vmem:[#allocation35 + $0x220] sm:$0xff]
    %v3521 = vld [vmem:[#allocation35 + $0x228] sm:$0xff]
    %v3522 = vld [vmem:[#allocation35 + $0x230] sm:$0xff]
    %v3523 = vld [vmem:[#allocation35 + $0x238] sm:$0xff]
    %v3524 = vld [vmem:[#allocation35 + $0x240] sm:$0xff]
    %v3525 = vld [vmem:[#allocation35 + $0x248] sm:$0xff]
    %v3526 = vld [vmem:[#allocation35 + $0x250] sm:$0xff]
    %v3527 = vld [vmem:[#allocation35 + $0x258] sm:$0xff]
    %v3528 = vld [vmem:[#allocation35 + $0x260] sm:$0xff]
    %v3529 = vld [vmem:[#allocation35 + $0x268] sm:$0xff]
    %v3530 = vld [vmem:[#allocation35 + $0x270] sm:$0xff]
    %v3531 = vld [vmem:[#allocation35 + $0x278] sm:$0xff]
    %v3532 = vld [vmem:[#allocation35 + $0x280] sm:$0xff]
    %v3533 = vld [vmem:[#allocation35 + $0x288] sm:$0xff]
    %v3534 = vld [vmem:[#allocation35 + $0x290] sm:$0xff]
    %v3535 = vld [vmem:[#allocation35 + $0x298] sm:$0xff]
    %v3536 = vld [vmem:[#allocation35 + $0x2a0] sm:$0xff]
    %v3537 = vld [vmem:[#allocation35 + $0x2a8] sm:$0xff]
    %v3538 = vld [vmem:[#allocation35 + $0x2b0] sm:$0xff]
    %v3539 = vld [vmem:[#allocation35 + $0x2b8] sm:$0xff]
    %v3540 = vld [vmem:[#allocation35 + $0x2c0] sm:$0xff]
    %v3541 = vld [vmem:[#allocation35 + $0x2c8] sm:$0xff]
    %v3542 = vld [vmem:[#allocation35 + $0x2d0] sm:$0xff]
    %v3543 = vld [vmem:[#allocation35 + $0x2d8] sm:$0xff]
    %v3544 = vld [vmem:[#allocation35 + $0x2e0] sm:$0xff]
    %v3545 = vld [vmem:[#allocation35 + $0x2e8] sm:$0xff]
    %v3546 = vld [vmem:[#allocation35 + $0x2f0] sm:$0xff]
    %v3547 = vld [vmem:[#allocation35 + $0x2f8] sm:$0xff]
    %v3548 = vld [vmem:[#allocation35 + $0x300] sm:$0xff]
    %v3549 = vld [vmem:[#allocation35 + $0x308] sm:$0xff]
    %v3550 = vld [vmem:[#allocation35 + $0x310] sm:$0xff]
    %v3551 = vld [vmem:[#allocation35 + $0x318] sm:$0xff]
    %v3552 = vld [vmem:[#allocation35 + $0x320] sm:$0xff]
    %v3553 = vld [vmem:[#allocation35 + $0x328] sm:$0xff]
    %v3554 = vld [vmem:[#allocation35 + $0x330] sm:$0xff]
    %v3555 = vld [vmem:[#allocation35 + $0x338] sm:$0xff]
    %v3556 = vld [vmem:[#allocation35 + $0x340] sm:$0xff]
    %v3557 = vld [vmem:[#allocation35 + $0x348] sm:$0xff]
    %v3558 = vld [vmem:[#allocation35 + $0x350] sm:$0xff]
    %v3559 = vld [vmem:[#allocation35 + $0x358] sm:$0xff]
    %v3560 = vld [vmem:[#allocation35 + $0x360] sm:$0xff]
    %v3561 = vld [vmem:[#allocation35 + $0x368] sm:$0xff]
    %v3562 = vld [vmem:[#allocation35 + $0x370] sm:$0xff]
    %v3563 = vld [vmem:[#allocation35 + $0x378] sm:$0xff]
    %v3564 = vld [vmem:[#allocation35 + $0x380] sm:$0xff]
    %v3565 = vld [vmem:[#allocation35 + $0x388] sm:$0xff]
    %v3566 = vld [vmem:[#allocation35 + $0x390] sm:$0xff]
    %v3567 = vld [vmem:[#allocation35 + $0x398] sm:$0xff]
    %v3568 = vld [vmem:[#allocation35 + $0x3a0] sm:$0xff]
    %v3569 = vld [vmem:[#allocation35 + $0x3a8] sm:$0xff]
    %v3570 = vld [vmem:[#allocation35 + $0x3b0] sm:$0xff]
    %v3571 = vld [vmem:[#allocation35 + $0x3b8] sm:$0xff]
    %v3572 = vld [vmem:[#allocation35 + $0x3c0] sm:$0xff]
    %v3573 = vld [vmem:[#allocation35 + $0x3c8] sm:$0xff]
    %v3574 = vld [vmem:[#allocation35 + $0x3d0] sm:$0xff]
    %v3575 = vld [vmem:[#allocation35 + $0x3d8] sm:$0xff]
    %v3576 = vld [vmem:[#allocation35 + $0x3e0] sm:$0xff]
    %v3577 = vld [vmem:[#allocation35 + $0x3e8] sm:$0xff]
    %v3578 = vld [vmem:[#allocation35 + $0x3f0] sm:$0xff]
    %v3579 = vld [vmem:[#allocation35 + $0x3f8] sm:$0xff]
    %3580 = vmatprep.subr.mxu0 %v3517
    %3581 = vmatpush1.msra.mxu0 %v3516
    %3582 = vmatprep.subr.mxu0 %v3519
    %3583 = vmatpush1.msra.mxu0 %v3518
    %3584 = vmatprep.subr.mxu0 %v3521
    %3585 = vmatpush1.msra.mxu0 %v3520
    %3586 = vmatprep.subr.mxu0 %v3523
    %3587 = vmatpush1.msra.mxu0 %v3522
    %3588 = vmatprep.subr.mxu0 %v3525
    %3589 = vmatpush1.msra.mxu0 %v3524
    %3590 = vmatprep.subr.mxu0 %v3527
    %3591 = vmatpush1.msra.mxu0 %v3526
    %3592 = vmatprep.subr.mxu0 %v3529
    %3593 = vmatpush1.msra.mxu0 %v3528
    %3594 = vmatprep.subr.mxu0 %v3531
    %3595 = vmatpush1.msra.mxu0 %v3530
    %3596 = vmatprep.subr.mxu0 %v3533
    %3597 = vmatpush1.msra.mxu0 %v3532
    %3598 = vmatprep.subr.mxu0 %v3535
    %3599 = vmatpush1.msra.mxu0 %v3534
    %3600 = vmatprep.subr.mxu0 %v3537
    %3601 = vmatpush1.msra.mxu0 %v3536
    %3602 = vmatprep.subr.mxu0 %v3539
    %3603 = vmatpush1.msra.mxu0 %v3538
    %3604 = vmatprep.subr.mxu0 %v3541
    %3605 = vmatpush1.msra.mxu0 %v3540
    %3606 = vmatprep.subr.mxu0 %v3543
    %3607 = vmatpush1.msra.mxu0 %v3542
    %3608 = vmatprep.subr.mxu0 %v3545
    %3609 = vmatpush1.msra.mxu0 %v3544
    %3610 = vmatprep.subr.mxu0 %v3547
    %3611 = vmatpush1.msra.mxu0 %v3546
    %3612 = vmatprep.subr.mxu0 %v3549
    %3613 = vmatpush1.msra.mxu0 %v3548
    %3614 = vmatprep.subr.mxu0 %v3551
    %3615 = vmatpush1.msra.mxu0 %v3550
    %3616 = vmatprep.subr.mxu0 %v3553
    %3617 = vmatpush1.msra.mxu0 %v3552
    %3618 = vmatprep.subr.mxu0 %v3555
    %3619 = vmatpush1.msra.mxu0 %v3554
    %3620 = vmatprep.subr.mxu0 %v3557
    %3621 = vmatpush1.msra.mxu0 %v3556
    %3622 = vmatprep.subr.mxu0 %v3559
    %3623 = vmatpush1.msra.mxu0 %v3558
    %3624 = vmatprep.subr.mxu0 %v3561
    %3625 = vmatpush1.msra.mxu0 %v3560
    %3626 = vmatprep.subr.mxu0 %v3563
    %3627 = vmatpush1.msra.mxu0 %v3562
    %3628 = vmatprep.subr.mxu0 %v3565
    %3629 = vmatpush1.msra.mxu0 %v3564
    %3630 = vmatprep.subr.mxu0 %v3567
    %3631 = vmatpush1.msra.mxu0 %v3566
    %3632 = vmatprep.subr.mxu0 %v3569
    %3633 = vmatpush1.msra.mxu0 %v3568
    %3634 = vmatprep.subr.mxu0 %v3571
    %3635 = vmatpush1.msra.mxu0 %v3570
    %3636 = vmatprep.subr.mxu0 %v3573
    %3637 = vmatpush1.msra.mxu0 %v3572
    %3638 = vmatprep.subr.mxu0 %v3575
    %3639 = vmatpush1.msra.mxu0 %v3574
    %3640 = vmatprep.subr.mxu0 %v3577
    %3641 = vmatpush1.msra.mxu0 %v3576
    %3642 = vmatprep.subr.mxu0 %v3579
    %3643 = vmatpush1.msra.mxu0 %v3578
    %3644 = vmatprep.mubr.f32.mxu0 %v3451
    %3645 = vmatmul.mubr.f32.gmra.mrb[0].mxu0 %v3450
    %v3646 = vpop.f32.mrb[0].mxu0
    %v3647 = vadd.f32 0.0, %v3646
    %v3648 = vpop.f32.mrb[0].mxu0
    %v3649 = vadd.f32 0.0, %v3648
    %3650 = vdwg.mxu0
    %3651 = vmatprep.subr.mxu0 %v3453
    %3652 = vmatpush1.msra.mxu0 %v3452
    %3653 = vmatprep.subr.mxu0 %v3455
    %3654 = vmatpush1.msra.mxu0 %v3454
    %3655 = vmatprep.subr.mxu0 %v3457
    %3656 = vmatpush1.msra.mxu0 %v3456
    %3657 = vmatprep.subr.mxu0 %v3459
    %3658 = vmatpush1.msra.mxu0 %v3458
    %3659 = vmatprep.subr.mxu0 %v3461
    %3660 = vmatpush1.msra.mxu0 %v3460
    %3661 = vmatprep.subr.mxu0 %v3463
    %3662 = vmatpush1.msra.mxu0 %v3462
    %3663 = vmatprep.subr.mxu0 %v3465
    %3664 = vmatpush1.msra.mxu0 %v3464
    %3665 = vmatprep.subr.mxu0 %v3467
    %3666 = vmatpush1.msra.mxu0 %v3466
    %3667 = vmatprep.subr.mxu0 %v3469
    %3668 = vmatpush1.msra.mxu0 %v3468
    %3669 = vmatprep.subr.mxu0 %v3471
    %3670 = vmatpush1.msra.mxu0 %v3470
    %3671 = vmatprep.subr.mxu0 %v3473
    %3672 = vmatpush1.msra.mxu0 %v3472
    %3673 = vmatprep.subr.mxu0 %v3475
    %3674 = vmatpush1.msra.mxu0 %v3474
    %3675 = vmatprep.subr.mxu0 %v3477
    %3676 = vmatpush1.msra.mxu0 %v3476
    %3677 = vmatprep.subr.mxu0 %v3479
    %3678 = vmatpush1.msra.mxu0 %v3478
    %3679 = vmatprep.subr.mxu0 %v3481
    %3680 = vmatpush1.msra.mxu0 %v3480
    %3681 = vmatprep.subr.mxu0 %v3483
    %3682 = vmatpush1.msra.mxu0 %v3482
    %3683 = vmatprep.subr.mxu0 %v3485
    %3684 = vmatpush1.msra.mxu0 %v3484
    %3685 = vmatprep.subr.mxu0 %v3487
    %3686 = vmatpush1.msra.mxu0 %v3486
    %3687 = vmatprep.subr.mxu0 %v3489
    %3688 = vmatpush1.msra.mxu0 %v3488
    %3689 = vmatprep.subr.mxu0 %v3491
    %3690 = vmatpush1.msra.mxu0 %v3490
    %3691 = vmatprep.subr.mxu0 %v3493
    %3692 = vmatpush1.msra.mxu0 %v3492
    %3693 = vmatprep.subr.mxu0 %v3495
    %3694 = vmatpush1.msra.mxu0 %v3494
    %3695 = vmatprep.subr.mxu0 %v3497
    %3696 = vmatpush1.msra.mxu0 %v3496
    %3697 = vmatprep.subr.mxu0 %v3499
    %3698 = vmatpush1.msra.mxu0 %v3498
    %3699 = vmatprep.subr.mxu0 %v3501
    %3700 = vmatpush1.msra.mxu0 %v3500
    %3701 = vmatprep.subr.mxu0 %v3503
    %3702 = vmatpush1.msra.mxu0 %v3502
    %3703 = vmatprep.subr.mxu0 %v3505
    %3704 = vmatpush1.msra.mxu0 %v3504
    %3705 = vmatprep.subr.mxu0 %v3507
    %3706 = vmatpush1.msra.mxu0 %v3506
    %3707 = vmatprep.subr.mxu0 %v3509
    %3708 = vmatpush1.msra.mxu0 %v3508
    %3709 = vmatprep.subr.mxu0 %v3511
    %3710 = vmatpush1.msra.mxu0 %v3510
    %3711 = vmatprep.subr.mxu0 %v3513
    %3712 = vmatpush1.msra.mxu0 %v3512
    %3713 = vmatprep.subr.mxu0 %v3515
    %3714 = vmatpush1.msra.mxu0 %v3514
    %3715 = vmatprep.mubr.f32.mxu0 %v3447
    %3716 = vmatmul.mubr.f32.gmra.mrb[0].mxu0 %v3446
    %v3717 = vpop.f32.mrb[0].mxu0
    %v3718 = vadd.f32 %v3647, %v3717
    %v3719 = vpop.f32.mrb[0].mxu0
    %v3720 = vadd.f32 %v3649, %v3719
    %3721 = vdwg.mxu0
    %v3722 = vld [vmem:[#allocation37] sm:$0x3]
    %v3724 = vlaneseq
    %v3725 = vshrl.u32 %v3724, 7
    %v3726 = vsub.s32 0, %v3725
    %v3727 = vrot.slane %v3722, %v3726
    %v3728 = vlaneseq
    %v3729 = vshrl.u32 %v3728, 7
    %v3730 = vsub.s32 1, %v3729
    %v3731 = vrot.slane %v3722, %v3730
    %v3734 = vadd.f32 %v3718, %v3727
    %v3735 = vadd.f32 %v3720, %v3731
    %v3736 = vmax.f32 %v3734, 0.0
    %v3737 = vmax.f32 %v3735, 0.0
    %v3738 = vld [vmem:[%s23] sm:$0xff]
    %v3739 = vld [vmem:[%s23 + $0x8] sm:$0xff]
    %v3740 = vld [vmem:[%s23 + $0x10] sm:$0xff]
    %v3741 = vld [vmem:[%s23 + $0x18] sm:$0xff]
    %v3742 = vld [vmem:[%s23 + $0x20] sm:$0xff]
    %v3743 = vld [vmem:[%s23 + $0x28] sm:$0xff]
    %v3744 = vld [vmem:[%s23 + $0x30] sm:$0xff]
    %v3745 = vld [vmem:[%s23 + $0x38] sm:$0xff]
    %v3746 = vld [vmem:[%s23 + $0x40] sm:$0xff]
    %v3747 = vld [vmem:[%s23 + $0x48] sm:$0xff]
    %v3748 = vld [vmem:[%s23 + $0x50] sm:$0xff]
    %v3749 = vld [vmem:[%s23 + $0x58] sm:$0xff]
    %v3750 = vld [vmem:[%s23 + $0x60] sm:$0xff]
    %v3751 = vld [vmem:[%s23 + $0x68] sm:$0xff]
    %v3752 = vld [vmem:[%s23 + $0x70] sm:$0xff]
    %v3753 = vld [vmem:[%s23 + $0x78] sm:$0xff]
    %v3754 = vld [vmem:[%s23 + $0x80] sm:$0xff]
    %v3755 = vld [vmem:[%s23 + $0x88] sm:$0xff]
    %v3756 = vld [vmem:[%s23 + $0x90] sm:$0xff]
    %v3757 = vld [vmem:[%s23 + $0x98] sm:$0xff]
    %v3758 = vld [vmem:[%s23 + $0xa0] sm:$0xff]
    %v3759 = vld [vmem:[%s23 + $0xa8] sm:$0xff]
    %v3760 = vld [vmem:[%s23 + $0xb0] sm:$0xff]
    %v3761 = vld [vmem:[%s23 + $0xb8] sm:$0xff]
    %v3762 = vld [vmem:[%s23 + $0xc0] sm:$0xff]
    %v3763 = vld [vmem:[%s23 + $0xc8] sm:$0xff]
    %v3764 = vld [vmem:[%s23 + $0xd0] sm:$0xff]
    %v3765 = vld [vmem:[%s23 + $0xd8] sm:$0xff]
    %v3766 = vld [vmem:[%s23 + $0xe0] sm:$0xff]
    %v3767 = vld [vmem:[%s23 + $0xe8] sm:$0xff]
    %v3768 = vld [vmem:[%s23 + $0xf0] sm:$0xff]
    %v3769 = vld [vmem:[%s23 + $0xf8] sm:$0xff]
    %v3770 = vld [vmem:[%s23 + $0x100] sm:$0xff]
    %v3771 = vld [vmem:[%s23 + $0x108] sm:$0xff]
    %v3772 = vld [vmem:[%s23 + $0x110] sm:$0xff]
    %v3773 = vld [vmem:[%s23 + $0x118] sm:$0xff]
    %v3774 = vld [vmem:[%s23 + $0x120] sm:$0xff]
    %v3775 = vld [vmem:[%s23 + $0x128] sm:$0xff]
    %v3776 = vld [vmem:[%s23 + $0x130] sm:$0xff]
    %v3777 = vld [vmem:[%s23 + $0x138] sm:$0xff]
    %v3778 = vld [vmem:[%s23 + $0x140] sm:$0xff]
    %v3779 = vld [vmem:[%s23 + $0x148] sm:$0xff]
    %v3780 = vld [vmem:[%s23 + $0x150] sm:$0xff]
    %v3781 = vld [vmem:[%s23 + $0x158] sm:$0xff]
    %v3782 = vld [vmem:[%s23 + $0x160] sm:$0xff]
    %v3783 = vld [vmem:[%s23 + $0x168] sm:$0xff]
    %v3784 = vld [vmem:[%s23 + $0x170] sm:$0xff]
    %v3785 = vld [vmem:[%s23 + $0x178] sm:$0xff]
    %v3786 = vld [vmem:[%s23 + $0x180] sm:$0xff]
    %v3787 = vld [vmem:[%s23 + $0x188] sm:$0xff]
    %v3788 = vld [vmem:[%s23 + $0x190] sm:$0xff]
    %v3789 = vld [vmem:[%s23 + $0x198] sm:$0xff]
    %v3790 = vld [vmem:[%s23 + $0x1a0] sm:$0xff]
    %v3791 = vld [vmem:[%s23 + $0x1a8] sm:$0xff]
    %v3792 = vld [vmem:[%s23 + $0x1b0] sm:$0xff]
    %v3793 = vld [vmem:[%s23 + $0x1b8] sm:$0xff]
    %v3794 = vld [vmem:[%s23 + $0x1c0] sm:$0xff]
    %v3795 = vld [vmem:[%s23 + $0x1c8] sm:$0xff]
    %v3796 = vld [vmem:[%s23 + $0x1d0] sm:$0xff]
    %v3797 = vld [vmem:[%s23 + $0x1d8] sm:$0xff]
    %v3798 = vld [vmem:[%s23 + $0x1e0] sm:$0xff]
    %v3799 = vld [vmem:[%s23 + $0x1e8] sm:$0xff]
    %v3800 = vld [vmem:[%s23 + $0x1f0] sm:$0xff]
    %v3801 = vld [vmem:[%s23 + $0x1f8] sm:$0xff]
    %3802 = vmatprep.subr.mxu0 0.0
    %3803 = vmatpush1.msra.mxu0 %v3770
    %3804 = vmatprep.subr.mxu0 0.0
    %3805 = vmatpush1.msra.mxu0 %v3771
    %3806 = vmatprep.subr.mxu0 0.0
    %3807 = vmatpush1.msra.mxu0 %v3772
    %3808 = vmatprep.subr.mxu0 0.0
    %3809 = vmatpush1.msra.mxu0 %v3773
    %3810 = vmatprep.subr.mxu0 0.0
    %3811 = vmatpush1.msra.mxu0 %v3774
    %3812 = vmatprep.subr.mxu0 0.0
    %3813 = vmatpush1.msra.mxu0 %v3775
    %3814 = vmatprep.subr.mxu0 0.0
    %3815 = vmatpush1.msra.mxu0 %v3776
    %3816 = vmatprep.subr.mxu0 0.0
    %3817 = vmatpush1.msra.mxu0 %v3777
    %3818 = vmatprep.subr.mxu0 0.0
    %3819 = vmatpush1.msra.mxu0 %v3778
    %3820 = vmatprep.subr.mxu0 0.0
    %3821 = vmatpush1.msra.mxu0 %v3779
    %3822 = vmatprep.subr.mxu0 0.0
    %3823 = vmatpush1.msra.mxu0 %v3780
    %3824 = vmatprep.subr.mxu0 0.0
    %3825 = vmatpush1.msra.mxu0 %v3781
    %3826 = vmatprep.subr.mxu0 0.0
    %3827 = vmatpush1.msra.mxu0 %v3782
    %3828 = vmatprep.subr.mxu0 0.0
    %3829 = vmatpush1.msra.mxu0 %v3783
    %3830 = vmatprep.subr.mxu0 0.0
    %3831 = vmatpush1.msra.mxu0 %v3784
    %3832 = vmatprep.subr.mxu0 0.0
    %3833 = vmatpush1.msra.mxu0 %v3785
    %3834 = vmatprep.subr.mxu0 0.0
    %3835 = vmatpush1.msra.mxu0 %v3786
    %3836 = vmatprep.subr.mxu0 0.0
    %3837 = vmatpush1.msra.mxu0 %v3787
    %3838 = vmatprep.subr.mxu0 0.0
    %3839 = vmatpush1.msra.mxu0 %v3788
    %3840 = vmatprep.subr.mxu0 0.0
    %3841 = vmatpush1.msra.mxu0 %v3789
    %3842 = vmatprep.subr.mxu0 0.0
    %3843 = vmatpush1.msra.mxu0 %v3790
    %3844 = vmatprep.subr.mxu0 0.0
    %3845 = vmatpush1.msra.mxu0 %v3791
    %3846 = vmatprep.subr.mxu0 0.0
    %3847 = vmatpush1.msra.mxu0 %v3792
    %3848 = vmatprep.subr.mxu0 0.0
    %3849 = vmatpush1.msra.mxu0 %v3793
    %3850 = vmatprep.subr.mxu0 0.0
    %3851 = vmatpush1.msra.mxu0 %v3794
    %3852 = vmatprep.subr.mxu0 0.0
    %3853 = vmatpush1.msra.mxu0 %v3795
    %3854 = vmatprep.subr.mxu0 0.0
    %3855 = vmatpush1.msra.mxu0 %v3796
    %3856 = vmatprep.subr.mxu0 0.0
    %3857 = vmatpush1.msra.mxu0 %v3797
    %3858 = vmatprep.subr.mxu0 0.0
    %3859 = vmatpush1.msra.mxu0 %v3798
    %3860 = vmatprep.subr.mxu0 0.0
    %3861 = vmatpush1.msra.mxu0 %v3799
    %3862 = vmatprep.subr.mxu0 0.0
    %3863 = vmatpush1.msra.mxu0 %v3800
    %3864 = vmatprep.subr.mxu0 0.0
    %3865 = vmatpush1.msra.mxu0 %v3801
    %3866 = vmatprep.mubr.f32.mxu0 %v3125
    %3867 = vmatmul.mubr.f32.gmra.mrb[0].mxu0 %v3124
    %v3868 = vpop.f32.mrb[0].mxu0
    %v3869 = vadd.f32 0.0, %v3868
    %v3870 = vpop.f32.mrb[0].mxu0
    %3871 = vdwg.mxu0
    %3872 = vmatprep.subr.mxu0 0.0
    %3873 = vmatpush1.msra.mxu0 %v3738
    %3874 = vmatprep.subr.mxu0 0.0
    %3875 = vmatpush1.msra.mxu0 %v3739
    %3876 = vmatprep.subr.mxu0 0.0
    %3877 = vmatpush1.msra.mxu0 %v3740
    %3878 = vmatprep.subr.mxu0 0.0
    %3879 = vmatpush1.msra.mxu0 %v3741
    %3880 = vmatprep.subr.mxu0 0.0
    %3881 = vmatpush1.msra.mxu0 %v3742
    %3882 = vmatprep.subr.mxu0 0.0
    %3883 = vmatpush1.msra.mxu0 %v3743
    %3884 = vmatprep.subr.mxu0 0.0
    %3885 = vmatpush1.msra.mxu0 %v3744
    %3886 = vmatprep.subr.mxu0 0.0
    %3887 = vmatpush1.msra.mxu0 %v3745
    %3888 = vmatprep.subr.mxu0 0.0
    %3889 = vmatpush1.msra.mxu0 %v3746
    %3890 = vmatprep.subr.mxu0 0.0
    %3891 = vmatpush1.msra.mxu0 %v3747
    %3892 = vmatprep.subr.mxu0 0.0
    %3893 = vmatpush1.msra.mxu0 %v3748
    %3894 = vmatprep.subr.mxu0 0.0
    %3895 = vmatpush1.msra.mxu0 %v3749
    %3896 = vmatprep.subr.mxu0 0.0
    %3897 = vmatpush1.msra.mxu0 %v3750
    %3898 = vmatprep.subr.mxu0 0.0
    %3899 = vmatpush1.msra.mxu0 %v3751
    %3900 = vmatprep.subr.mxu0 0.0
    %3901 = vmatpush1.msra.mxu0 %v3752
    %3902 = vmatprep.subr.mxu0 0.0
    %3903 = vmatpush1.msra.mxu0 %v3753
    %3904 = vmatprep.subr.mxu0 0.0
    %3905 = vmatpush1.msra.mxu0 %v3754
    %3906 = vmatprep.subr.mxu0 0.0
    %3907 = vmatpush1.msra.mxu0 %v3755
    %3908 = vmatprep.subr.mxu0 0.0
    %3909 = vmatpush1.msra.mxu0 %v3756
    %3910 = vmatprep.subr.mxu0 0.0
    %3911 = vmatpush1.msra.mxu0 %v3757
    %3912 = vmatprep.subr.mxu0 0.0
    %3913 = vmatpush1.msra.mxu0 %v3758
    %3914 = vmatprep.subr.mxu0 0.0
    %3915 = vmatpush1.msra.mxu0 %v3759
    %3916 = vmatprep.subr.mxu0 0.0
    %3917 = vmatpush1.msra.mxu0 %v3760
    %3918 = vmatprep.subr.mxu0 0.0
    %3919 = vmatpush1.msra.mxu0 %v3761
    %3920 = vmatprep.subr.mxu0 0.0
    %3921 = vmatpush1.msra.mxu0 %v3762
    %3922 = vmatprep.subr.mxu0 0.0
    %3923 = vmatpush1.msra.mxu0 %v3763
    %3924 = vmatprep.subr.mxu0 0.0
    %3925 = vmatpush1.msra.mxu0 %v3764
    %3926 = vmatprep.subr.mxu0 0.0
    %3927 = vmatpush1.msra.mxu0 %v3765
    %3928 = vmatprep.subr.mxu0 0.0
    %3929 = vmatpush1.msra.mxu0 %v3766
    %3930 = vmatprep.subr.mxu0 0.0
    %3931 = vmatpush1.msra.mxu0 %v3767
    %3932 = vmatprep.subr.mxu0 0.0
    %3933 = vmatpush1.msra.mxu0 %v3768
    %3934 = vmatprep.subr.mxu0 0.0
    %3935 = vmatpush1.msra.mxu0 %v3769
    %3936 = vmatprep.mubr.f32.mxu0 %v2890
    %3937 = vmatmul.mubr.f32.gmra.mrb[0].mxu0 %v2889
    %v3938 = vpop.f32.mrb[0].mxu0
    %v3939 = vadd.f32 %v3869, %v3938
    %v3940 = vpop.f32.mrb[0].mxu0
    %3941 = vdwg.mxu0
    %v3942 = vld [vmem:[%s23 + $0x200] sm:$0xff]
    %v3943 = vld [vmem:[%s23 + $0x208] sm:$0xff]
    %v3944 = vld [vmem:[%s23 + $0x210] sm:$0xff]
    %v3945 = vld [vmem:[%s23 + $0x218] sm:$0xff]
    %v3946 = vld [vmem:[%s23 + $0x220] sm:$0xff]
    %v3947 = vld [vmem:[%s23 + $0x228] sm:$0xff]
    %v3948 = vld [vmem:[%s23 + $0x230] sm:$0xff]
    %v3949 = vld [vmem:[%s23 + $0x238] sm:$0xff]
    %v3950 = vld [vmem:[%s23 + $0x240] sm:$0xff]
    %v3951 = vld [vmem:[%s23 + $0x248] sm:$0xff]
    %v3952 = vld [vmem:[%s23 + $0x250] sm:$0xff]
    %v3953 = vld [vmem:[%s23 + $0x258] sm:$0xff]
    %v3954 = vld [vmem:[%s23 + $0x260] sm:$0xff]
    %v3955 = vld [vmem:[%s23 + $0x268] sm:$0xff]
    %v3956 = vld [vmem:[%s23 + $0x270] sm:$0xff]
    %v3957 = vld [vmem:[%s23 + $0x278] sm:$0xff]
    %v3958 = vld [vmem:[%s23 + $0x280] sm:$0xff]
    %v3959 = vld [vmem:[%s23 + $0x288] sm:$0xff]
    %v3960 = vld [vmem:[%s23 + $0x290] sm:$0xff]
    %v3961 = vld [vmem:[%s23 + $0x298] sm:$0xff]
    %v3962 = vld [vmem:[%s23 + $0x2a0] sm:$0xff]
    %v3963 = vld [vmem:[%s23 + $0x2a8] sm:$0xff]
    %v3964 = vld [vmem:[%s23 + $0x2b0] sm:$0xff]
    %v3965 = vld [vmem:[%s23 + $0x2b8] sm:$0xff]
    %v3966 = vld [vmem:[%s23 + $0x2c0] sm:$0xff]
    %v3967 = vld [vmem:[%s23 + $0x2c8] sm:$0xff]
    %v3968 = vld [vmem:[%s23 + $0x2d0] sm:$0xff]
    %v3969 = vld [vmem:[%s23 + $0x2d8] sm:$0xff]
    %v3970 = vld [vmem:[%s23 + $0x2e0] sm:$0xff]
    %v3971 = vld [vmem:[%s23 + $0x2e8] sm:$0xff]
    %v3972 = vld [vmem:[%s23 + $0x2f0] sm:$0xff]
    %v3973 = vld [vmem:[%s23 + $0x2f8] sm:$0xff]
    %3974 = vmatprep.subr.mxu0 0.0
    %3975 = vmatpush1.msra.mxu0 %v3942
    %3976 = vmatprep.subr.mxu0 0.0
    %3977 = vmatpush1.msra.mxu0 %v3943
    %3978 = vmatprep.subr.mxu0 0.0
    %3979 = vmatpush1.msra.mxu0 %v3944
    %3980 = vmatprep.subr.mxu0 0.0
    %3981 = vmatpush1.msra.mxu0 %v3945
    %3982 = vmatprep.subr.mxu0 0.0
    %3983 = vmatpush1.msra.mxu0 %v3946
    %3984 = vmatprep.subr.mxu0 0.0
    %3985 = vmatpush1.msra.mxu0 %v3947
    %3986 = vmatprep.subr.mxu0 0.0
    %3987 = vmatpush1.msra.mxu0 %v3948
    %3988 = vmatprep.subr.mxu0 0.0
    %3989 = vmatpush1.msra.mxu0 %v3949
    %3990 = vmatprep.subr.mxu0 0.0
    %3991 = vmatpush1.msra.mxu0 %v3950
    %3992 = vmatprep.subr.mxu0 0.0
    %3993 = vmatpush1.msra.mxu0 %v3951
    %3994 = vmatprep.subr.mxu0 0.0
    %3995 = vmatpush1.msra.mxu0 %v3952
    %3996 = vmatprep.subr.mxu0 0.0
    %3997 = vmatpush1.msra.mxu0 %v3953
    %3998 = vmatprep.subr.mxu0 0.0
    %3999 = vmatpush1.msra.mxu0 %v3954
    %4000 = vmatprep.subr.mxu0 0.0
    %4001 = vmatpush1.msra.mxu0 %v3955
    %4002 = vmatprep.subr.mxu0 0.0
    %4003 = vmatpush1.msra.mxu0 %v3956
    %4004 = vmatprep.subr.mxu0 0.0
    %4005 = vmatpush1.msra.mxu0 %v3957
    %4006 = vmatprep.subr.mxu0 0.0
    %4007 = vmatpush1.msra.mxu0 %v3958
    %4008 = vmatprep.subr.mxu0 0.0
    %4009 = vmatpush1.msra.mxu0 %v3959
    %4010 = vmatprep.subr.mxu0 0.0
    %4011 = vmatpush1.msra.mxu0 %v3960
    %4012 = vmatprep.subr.mxu0 0.0
    %4013 = vmatpush1.msra.mxu0 %v3961
    %4014 = vmatprep.subr.mxu0 0.0
    %4015 = vmatpush1.msra.mxu0 %v3962
    %4016 = vmatprep.subr.mxu0 0.0
    %4017 = vmatpush1.msra.mxu0 %v3963
    %4018 = vmatprep.subr.mxu0 0.0
    %4019 = vmatpush1.msra.mxu0 %v3964
    %4020 = vmatprep.subr.mxu0 0.0
    %4021 = vmatpush1.msra.mxu0 %v3965
    %4022 = vmatprep.subr.mxu0 0.0
    %4023 = vmatpush1.msra.mxu0 %v3966
    %4024 = vmatprep.subr.mxu0 0.0
    %4025 = vmatpush1.msra.mxu0 %v3967
    %4026 = vmatprep.subr.mxu0 0.0
    %4027 = vmatpush1.msra.mxu0 %v3968
    %4028 = vmatprep.subr.mxu0 0.0
    %4029 = vmatpush1.msra.mxu0 %v3969
    %4030 = vmatprep.subr.mxu0 0.0
    %4031 = vmatpush1.msra.mxu0 %v3970
    %4032 = vmatprep.subr.mxu0 0.0
    %4033 = vmatpush1.msra.mxu0 %v3971
    %4034 = vmatprep.subr.mxu0 0.0
    %4035 = vmatpush1.msra.mxu0 %v3972
    %4036 = vmatprep.subr.mxu0 0.0
    %4037 = vmatpush1.msra.mxu0 %v3973
    %4038 = vmatprep.mubr.f32.mxu0 %v3737
    %4039 = vmatmul.mubr.f32.gmra.mrb[0].mxu0 %v3736
    %v4040 = vpop.f32.mrb[0].mxu0
    %v4041 = vadd.f32 0.0, %v4040
    %v4042 = vpop.f32.mrb[0].mxu0
    %4043 = vdwg.mxu0
    %v4044 = vadd.f32 %v3939, %v4041
    %v4045 = vld [vmem:[#allocation2] sm:$0x1]
    %v4047 = vlaneseq
    %v4048 = vshrl.u32 %v4047, 7
    %v4049 = vsub.s32 0, %v4048
    %v4050 = vrot.slane %v4045, %v4049
    %v4052 = vadd.f32 %v4044, %v4050
    %v4053 = vxor.u32 %v4052, 2147483648
    %v4054 = vmul.f32 %v4053, 1.442695
    %v4055 = vpow.pop %v4054
    %v4056 = vadd.f32 %v4055, 1.0
    %v4057 = vrcp.pop %v4056
    %v4058 = vmul.f32 1.0, %v4057
    %vm4059 = vcmask 7168
    %4060 = vst.msk [vmem:[%s25] sm:$0xff] %vm4059, %v4058
    // Predicated region
    $region194: #{tpu_custom_call.1} parent=1 // pred_check
      _
    $region195: #{tpu_custom_call.1} parent=1 // pred_check_branch
      %4062 = sbr.rel (0) target = $region197
    $region196: #{tpu_custom_call.1} parent=1 // pred_region
      _
    $region197: #{tpu_custom_call.1} parent=1 // pred_fallthru
      _
    // Predicated region
    $region198: #{tpu_custom_call.1} parent=1 // pred_check
      _
    $region199: #{tpu_custom_call.1} parent=1 // pred_check_branch
      %4064 = sbr.rel (0) target = $region201
    $region200: #{tpu_custom_call.1} parent=1 // pred_region
      _
    $region201: #{tpu_custom_call.1} parent=1 // pred_fallthru
      _
    %4065 = vsyncpa [#allocation4], 1
    %4066 = vsyncpa [#allocation6], 1
    %4067 = vsyncpa [#allocation9], 1
    %4068 = vsyncpa [#allocation12], 1
    %4069 = vsyncpa [#allocation15], 1
    %4070 = vsyncpa [#allocation18], 1
    %4071 = vsyncpa [#allocation21], 1
    %4072 = vsyncpa [#allocation24], 1
    %4073 = vsyncpa [#allocation27], 1
    %4074 = vsyncpa [#allocation30], 1
    %4075 = vsyncpa [#allocation33], 1
    %4076 = vsyncpa [#allocation36], 1

</llo_original>
